<compile_context>
chip_gen: v7x
topology: tpu7x:2x2x1
jax: 0.10.0
libtpu: 0.0.40
codegen_flags: <defaults>
</compile_context>

<pallas_src>
import jax
import jax.numpy as jnp
from jax.experimental import pallas as pl
from jax.experimental.pallas import tpu as pltpu


_LANE = 128
_HEAD_HIDDEN = 64     # hidden width of both heads (fixed by the module)
_N_DEC = 2            # decision classes
_N_VAL = 3            # value outputs
_OUT_SLAB = _LANE     # lane-dense fused output width


def _round_up(n, m):
    return ((n + m - 1) // m) * m


def _fused_mlp_kernel(x_ref,
                      w1_ref, b1_ref, w2_ref, b2_ref, w3_ref, b3_ref,
                      wh1_ref, bh1_ref, wh2_ref, bh2_ref,
                      out_ref):
    """Fused encoder + (decision | value) heads.

    All matmuls run as bf16 x bf16 on the MXU with f32 accumulation; bias add,
    ReLU and softmax stay in f32.  Output is a single lane-dense [tb, 128]
    slab: cols 0:2 = softmax decision probs, cols 2:5 = values, rest zeros.
    """

    def mm(a, w_ref):
        return jnp.dot(a.astype(jnp.bfloat16), w_ref[...],
                       preferred_element_type=jnp.float32)

    # Single f32 -> bf16 cast; feeds the MXU directly (no f32 round trip).
    x = x_ref[...].astype(jnp.bfloat16)

    # ----- encoder (Dropout = identity in eval mode) -----
    h = jnp.maximum(mm(x, w1_ref) + b1_ref[...], 0.0)
    h = jnp.maximum(mm(h, w2_ref) + b2_ref[...], 0.0)
    e = jnp.maximum(mm(h, w3_ref) + b3_ref[...], 0.0)        # [tb, hidden//2]

    # ----- fused heads: one 128-lane hidden, one block-diagonal matmul -----
    t = jnp.maximum(mm(e, wh1_ref) + bh1_ref[...], 0.0)      # [tb, 128]
    out = mm(t, wh2_ref) + bh2_ref[...]                      # [tb, 128]
    # cols 0:2 = decision logits, cols 2:5 = values, cols 5: = exactly 0.

    # ----- masked softmax over the two decision lanes only -----
    lane = jax.lax.broadcasted_iota(jnp.int32, out.shape, dimension=1)
    is_dec = lane < _N_DEC
    masked = jnp.where(is_dec, out, jnp.float32(-1e30))
    m = jnp.max(masked, axis=-1, keepdims=True)
    ex = jnp.exp(masked - m)                                  # 0 outside decision lanes
    inv = pl.reciprocal(jnp.sum(ex, axis=-1, keepdims=True), approx=False)
    out_ref[...] = jnp.where(is_dec, ex * inv, out)


def pack_params(params, input_size):
    """Fuse / cast raw nn.Linear-style params for the kernel (no padding)."""
    p = params

    # Fuse the two head layer-1 weights into one (hidden//2, 128) matmul.
    wh1 = jnp.concatenate([p["wd1"], p["wv1"]], axis=1)            # (half, 128)
    bh1 = jnp.concatenate([p["bd1"], p["bv1"]], axis=1)            # (1, 128)

    # Block-diagonal layer-2 weights, output padded to 128 lanes.
    wh2 = jnp.zeros((2 * _HEAD_HIDDEN, _OUT_SLAB), jnp.float32)
    wh2 = wh2.at[:_HEAD_HIDDEN, :_N_DEC].set(p["wd2"])
    wh2 = wh2.at[_HEAD_HIDDEN:, _N_DEC:_N_DEC + _N_VAL].set(p["wv2"])
    bh2 = jnp.zeros((1, _OUT_SLAB), jnp.float32)
    bh2 = bh2.at[:, :_N_DEC].set(p["bd2"])
    bh2 = bh2.at[:, _N_DEC:_N_DEC + _N_VAL].set(p["bv2"])

    bf = lambda a: a.astype(jnp.bfloat16)
    return dict(
        w1=bf(p["w1"]), b1=p["b1"], w2=bf(p["w2"]), b2=p["b2"],
        w3=bf(p["w3"]), b3=p["b3"],
        wh1=bf(wh1), bh1=bh1, wh2=bf(wh2), bh2=bh2,
        input_size=input_size,
    )


def lzss_decision_predictor(x, packed, *, num_batch_splits=1):
    """Run the fused forward pass.

    x: [B, input_size] float32 (passed straight through -- no wrapper pad/cast)
    packed: output of pack_params()
    num_batch_splits: 1 for single-TC chips (v5e/v6e); 2 on v7x so both
        TensorCores get a "parallel" grid step.
    returns: (decision_prob [B, 2], values [B, 3]) in float32
    """
    B, in_features = x.shape

    if num_batch_splits <= 1 or B <= 8:
        batch_tile = B                      # single grid step, tile == full dim
    else:
        batch_tile = _round_up(pl.cdiv(B, num_batch_splits), 8)
    grid = (pl.cdiv(B, batch_tile),)        # ragged last block handled by Pallas

    weight_names = ["w1", "b1", "w2", "b2", "w3", "b3",
                    "wh1", "bh1", "wh2", "bh2"]
    weights = [packed[n] for n in weight_names]

    in_specs = [pl.BlockSpec((batch_tile, in_features), lambda i: (i, 0))] + [
        pl.BlockSpec(w.shape, lambda i: (0, 0)) for w in weights
    ]
    out_specs = pl.BlockSpec((batch_tile, _OUT_SLAB), lambda i: (i, 0))
    out_shape = jax.ShapeDtypeStruct((B, _OUT_SLAB), jnp.float32)

    fn = pl.pallas_call(
        _fused_mlp_kernel,
        out_shape=out_shape,
        grid_spec=pltpu.PrefetchScalarGridSpec(
            num_scalar_prefetch=0,
            grid=grid,
            in_specs=in_specs,
            out_specs=out_specs,
        ),
        compiler_params=pltpu.CompilerParams(
            dimension_semantics=("parallel",),
        ),
    )
    slab = fn(x, *weights)

    decision_prob = slab[:, :_N_DEC]
    values = slab[:, _N_DEC:_N_DEC + _N_VAL]
    return decision_prob, values


def init_params(key, input_size, hidden_size):
    """Deterministic synthetic parameter init (matching nn.Linear shapes)."""
    half = hidden_size // 2

    def linear(key, fan_in, fan_out):
        kw, kb = jax.random.split(key)
        bound = 1.0 / jnp.sqrt(jnp.float32(fan_in))
        w = jax.random.uniform(kw, (fan_in, fan_out), jnp.float32, -bound, bound)
        b = jax.random.uniform(kb, (1, fan_out), jnp.float32, -bound, bound)
        return w, b

    keys = jax.random.split(key, 7)
    w1, b1 = linear(keys[0], input_size, hidden_size)
    w2, b2 = linear(keys[1], hidden_size, hidden_size)
    w3, b3 = linear(keys[2], hidden_size, half)
    wd1, bd1 = linear(keys[3], half, _HEAD_HIDDEN)
    wd2, bd2 = linear(keys[4], _HEAD_HIDDEN, _N_DEC)
    wv1, bv1 = linear(keys[5], half, _HEAD_HIDDEN)
    wv2, bv2 = linear(keys[6], _HEAD_HIDDEN, _N_VAL)
    return dict(w1=w1, b1=b1, w2=w2, b2=b2, w3=w3, b3=b3,
                wd1=wd1, bd1=bd1, wd2=wd2, bd2=bd2,
                wv1=wv1, bv1=bv1, wv2=wv2, bv2=bv2)


def reference_forward(x, p):
    """Pure-JAX reference of the PyTorch forward (eval mode), unfused, with
    the same bf16-weight / f32-accumulation numerics as the kernel."""

    def mm(a, w):
        return jnp.dot(a.astype(jnp.bfloat16), w.astype(jnp.bfloat16),
                       preferred_element_type=jnp.float32)

    h = jnp.maximum(mm(x, p["w1"]) + p["b1"], 0.0)
    h = jnp.maximum(mm(h, p["w2"]) + p["b2"], 0.0)
    e = jnp.maximum(mm(h, p["w3"]) + p["b3"], 0.0)
    d = jnp.maximum(mm(e, p["wd1"]) + p["bd1"], 0.0)
    dec = jax.nn.softmax(mm(d, p["wd2"]) + p["bd2"], axis=1)
    v = jnp.maximum(mm(e, p["wv1"]) + p["bv1"], 0.0)
    val = mm(v, p["wv2"]) + p["bv2"]
    return dec, val


if __name__ == "__main__":
    key = jax.random.PRNGKey(0)
    k_x, k_p = jax.random.split(key)

    batch = 512
    input_size = 32       # true feature width, unpadded
    hidden_size = 256     # small stand-in for the default 512

    x = jax.random.normal(k_x, (batch, input_size), jnp.float32)
    params = init_params(k_p, input_size, hidden_size)
    packed = pack_params(params, input_size)

    # Default: single grid step (ideal for single-TC v5e/v6e).
    # On v7x, call with num_batch_splits=2 to feed both TensorCores.
    dec, val = lzss_decision_predictor(x, packed, num_batch_splits=1)
    dec, val = jax.block_until_ready((dec, val))

    # correctness check against the unfused pure-JAX reference
    dec_ref, val_ref = reference_forward(x, params)
    assert dec.shape == (batch, _N_DEC) and val.shape == (batch, _N_VAL)
    assert jnp.allclose(dec, dec_ref, atol=1e-3, rtol=1e-3)
    assert jnp.allclose(val, val_ref, atol=1e-3, rtol=1e-3)
    assert jnp.allclose(jnp.sum(dec, axis=1), 1.0, atol=1e-5)

    print("KERNEL_OK")
</pallas_src>

<mosaic_0001>
module attributes {stable_mosaic.version = 11 : i64} {
  func.func @_fused_mlp_kernel(%arg0: i32, %arg1: memref<512x32xf32, #tpu.memory_space<vmem>>, %arg2: memref<32x256xbf16, #tpu.memory_space<vmem>>, %arg3: memref<1x256xf32, #tpu.memory_space<vmem>>, %arg4: memref<256x256xbf16, #tpu.memory_space<vmem>>, %arg5: memref<1x256xf32, #tpu.memory_space<vmem>>, %arg6: memref<256x128xbf16, #tpu.memory_space<vmem>>, %arg7: memref<1x128xf32, #tpu.memory_space<vmem>>, %arg8: memref<128x128xbf16, #tpu.memory_space<vmem>>, %arg9: memref<1x128xf32, #tpu.memory_space<vmem>>, %arg10: memref<128x128xbf16, #tpu.memory_space<vmem>>, %arg11: memref<1x128xf32, #tpu.memory_space<vmem>>, %arg12: memref<512x128xf32, #tpu.memory_space<vmem>>) attributes {dimension_semantics = [#tpu.dimension_semantics<parallel>], iteration_bounds = array<i64: 1>, scalar_prefetch = 0 : i64, scratch_operands = 0 : i64, tpu.core_type = #tpu.core_type<tc>, window_params = [{transform_indices = @transform_0, window_bounds = array<i64: 512, 32>}, {pipeline_mode = #tpu.pipeline_mode<synchronous>, transform_indices = @transform_1, window_bounds = array<i64: 32, 256>}, {pipeline_mode = #tpu.pipeline_mode<synchronous>, transform_indices = @transform_2, window_bounds = array<i64: 1, 256>}, {pipeline_mode = #tpu.pipeline_mode<synchronous>, transform_indices = @transform_3, window_bounds = array<i64: 256, 256>}, {pipeline_mode = #tpu.pipeline_mode<synchronous>, transform_indices = @transform_4, window_bounds = array<i64: 1, 256>}, {pipeline_mode = #tpu.pipeline_mode<synchronous>, transform_indices = @transform_5, window_bounds = array<i64: 256, 128>}, {pipeline_mode = #tpu.pipeline_mode<synchronous>, transform_indices = @transform_6, window_bounds = array<i64: 1, 128>}, {pipeline_mode = #tpu.pipeline_mode<synchronous>, transform_indices = @transform_7, window_bounds = array<i64: 128, 128>}, {pipeline_mode = #tpu.pipeline_mode<synchronous>, transform_indices = @transform_8, window_bounds = array<i64: 1, 128>}, {pipeline_mode = #tpu.pipeline_mode<synchronous>, transform_indices = @transform_9, window_bounds = array<i64: 128, 128>}, {pipeline_mode = #tpu.pipeline_mode<synchronous>, transform_indices = @transform_10, window_bounds = array<i64: 1, 128>}, {transform_indices = @transform_11, window_bounds = array<i64: 512, 128>}]} {
    %c0 = arith.constant 0 : index
    %c0_0 = arith.constant 0 : index
    %0 = vector.load %arg1[%c0, %c0_0] : memref<512x32xf32, #tpu.memory_space<vmem>>, vector<512x32xf32>
    %1 = arith.truncf %0 : vector<512x32xf32> to vector<512x32xbf16>
    %c0_1 = arith.constant 0 : index
    %c0_2 = arith.constant 0 : index
    %2 = vector.load %arg2[%c0_1, %c0_2] : memref<32x256xbf16, #tpu.memory_space<vmem>>, vector<32x256xbf16>
    %cst = arith.constant dense<0.000000e+00> : vector<512x256xf32>
    %3 = tpu.matmul %1, %2, %cst {dimension_numbers = #tpu.dot_dimension_numbers<[1], [0], [0], [1], [0, 0, 1, 1], [], []>} : vector<512x32xbf16>, vector<32x256xbf16>, vector<512x256xf32> -> vector<512x256xf32>
    %c0_3 = arith.constant 0 : index
    %c0_4 = arith.constant 0 : index
    %4 = vector.load %arg3[%c0_3, %c0_4] : memref<1x256xf32, #tpu.memory_space<vmem>>, vector<1x256xf32>
    %5 = vector.broadcast %4 : vector<1x256xf32> to vector<512x256xf32>
    %6 = arith.addf %3, %5 : vector<512x256xf32>
    %cst_5 = arith.constant 0.000000e+00 : f32
    %7 = vector.broadcast %cst_5 : f32 to vector<512x256xf32>
    %8 = arith.maximumf %6, %7 : vector<512x256xf32>
    %9 = arith.truncf %8 : vector<512x256xf32> to vector<512x256xbf16>
    %c0_6 = arith.constant 0 : index
    %c0_7 = arith.constant 0 : index
    %10 = vector.load %arg4[%c0_6, %c0_7] : memref<256x256xbf16, #tpu.memory_space<vmem>>, vector<256x256xbf16>
    %cst_8 = arith.constant dense<0.000000e+00> : vector<512x256xf32>
    %11 = tpu.matmul %9, %10, %cst_8 {dimension_numbers = #tpu.dot_dimension_numbers<[1], [0], [0], [1], [0, 0, 1, 1], [], []>} : vector<512x256xbf16>, vector<256x256xbf16>, vector<512x256xf32> -> vector<512x256xf32>
    %c0_9 = arith.constant 0 : index
    %c0_10 = arith.constant 0 : index
    %12 = vector.load %arg5[%c0_9, %c0_10] : memref<1x256xf32, #tpu.memory_space<vmem>>, vector<1x256xf32>
    %13 = vector.broadcast %12 : vector<1x256xf32> to vector<512x256xf32>
    %14 = arith.addf %11, %13 : vector<512x256xf32>
    %cst_11 = arith.constant 0.000000e+00 : f32
    %15 = vector.broadcast %cst_11 : f32 to vector<512x256xf32>
    %16 = arith.maximumf %14, %15 : vector<512x256xf32>
    %17 = arith.truncf %16 : vector<512x256xf32> to vector<512x256xbf16>
    %c0_12 = arith.constant 0 : index
    %c0_13 = arith.constant 0 : index
    %18 = vector.load %arg6[%c0_12, %c0_13] : memref<256x128xbf16, #tpu.memory_space<vmem>>, vector<256x128xbf16>
    %cst_14 = arith.constant dense<0.000000e+00> : vector<512x128xf32>
    %19 = tpu.matmul %17, %18, %cst_14 {dimension_numbers = #tpu.dot_dimension_numbers<[1], [0], [0], [1], [0, 0, 1, 1], [], []>} : vector<512x256xbf16>, vector<256x128xbf16>, vector<512x128xf32> -> vector<512x128xf32>
    %c0_15 = arith.constant 0 : index
    %c0_16 = arith.constant 0 : index
    %20 = vector.load %arg7[%c0_15, %c0_16] : memref<1x128xf32, #tpu.memory_space<vmem>>, vector<1x128xf32>
    %21 = vector.broadcast %20 : vector<1x128xf32> to vector<512x128xf32>
    %22 = arith.addf %19, %21 : vector<512x128xf32>
    %cst_17 = arith.constant 0.000000e+00 : f32
    %23 = vector.broadcast %cst_17 : f32 to vector<512x128xf32>
    %24 = arith.maximumf %22, %23 : vector<512x128xf32>
    %25 = arith.truncf %24 : vector<512x128xf32> to vector<512x128xbf16>
    %c0_18 = arith.constant 0 : index
    %c0_19 = arith.constant 0 : index
    %26 = vector.load %arg8[%c0_18, %c0_19] : memref<128x128xbf16, #tpu.memory_space<vmem>>, vector<128x128xbf16>
    %cst_20 = arith.constant dense<0.000000e+00> : vector<512x128xf32>
    %27 = tpu.matmul %25, %26, %cst_20 {dimension_numbers = #tpu.dot_dimension_numbers<[1], [0], [0], [1], [0, 0, 1, 1], [], []>} : vector<512x128xbf16>, vector<128x128xbf16>, vector<512x128xf32> -> vector<512x128xf32>
    %c0_21 = arith.constant 0 : index
    %c0_22 = arith.constant 0 : index
    %28 = vector.load %arg9[%c0_21, %c0_22] : memref<1x128xf32, #tpu.memory_space<vmem>>, vector<1x128xf32>
    %29 = vector.broadcast %28 : vector<1x128xf32> to vector<512x128xf32>
    %30 = arith.addf %27, %29 : vector<512x128xf32>
    %cst_23 = arith.constant 0.000000e+00 : f32
    %31 = vector.broadcast %cst_23 : f32 to vector<512x128xf32>
    %32 = arith.maximumf %30, %31 : vector<512x128xf32>
    %33 = arith.truncf %32 : vector<512x128xf32> to vector<512x128xbf16>
    %c0_24 = arith.constant 0 : index
    %c0_25 = arith.constant 0 : index
    %34 = vector.load %arg10[%c0_24, %c0_25] : memref<128x128xbf16, #tpu.memory_space<vmem>>, vector<128x128xbf16>
    %cst_26 = arith.constant dense<0.000000e+00> : vector<512x128xf32>
    %35 = tpu.matmul %33, %34, %cst_26 {dimension_numbers = #tpu.dot_dimension_numbers<[1], [0], [0], [1], [0, 0, 1, 1], [], []>} : vector<512x128xbf16>, vector<128x128xbf16>, vector<512x128xf32> -> vector<512x128xf32>
    %c0_27 = arith.constant 0 : index
    %c0_28 = arith.constant 0 : index
    %36 = vector.load %arg11[%c0_27, %c0_28] : memref<1x128xf32, #tpu.memory_space<vmem>>, vector<1x128xf32>
    %37 = vector.broadcast %36 : vector<1x128xf32> to vector<512x128xf32>
    %38 = arith.addf %35, %37 : vector<512x128xf32>
    %39 = tpu.iota {dimensions = array<i32: 1>} : vector<512x128xi32>
    %c2_i32 = arith.constant 2 : i32
    %40 = vector.broadcast %c2_i32 : i32 to vector<512x128xi32>
    %41 = arith.cmpi slt, %39, %40 : vector<512x128xi32>
    %cst_29 = arith.constant -1.000000e+30 : f32
    %42 = vector.broadcast %cst_29 : f32 to vector<512x128xf32>
    %43 = arith.select %41, %38, %42 : vector<512x128xi1>, vector<512x128xf32>
    %cst_30 = arith.constant dense<0xFF800000> : vector<512xf32>
    %44 = vector.multi_reduction <maximumf>, %43, %cst_30 [1] : vector<512x128xf32> to vector<512xf32>
    %45 = vector.shape_cast %44 : vector<512xf32> to vector<512x1xf32>
    %46 = vector.broadcast %45 : vector<512x1xf32> to vector<512x128xf32>
    %47 = arith.subf %43, %46 : vector<512x128xf32>
    %48 = math.exp %47 : vector<512x128xf32>
    %cst_31 = arith.constant dense<0.000000e+00> : vector<512xf32>
    %49 = vector.multi_reduction <add>, %48, %cst_31 [1] : vector<512x128xf32> to vector<512xf32>
    %50 = vector.shape_cast %49 : vector<512xf32> to vector<512x1xf32>
    %51 = tpu.reciprocal %50 : vector<512x1xf32> -> vector<512x1xf32>
    %52 = vector.broadcast %51 : vector<512x1xf32> to vector<512x128xf32>
    %53 = arith.mulf %48, %52 : vector<512x128xf32>
    %54 = arith.select %41, %53, %38 : vector<512x128xi1>, vector<512x128xf32>
    %c0_32 = arith.constant 0 : index
    %c0_33 = arith.constant 0 : index
    %55 = vector.load %arg12[%c0_32, %c0_33] : memref<512x128xf32, #tpu.memory_space<vmem>>, vector<512x128xf32>
    tpu.vector_store %arg12[%c0_32, %c0_33], %54 {strides = array<i32>} : memref<512x128xf32, #tpu.memory_space<vmem>>, vector<512x128xf32>,
    return
  }
  func.func @transform_0(%arg0: i32) -> (i32, i32) {
    %c0_i32 = arith.constant 0 : i32
    %c0_i32_0 = arith.constant 0 : i32
    return %arg0, %c0_i32 : i32, i32
  }
  func.func @transform_1(%arg0: i32) -> (i32, i32) {
    %c0_i32 = arith.constant 0 : i32
    %c0_i32_0 = arith.constant 0 : i32
    %c0_i32_1 = arith.constant 0 : i32
    return %c0_i32, %c0_i32_0 : i32, i32
  }
  func.func @transform_2(%arg0: i32) -> (i32, i32) {
    %c0_i32 = arith.constant 0 : i32
    %c0_i32_0 = arith.constant 0 : i32
    %c0_i32_1 = arith.constant 0 : i32
    return %c0_i32, %c0_i32_0 : i32, i32
  }
  func.func @transform_3(%arg0: i32) -> (i32, i32) {
    %c0_i32 = arith.constant 0 : i32
    %c0_i32_0 = arith.constant 0 : i32
    %c0_i32_1 = arith.constant 0 : i32
    return %c0_i32, %c0_i32_0 : i32, i32
  }
  func.func @transform_4(%arg0: i32) -> (i32, i32) {
    %c0_i32 = arith.constant 0 : i32
    %c0_i32_0 = arith.constant 0 : i32
    %c0_i32_1 = arith.constant 0 : i32
    return %c0_i32, %c0_i32_0 : i32, i32
  }
  func.func @transform_5(%arg0: i32) -> (i32, i32) {
    %c0_i32 = arith.constant 0 : i32
    %c0_i32_0 = arith.constant 0 : i32
    %c0_i32_1 = arith.constant 0 : i32
    return %c0_i32, %c0_i32_0 : i32, i32
  }
  func.func @transform_6(%arg0: i32) -> (i32, i32) {
    %c0_i32 = arith.constant 0 : i32
    %c0_i32_0 = arith.constant 0 : i32
    %c0_i32_1 = arith.constant 0 : i32
    return %c0_i32, %c0_i32_0 : i32, i32
  }
  func.func @transform_7(%arg0: i32) -> (i32, i32) {
    %c0_i32 = arith.constant 0 : i32
    %c0_i32_0 = arith.constant 0 : i32
    %c0_i32_1 = arith.constant 0 : i32
    return %c0_i32, %c0_i32_0 : i32, i32
  }
  func.func @transform_8(%arg0: i32) -> (i32, i32) {
    %c0_i32 = arith.constant 0 : i32
    %c0_i32_0 = arith.constant 0 : i32
    %c0_i32_1 = arith.constant 0 : i32
    return %c0_i32, %c0_i32_0 : i32, i32
  }
  func.func @transform_9(%arg0: i32) -> (i32, i32) {
    %c0_i32 = arith.constant 0 : i32
    %c0_i32_0 = arith.constant 0 : i32
    %c0_i32_1 = arith.constant 0 : i32
    return %c0_i32, %c0_i32_0 : i32, i32
  }
  func.func @transform_10(%arg0: i32) -> (i32, i32) {
    %c0_i32 = arith.constant 0 : i32
    %c0_i32_0 = arith.constant 0 : i32
    %c0_i32_1 = arith.constant 0 : i32
    return %c0_i32, %c0_i32_0 : i32, i32
  }
  func.func @transform_11(%arg0: i32) -> (i32, i32) {
    %c0_i32 = arith.constant 0 : i32
    %c0_i32_0 = arith.constant 0 : i32
    return %arg0, %c0_i32 : i32, i32
  }
}

</mosaic_0001>

<llo_original>
// kernel: tpu_custom_call.1
$region0: #{tpu_custom_call.1}
  #allocation0 [shape = 'u32[]', space=smem, size = 0x4, offset = 0x4, fixed_abs, tag = 'smem constant byte address 0x4 - core index']
  #allocation1 [shape = 'u32[144,128]{1,0:T(1,128)}', space=vmem, size = 0x12000, scoped, tag = 'internal scratch']
  %s0 = inlined_call_operand.vmem [shape: f32[512,32], index: 0, kind: input, shape index: {}]
  %s1 = inlined_call_operand.vmem [shape: bf16[32,256], index: 1, kind: input, shape index: {}]
  %s2 = inlined_call_operand.vmem [shape: f32[1,256], index: 2, kind: input, shape index: {}]
  %s3 = inlined_call_operand.vmem [shape: bf16[256,256], index: 3, kind: input, shape index: {}]
  %s4 = inlined_call_operand.vmem [shape: f32[1,256], index: 4, kind: input, shape index: {}]
  %s5 = inlined_call_operand.vmem [shape: bf16[256,128], index: 5, kind: input, shape index: {}]
  %s6 = inlined_call_operand.vmem [shape: f32[1,128], index: 6, kind: input, shape index: {}]
  %s7 = inlined_call_operand.vmem [shape: bf16[128,128], index: 7, kind: input, shape index: {}]
  %s8 = inlined_call_operand.vmem [shape: f32[1,128], index: 8, kind: input, shape index: {}]
  %s9 = inlined_call_operand.vmem [shape: bf16[128,128], index: 9, kind: input, shape index: {}]
  %s10 = inlined_call_operand.vmem [shape: f32[1,128], index: 10, kind: input, shape index: {}]
  %s11 = inlined_call_operand.hbm [shape: f32[512,128], index: 11, kind: output, shape index: {}]
  %s12 = sld [smem:[#allocation0]]
  $region54: #{tpu_custom_call.1} parent=0
    _
  %s14 = ssub.s32 1, %s12
  %s15 = scalar_select 0, %s14, %s12
  $region1: #{tpu_custom_call.1} parent=0
    #allocation2 [shape = 'u8[262144]{0}', space=vmem, size = 0x40000, scoped, tag = 'output window, operand 0, single buffered']
    #allocation3 [shape = 's32[1]{0}', space=sflag, size = 0x4, scoped, tag = 'scoped memory for tpu_custom_call.1']
    %16 = vsyncpa [#allocation3], 0
    // Predicated region
    $region2: #{tpu_custom_call.1} parent=1 // pred_check
      _
    $region3: #{tpu_custom_call.1} parent=1 // pred_check_branch
      %18 = sbr.rel (0) target = $region5
    $region4: #{tpu_custom_call.1} parent=1 // pred_region
      _
    $region5: #{tpu_custom_call.1} parent=1 // pred_fallthru
      _
    // Predicated region
    $region6: #{tpu_custom_call.1} parent=1 // pred_check
      _
    $region7: #{tpu_custom_call.1} parent=1 // pred_check_branch
      %20 = sbr.rel (0) target = $region9
    $region8: #{tpu_custom_call.1} parent=1 // pred_region
      _
    $region9: #{tpu_custom_call.1} parent=1 // pred_fallthru
      _
    // Predicated region
    $region10: #{tpu_custom_call.1} parent=1 // pred_check
      _
    $region11: #{tpu_custom_call.1} parent=1 // pred_check_branch
      %22 = sbr.rel (0) target = $region13
    $region12: #{tpu_custom_call.1} parent=1 // pred_region
      _
    $region13: #{tpu_custom_call.1} parent=1 // pred_fallthru
      _
    // Predicated region
    $region14: #{tpu_custom_call.1} parent=1 // pred_check
      _
    $region15: #{tpu_custom_call.1} parent=1 // pred_check_branch
      %24 = sbr.rel (0) target = $region17
    $region16: #{tpu_custom_call.1} parent=1 // pred_region
      _
    $region17: #{tpu_custom_call.1} parent=1 // pred_fallthru
      _
    // Predicated region
    $region18: #{tpu_custom_call.1} parent=1 // pred_check
      _
    $region19: #{tpu_custom_call.1} parent=1 // pred_check_branch
      %26 = sbr.rel (0) target = $region21
    $region20: #{tpu_custom_call.1} parent=1 // pred_region
      _
    $region21: #{tpu_custom_call.1} parent=1 // pred_fallthru
      _
    // Predicated region
    $region22: #{tpu_custom_call.1} parent=1 // pred_check
      _
    $region23: #{tpu_custom_call.1} parent=1 // pred_check_branch
      %28 = sbr.rel (0) target = $region25
    $region24: #{tpu_custom_call.1} parent=1 // pred_region
      _
    $region25: #{tpu_custom_call.1} parent=1 // pred_fallthru
      _
    // Predicated region
    $region26: #{tpu_custom_call.1} parent=1 // pred_check
      _
    $region27: #{tpu_custom_call.1} parent=1 // pred_check_branch
      %30 = sbr.rel (0) target = $region29
    $region28: #{tpu_custom_call.1} parent=1 // pred_region
      _
    $region29: #{tpu_custom_call.1} parent=1 // pred_fallthru
      _
    // Predicated region
    $region30: #{tpu_custom_call.1} parent=1 // pred_check
      _
    $region31: #{tpu_custom_call.1} parent=1 // pred_check_branch
      %32 = sbr.rel (0) target = $region33
    $region32: #{tpu_custom_call.1} parent=1 // pred_region
      _
    $region33: #{tpu_custom_call.1} parent=1 // pred_fallthru
      _
    // Predicated region
    $region34: #{tpu_custom_call.1} parent=1 // pred_check
      _
    $region35: #{tpu_custom_call.1} parent=1 // pred_check_branch
      %34 = sbr.rel (0) target = $region37
    $region36: #{tpu_custom_call.1} parent=1 // pred_region
      _
    $region37: #{tpu_custom_call.1} parent=1 // pred_fallthru
      _
    // Predicated region
    $region38: #{tpu_custom_call.1} parent=1 // pred_check
      _
    $region39: #{tpu_custom_call.1} parent=1 // pred_check_branch
      %36 = sbr.rel (0) target = $region41
    $region40: #{tpu_custom_call.1} parent=1 // pred_region
      _
    $region41: #{tpu_custom_call.1} parent=1 // pred_fallthru
      _
    // Predicated region
    $region42: #{tpu_custom_call.1} parent=1 // pred_check
      _
    $region43: #{tpu_custom_call.1} parent=1 // pred_check_branch
      %38 = sbr.rel (0) target = $region45
    $region44: #{tpu_custom_call.1} parent=1 // pred_region
      _
    $region45: #{tpu_custom_call.1} parent=1 // pred_fallthru
      _
    %v40 = vld [vmem:[%s0] sm:$0xff]
    %v41 = vld [vmem:[%s0 + $0x8] sm:$0xff]
    %v42 = vld [vmem:[%s0 + $0x10] sm:$0xff]
    %v43 = vld [vmem:[%s0 + $0x18] sm:$0xff]
    %v44 = vld [vmem:[%s0 + $0x20] sm:$0xff]
    %v45 = vld [vmem:[%s0 + $0x28] sm:$0xff]
    %v46 = vld [vmem:[%s0 + $0x30] sm:$0xff]
    %v47 = vld [vmem:[%s0 + $0x38] sm:$0xff]
    %v48 = vld [vmem:[%s0 + $0x40] sm:$0xff]
    %v49 = vld [vmem:[%s0 + $0x48] sm:$0xff]
    %v50 = vld [vmem:[%s0 + $0x50] sm:$0xff]
    %v51 = vld [vmem:[%s0 + $0x58] sm:$0xff]
    %v52 = vld [vmem:[%s0 + $0x60] sm:$0xff]
    %v53 = vld [vmem:[%s0 + $0x68] sm:$0xff]
    %v54 = vld [vmem:[%s0 + $0x70] sm:$0xff]
    %v55 = vld [vmem:[%s0 + $0x78] sm:$0xff]
    %v56 = vld [vmem:[%s0 + $0x80] sm:$0xff]
    %v57 = vld [vmem:[%s0 + $0x88] sm:$0xff]
    %v58 = vld [vmem:[%s0 + $0x90] sm:$0xff]
    %v59 = vld [vmem:[%s0 + $0x98] sm:$0xff]
    %v60 = vld [vmem:[%s0 + $0xa0] sm:$0xff]
    %v61 = vld [vmem:[%s0 + $0xa8] sm:$0xff]
    %v62 = vld [vmem:[%s0 + $0xb0] sm:$0xff]
    %v63 = vld [vmem:[%s0 + $0xb8] sm:$0xff]
    %v64 = vld [vmem:[%s0 + $0xc0] sm:$0xff]
    %v65 = vld [vmem:[%s0 + $0xc8] sm:$0xff]
    %v66 = vld [vmem:[%s0 + $0xd0] sm:$0xff]
    %v67 = vld [vmem:[%s0 + $0xd8] sm:$0xff]
    %v68 = vld [vmem:[%s0 + $0xe0] sm:$0xff]
    %v69 = vld [vmem:[%s0 + $0xe8] sm:$0xff]
    %v70 = vld [vmem:[%s0 + $0xf0] sm:$0xff]
    %v71 = vld [vmem:[%s0 + $0xf8] sm:$0xff]
    %v72 = vld [vmem:[%s0 + $0x100] sm:$0xff]
    %v73 = vld [vmem:[%s0 + $0x108] sm:$0xff]
    %v74 = vld [vmem:[%s0 + $0x110] sm:$0xff]
    %v75 = vld [vmem:[%s0 + $0x118] sm:$0xff]
    %v76 = vld [vmem:[%s0 + $0x120] sm:$0xff]
    %v77 = vld [vmem:[%s0 + $0x128] sm:$0xff]
    %v78 = vld [vmem:[%s0 + $0x130] sm:$0xff]
    %v79 = vld [vmem:[%s0 + $0x138] sm:$0xff]
    %v80 = vld [vmem:[%s0 + $0x140] sm:$0xff]
    %v81 = vld [vmem:[%s0 + $0x148] sm:$0xff]
    %v82 = vld [vmem:[%s0 + $0x150] sm:$0xff]
    %v83 = vld [vmem:[%s0 + $0x158] sm:$0xff]
    %v84 = vld [vmem:[%s0 + $0x160] sm:$0xff]
    %v85 = vld [vmem:[%s0 + $0x168] sm:$0xff]
    %v86 = vld [vmem:[%s0 + $0x170] sm:$0xff]
    %v87 = vld [vmem:[%s0 + $0x178] sm:$0xff]
    %v88 = vld [vmem:[%s0 + $0x180] sm:$0xff]
    %v89 = vld [vmem:[%s0 + $0x188] sm:$0xff]
    %v90 = vld [vmem:[%s0 + $0x190] sm:$0xff]
    %v91 = vld [vmem:[%s0 + $0x198] sm:$0xff]
    %v92 = vld [vmem:[%s0 + $0x1a0] sm:$0xff]
    %v93 = vld [vmem:[%s0 + $0x1a8] sm:$0xff]
    %v94 = vld [vmem:[%s0 + $0x1b0] sm:$0xff]
    %v95 = vld [vmem:[%s0 + $0x1b8] sm:$0xff]
    %v96 = vld [vmem:[%s0 + $0x1c0] sm:$0xff]
    %v97 = vld [vmem:[%s0 + $0x1c8] sm:$0xff]
    %v98 = vld [vmem:[%s0 + $0x1d0] sm:$0xff]
    %v99 = vld [vmem:[%s0 + $0x1d8] sm:$0xff]
    %v100 = vld [vmem:[%s0 + $0x1e0] sm:$0xff]
    %v101 = vld [vmem:[%s0 + $0x1e8] sm:$0xff]
    %v102 = vld [vmem:[%s0 + $0x1f0] sm:$0xff]
    %v103 = vld [vmem:[%s0 + $0x1f8] sm:$0xff]
    %v104 = vpack.c.bf16 %v41, %v40
    %v105 = vpack.c.bf16 %v43, %v42
    %v106 = vpack.c.bf16 %v45, %v44
    %v107 = vpack.c.bf16 %v47, %v46
    %v108 = vpack.c.bf16 %v49, %v48
    %v109 = vpack.c.bf16 %v51, %v50
    %v110 = vpack.c.bf16 %v53, %v52
    %v111 = vpack.c.bf16 %v55, %v54
    %v112 = vpack.c.bf16 %v57, %v56
    %v113 = vpack.c.bf16 %v59, %v58
    %v114 = vpack.c.bf16 %v61, %v60
    %v115 = vpack.c.bf16 %v63, %v62
    %v116 = vpack.c.bf16 %v65, %v64
    %v117 = vpack.c.bf16 %v67, %v66
    %v118 = vpack.c.bf16 %v69, %v68
    %v119 = vpack.c.bf16 %v71, %v70
    %v120 = vpack.c.bf16 %v73, %v72
    %v121 = vpack.c.bf16 %v75, %v74
    %v122 = vpack.c.bf16 %v77, %v76
    %v123 = vpack.c.bf16 %v79, %v78
    %v124 = vpack.c.bf16 %v81, %v80
    %v125 = vpack.c.bf16 %v83, %v82
    %v126 = vpack.c.bf16 %v85, %v84
    %v127 = vpack.c.bf16 %v87, %v86
    %v128 = vpack.c.bf16 %v89, %v88
    %v129 = vpack.c.bf16 %v91, %v90
    %v130 = vpack.c.bf16 %v93, %v92
    %v131 = vpack.c.bf16 %v95, %v94
    %v132 = vpack.c.bf16 %v97, %v96
    %v133 = vpack.c.bf16 %v99, %v98
    %v134 = vpack.c.bf16 %v101, %v100
    %v135 = vpack.c.bf16 %v103, %v102
    %v136 = vld [vmem:[%s1] sm:$0xff]
    %v137 = vld [vmem:[%s1 + $0x8] sm:$0xff]
    %v138 = vld [vmem:[%s1 + $0x10] sm:$0xff]
    %v139 = vld [vmem:[%s1 + $0x18] sm:$0xff]
    %v140 = vld [vmem:[%s2] sm:$0x3]
    %v142 = vlaneseq
    %v143 = vshrl.u32 %v142, 7
    %v144 = vsub.s32 0, %v143
    %v145 = vrot.slane %v140, %v144
    %v146 = vlaneseq
    %v147 = vshrl.u32 %v146, 7
    %v148 = vsub.s32 1, %v147
    %v149 = vrot.slane %v140, %v148
    %v156 = vunpack.c.l.b16 %v136
    %v157 = vunpack.c.h.b16 %v136
    %v158 = vunpack.c.l.b16 %v137
    %v159 = vunpack.c.h.b16 %v137
    %v160 = vunpack.c.l.b16 %v138
    %v161 = vunpack.c.h.b16 %v138
    %v162 = vunpack.c.l.b16 %v139
    %v163 = vunpack.c.h.b16 %v139
    %v164 = vpack.c.b16 %v158, %v156
    %v165 = vpack.c.b16 %v159, %v157
    %v166 = vpack.c.b16 %v162, %v160
    %v167 = vpack.c.b16 %v163, %v161
    %vm172 = vcmask 261120
    %v174 = vsel %vm172, %v104, 0
    %v177 = vsel %vm172, %v105, 0
    %v180 = vsel %vm172, %v106, 0
    %v183 = vsel %vm172, %v107, 0
    %v186 = vsel %vm172, %v108, 0
    %v189 = vsel %vm172, %v109, 0
    %v192 = vsel %vm172, %v110, 0
    %v195 = vsel %vm172, %v111, 0
    %v198 = vsel %vm172, %v112, 0
    %v201 = vsel %vm172, %v113, 0
    %v204 = vsel %vm172, %v114, 0
    %v207 = vsel %vm172, %v115, 0
    %v210 = vsel %vm172, %v116, 0
    %v213 = vsel %vm172, %v117, 0
    %v216 = vsel %vm172, %v118, 0
    %v219 = vsel %vm172, %v119, 0
    %v222 = vsel %vm172, %v120, 0
    %v225 = vsel %vm172, %v121, 0
    %v228 = vsel %vm172, %v122, 0
    %v231 = vsel %vm172, %v123, 0
    %v234 = vsel %vm172, %v124, 0
    %v237 = vsel %vm172, %v125, 0
    %v240 = vsel %vm172, %v126, 0
    %v243 = vsel %vm172, %v127, 0
    %v246 = vsel %vm172, %v128, 0
    %v249 = vsel %vm172, %v129, 0
    %v252 = vsel %vm172, %v130, 0
    %v255 = vsel %vm172, %v131, 0
    %v258 = vsel %vm172, %v132, 0
    %v261 = vsel %vm172, %v133, 0
    %v264 = vsel %vm172, %v134, 0
    %v267 = vsel %vm172, %v135, 0
    %269 = vmatprep.subr.bf16.mxu0 %v165
    %270 = vmatpush1.bf16.msra.mxu0 %v164
    %271 = vmatprep.subr.bf16.mxu0 %v167
    %272 = vmatpush1.bf16.msra.mxu0 %v166
    %273 = vmatprep.subr.bf16.mxu0 0
    %274 = vmatpush1.bf16.msra.mxu0 0
    %275 = vmatprep.subr.bf16.mxu0 0
    %276 = vmatpush1.bf16.msra.mxu0 0
    %277 = vmatprep.subr.bf16.mxu0 0
    %278 = vmatpush1.bf16.msra.mxu0 0
    %279 = vmatprep.subr.bf16.mxu0 0
    %280 = vmatpush1.bf16.msra.mxu0 0
    %281 = vmatprep.subr.bf16.mxu0 0
    %282 = vmatpush1.bf16.msra.mxu0 0
    %283 = vmatprep.subr.bf16.mxu0 0
    %284 = vmatpush1.bf16.msra.mxu0 0
    %285 = vmatprep.subr.bf16.mxu0 0
    %286 = vmatpush1.bf16.msra.mxu0 0
    %287 = vmatprep.subr.bf16.mxu0 0
    %288 = vmatpush1.bf16.msra.mxu0 0
    %289 = vmatprep.subr.bf16.mxu0 0
    %290 = vmatpush1.bf16.msra.mxu0 0
    %291 = vmatprep.subr.bf16.mxu0 0
    %292 = vmatpush1.bf16.msra.mxu0 0
    %293 = vmatprep.subr.bf16.mxu0 0
    %294 = vmatpush1.bf16.msra.mxu0 0
    %295 = vmatprep.subr.bf16.mxu0 0
    %296 = vmatpush1.bf16.msra.mxu0 0
    %297 = vmatprep.subr.bf16.mxu0 0
    %298 = vmatpush1.bf16.msra.mxu0 0
    %299 = vmatprep.subr.bf16.mxu0 0
    %300 = vmatpush1.bf16.msra.mxu0 0
    %301 = vmatprep.mubr.bf16.mxu0 0
    %302 = vmatmul.mubr.bf16.gmra.mrb[0].mxu0 %v174
    %v303 = vpop.f32.mrb[0].mxu0
    %v304 = vadd.f32 %v145, %v303
    %v305 = vpop.f32.mrb[0].mxu0
    %v306 = vadd.f32 %v149, %v305
    %v307 = vpop.f32.mrb[0].mxu0
    %v308 = vadd.f32 %v145, %v307
    %v309 = vpop.f32.mrb[0].mxu0
    %v310 = vadd.f32 %v149, %v309
    %311 = vmatprep.mubr.bf16.mxu0 0
    %312 = vmatmul.mubr.bf16.gmra.mrb[0].mxu0 %v177
    %v313 = vpop.f32.mrb[0].mxu0
    %v314 = vadd.f32 %v145, %v313
    %v315 = vpop.f32.mrb[0].mxu0
    %v316 = vadd.f32 %v149, %v315
    %v317 = vpop.f32.mrb[0].mxu0
    %v318 = vadd.f32 %v145, %v317
    %v319 = vpop.f32.mrb[0].mxu0
    %v320 = vadd.f32 %v149, %v319
    %321 = vmatprep.mubr.bf16.mxu0 0
    %322 = vmatmul.mubr.bf16.gmra.mrb[0].mxu0 %v180
    %v323 = vpop.f32.mrb[0].mxu0
    %v324 = vadd.f32 %v145, %v323
    %v325 = vpop.f32.mrb[0].mxu0
    %v326 = vadd.f32 %v149, %v325
    %v327 = vpop.f32.mrb[0].mxu0
    %v328 = vadd.f32 %v145, %v327
    %v329 = vpop.f32.mrb[0].mxu0
    %v330 = vadd.f32 %v149, %v329
    %331 = vmatprep.mubr.bf16.mxu0 0
    %332 = vmatmul.mubr.bf16.gmra.mrb[0].mxu0 %v183
    %v333 = vpop.f32.mrb[0].mxu0
    %v334 = vadd.f32 %v145, %v333
    %v335 = vpop.f32.mrb[0].mxu0
    %v336 = vadd.f32 %v149, %v335
    %v337 = vpop.f32.mrb[0].mxu0
    %v338 = vadd.f32 %v145, %v337
    %v339 = vpop.f32.mrb[0].mxu0
    %v340 = vadd.f32 %v149, %v339
    %341 = vmatprep.mubr.bf16.mxu0 0
    %342 = vmatmul.mubr.bf16.gmra.mrb[0].mxu0 %v186
    %v343 = vpop.f32.mrb[0].mxu0
    %v344 = vadd.f32 %v145, %v343
    %v345 = vpop.f32.mrb[0].mxu0
    %v346 = vadd.f32 %v149, %v345
    %v347 = vpop.f32.mrb[0].mxu0
    %v348 = vadd.f32 %v145, %v347
    %v349 = vpop.f32.mrb[0].mxu0
    %v350 = vadd.f32 %v149, %v349
    %351 = vmatprep.mubr.bf16.mxu0 0
    %352 = vmatmul.mubr.bf16.gmra.mrb[0].mxu0 %v189
    %v353 = vpop.f32.mrb[0].mxu0
    %v354 = vadd.f32 %v145, %v353
    %v355 = vpop.f32.mrb[0].mxu0
    %v356 = vadd.f32 %v149, %v355
    %v357 = vpop.f32.mrb[0].mxu0
    %v358 = vadd.f32 %v145, %v357
    %v359 = vpop.f32.mrb[0].mxu0
    %v360 = vadd.f32 %v149, %v359
    %361 = vmatprep.mubr.bf16.mxu0 0
    %362 = vmatmul.mubr.bf16.gmra.mrb[0].mxu0 %v192
    %v363 = vpop.f32.mrb[0].mxu0
    %v364 = vadd.f32 %v145, %v363
    %v365 = vpop.f32.mrb[0].mxu0
    %v366 = vadd.f32 %v149, %v365
    %v367 = vpop.f32.mrb[0].mxu0
    %v368 = vadd.f32 %v145, %v367
    %v369 = vpop.f32.mrb[0].mxu0
    %v370 = vadd.f32 %v149, %v369
    %371 = vmatprep.mubr.bf16.mxu0 0
    %372 = vmatmul.mubr.bf16.gmra.mrb[0].mxu0 %v195
    %v373 = vpop.f32.mrb[0].mxu0
    %v374 = vadd.f32 %v145, %v373
    %v375 = vpop.f32.mrb[0].mxu0
    %v376 = vadd.f32 %v149, %v375
    %v377 = vpop.f32.mrb[0].mxu0
    %v378 = vadd.f32 %v145, %v377
    %v379 = vpop.f32.mrb[0].mxu0
    %v380 = vadd.f32 %v149, %v379
    %381 = vmatprep.mubr.bf16.mxu0 0
    %382 = vmatmul.mubr.bf16.gmra.mrb[0].mxu0 %v198
    %v383 = vpop.f32.mrb[0].mxu0
    %v384 = vadd.f32 %v145, %v383
    %v385 = vpop.f32.mrb[0].mxu0
    %v386 = vadd.f32 %v149, %v385
    %v387 = vpop.f32.mrb[0].mxu0
    %v388 = vadd.f32 %v145, %v387
    %v389 = vpop.f32.mrb[0].mxu0
    %v390 = vadd.f32 %v149, %v389
    %391 = vmatprep.mubr.bf16.mxu0 0
    %392 = vmatmul.mubr.bf16.gmra.mrb[0].mxu0 %v201
    %v393 = vpop.f32.mrb[0].mxu0
    %v394 = vadd.f32 %v145, %v393
    %v395 = vpop.f32.mrb[0].mxu0
    %v396 = vadd.f32 %v149, %v395
    %v397 = vpop.f32.mrb[0].mxu0
    %v398 = vadd.f32 %v145, %v397
    %v399 = vpop.f32.mrb[0].mxu0
    %v400 = vadd.f32 %v149, %v399
    %401 = vmatprep.mubr.bf16.mxu0 0
    %402 = vmatmul.mubr.bf16.gmra.mrb[0].mxu0 %v204
    %v403 = vpop.f32.mrb[0].mxu0
    %v404 = vadd.f32 %v145, %v403
    %v405 = vpop.f32.mrb[0].mxu0
    %v406 = vadd.f32 %v149, %v405
    %v407 = vpop.f32.mrb[0].mxu0
    %v408 = vadd.f32 %v145, %v407
    %v409 = vpop.f32.mrb[0].mxu0
    %v410 = vadd.f32 %v149, %v409
    %411 = vmatprep.mubr.bf16.mxu0 0
    %412 = vmatmul.mubr.bf16.gmra.mrb[0].mxu0 %v207
    %v413 = vpop.f32.mrb[0].mxu0
    %v414 = vadd.f32 %v145, %v413
    %v415 = vpop.f32.mrb[0].mxu0
    %v416 = vadd.f32 %v149, %v415
    %v417 = vpop.f32.mrb[0].mxu0
    %v418 = vadd.f32 %v145, %v417
    %v419 = vpop.f32.mrb[0].mxu0
    %v420 = vadd.f32 %v149, %v419
    %421 = vmatprep.mubr.bf16.mxu0 0
    %422 = vmatmul.mubr.bf16.gmra.mrb[0].mxu0 %v210
    %v423 = vpop.f32.mrb[0].mxu0
    %v424 = vadd.f32 %v145, %v423
    %v425 = vpop.f32.mrb[0].mxu0
    %v426 = vadd.f32 %v149, %v425
    %v427 = vpop.f32.mrb[0].mxu0
    %v428 = vadd.f32 %v145, %v427
    %v429 = vpop.f32.mrb[0].mxu0
    %v430 = vadd.f32 %v149, %v429
    %431 = vmatprep.mubr.bf16.mxu0 0
    %432 = vmatmul.mubr.bf16.gmra.mrb[0].mxu0 %v213
    %v433 = vpop.f32.mrb[0].mxu0
    %v434 = vadd.f32 %v145, %v433
    %v435 = vpop.f32.mrb[0].mxu0
    %v436 = vadd.f32 %v149, %v435
    %v437 = vpop.f32.mrb[0].mxu0
    %v438 = vadd.f32 %v145, %v437
    %v439 = vpop.f32.mrb[0].mxu0
    %v440 = vadd.f32 %v149, %v439
    %441 = vmatprep.mubr.bf16.mxu0 0
    %442 = vmatmul.mubr.bf16.gmra.mrb[0].mxu0 %v216
    %v443 = vpop.f32.mrb[0].mxu0
    %v444 = vadd.f32 %v145, %v443
    %v445 = vpop.f32.mrb[0].mxu0
    %v446 = vadd.f32 %v149, %v445
    %v447 = vpop.f32.mrb[0].mxu0
    %v448 = vadd.f32 %v145, %v447
    %v449 = vpop.f32.mrb[0].mxu0
    %v450 = vadd.f32 %v149, %v449
    %451 = vmatprep.mubr.bf16.mxu0 0
    %452 = vmatmul.mubr.bf16.gmra.mrb[0].mxu0 %v219
    %v453 = vpop.f32.mrb[0].mxu0
    %v454 = vadd.f32 %v145, %v453
    %v455 = vpop.f32.mrb[0].mxu0
    %v456 = vadd.f32 %v149, %v455
    %v457 = vpop.f32.mrb[0].mxu0
    %v458 = vadd.f32 %v145, %v457
    %v459 = vpop.f32.mrb[0].mxu0
    %v460 = vadd.f32 %v149, %v459
    %461 = vmatprep.mubr.bf16.mxu0 0
    %462 = vmatmul.mubr.bf16.gmra.mrb[0].mxu0 %v222
    %v463 = vpop.f32.mrb[0].mxu0
    %v464 = vadd.f32 %v145, %v463
    %v465 = vpop.f32.mrb[0].mxu0
    %v466 = vadd.f32 %v149, %v465
    %v467 = vpop.f32.mrb[0].mxu0
    %v468 = vadd.f32 %v145, %v467
    %v469 = vpop.f32.mrb[0].mxu0
    %v470 = vadd.f32 %v149, %v469
    %471 = vmatprep.mubr.bf16.mxu0 0
    %472 = vmatmul.mubr.bf16.gmra.mrb[0].mxu0 %v225
    %v473 = vpop.f32.mrb[0].mxu0
    %v474 = vadd.f32 %v145, %v473
    %v475 = vpop.f32.mrb[0].mxu0
    %v476 = vadd.f32 %v149, %v475
    %v477 = vpop.f32.mrb[0].mxu0
    %v478 = vadd.f32 %v145, %v477
    %v479 = vpop.f32.mrb[0].mxu0
    %v480 = vadd.f32 %v149, %v479
    %481 = vmatprep.mubr.bf16.mxu0 0
    %482 = vmatmul.mubr.bf16.gmra.mrb[0].mxu0 %v228
    %v483 = vpop.f32.mrb[0].mxu0
    %v484 = vadd.f32 %v145, %v483
    %v485 = vpop.f32.mrb[0].mxu0
    %v486 = vadd.f32 %v149, %v485
    %v487 = vpop.f32.mrb[0].mxu0
    %v488 = vadd.f32 %v145, %v487
    %v489 = vpop.f32.mrb[0].mxu0
    %v490 = vadd.f32 %v149, %v489
    %491 = vmatprep.mubr.bf16.mxu0 0
    %492 = vmatmul.mubr.bf16.gmra.mrb[0].mxu0 %v231
    %v493 = vpop.f32.mrb[0].mxu0
    %v494 = vadd.f32 %v145, %v493
    %v495 = vpop.f32.mrb[0].mxu0
    %v496 = vadd.f32 %v149, %v495
    %v497 = vpop.f32.mrb[0].mxu0
    %v498 = vadd.f32 %v145, %v497
    %v499 = vpop.f32.mrb[0].mxu0
    %v500 = vadd.f32 %v149, %v499
    %501 = vmatprep.mubr.bf16.mxu0 0
    %502 = vmatmul.mubr.bf16.gmra.mrb[0].mxu0 %v234
    %v503 = vpop.f32.mrb[0].mxu0
    %v504 = vadd.f32 %v145, %v503
    %v505 = vpop.f32.mrb[0].mxu0
    %v506 = vadd.f32 %v149, %v505
    %v507 = vpop.f32.mrb[0].mxu0
    %v508 = vadd.f32 %v145, %v507
    %v509 = vpop.f32.mrb[0].mxu0
    %v510 = vadd.f32 %v149, %v509
    %511 = vmatprep.mubr.bf16.mxu0 0
    %512 = vmatmul.mubr.bf16.gmra.mrb[0].mxu0 %v237
    %v513 = vpop.f32.mrb[0].mxu0
    %v514 = vadd.f32 %v145, %v513
    %v515 = vpop.f32.mrb[0].mxu0
    %v516 = vadd.f32 %v149, %v515
    %v517 = vpop.f32.mrb[0].mxu0
    %v518 = vadd.f32 %v145, %v517
    %v519 = vpop.f32.mrb[0].mxu0
    %v520 = vadd.f32 %v149, %v519
    %521 = vmatprep.mubr.bf16.mxu0 0
    %522 = vmatmul.mubr.bf16.gmra.mrb[0].mxu0 %v240
    %v523 = vpop.f32.mrb[0].mxu0
    %v524 = vadd.f32 %v145, %v523
    %v525 = vpop.f32.mrb[0].mxu0
    %v526 = vadd.f32 %v149, %v525
    %v527 = vpop.f32.mrb[0].mxu0
    %v528 = vadd.f32 %v145, %v527
    %v529 = vpop.f32.mrb[0].mxu0
    %v530 = vadd.f32 %v149, %v529
    %531 = vmatprep.mubr.bf16.mxu0 0
    %532 = vmatmul.mubr.bf16.gmra.mrb[0].mxu0 %v243
    %v533 = vpop.f32.mrb[0].mxu0
    %v534 = vadd.f32 %v145, %v533
    %v535 = vpop.f32.mrb[0].mxu0
    %v536 = vadd.f32 %v149, %v535
    %v537 = vpop.f32.mrb[0].mxu0
    %v538 = vadd.f32 %v145, %v537
    %v539 = vpop.f32.mrb[0].mxu0
    %v540 = vadd.f32 %v149, %v539
    %541 = vmatprep.mubr.bf16.mxu0 0
    %542 = vmatmul.mubr.bf16.gmra.mrb[0].mxu0 %v246
    %v543 = vpop.f32.mrb[0].mxu0
    %v544 = vadd.f32 %v145, %v543
    %v545 = vpop.f32.mrb[0].mxu0
    %v546 = vadd.f32 %v149, %v545
    %v547 = vpop.f32.mrb[0].mxu0
    %v548 = vadd.f32 %v145, %v547
    %v549 = vpop.f32.mrb[0].mxu0
    %v550 = vadd.f32 %v149, %v549
    %551 = vmatprep.mubr.bf16.mxu0 0
    %552 = vmatmul.mubr.bf16.gmra.mrb[0].mxu0 %v249
    %v553 = vpop.f32.mrb[0].mxu0
    %v554 = vadd.f32 %v145, %v553
    %v555 = vpop.f32.mrb[0].mxu0
    %v556 = vadd.f32 %v149, %v555
    %v557 = vpop.f32.mrb[0].mxu0
    %v558 = vadd.f32 %v145, %v557
    %v559 = vpop.f32.mrb[0].mxu0
    %v560 = vadd.f32 %v149, %v559
    %561 = vmatprep.mubr.bf16.mxu0 0
    %562 = vmatmul.mubr.bf16.gmra.mrb[0].mxu0 %v252
    %v563 = vpop.f32.mrb[0].mxu0
    %v564 = vadd.f32 %v145, %v563
    %v565 = vpop.f32.mrb[0].mxu0
    %v566 = vadd.f32 %v149, %v565
    %v567 = vpop.f32.mrb[0].mxu0
    %v568 = vadd.f32 %v145, %v567
    %v569 = vpop.f32.mrb[0].mxu0
    %v570 = vadd.f32 %v149, %v569
    %571 = vmatprep.mubr.bf16.mxu0 0
    %572 = vmatmul.mubr.bf16.gmra.mrb[0].mxu0 %v255
    %v573 = vpop.f32.mrb[0].mxu0
    %v574 = vadd.f32 %v145, %v573
    %v575 = vpop.f32.mrb[0].mxu0
    %v576 = vadd.f32 %v149, %v575
    %v577 = vpop.f32.mrb[0].mxu0
    %v578 = vadd.f32 %v145, %v577
    %v579 = vpop.f32.mrb[0].mxu0
    %v580 = vadd.f32 %v149, %v579
    %581 = vmatprep.mubr.bf16.mxu0 0
    %582 = vmatmul.mubr.bf16.gmra.mrb[0].mxu0 %v258
    %v583 = vpop.f32.mrb[0].mxu0
    %v584 = vadd.f32 %v145, %v583
    %v585 = vpop.f32.mrb[0].mxu0
    %v586 = vadd.f32 %v149, %v585
    %v587 = vpop.f32.mrb[0].mxu0
    %v588 = vadd.f32 %v145, %v587
    %v589 = vpop.f32.mrb[0].mxu0
    %v590 = vadd.f32 %v149, %v589
    %591 = vmatprep.mubr.bf16.mxu0 0
    %592 = vmatmul.mubr.bf16.gmra.mrb[0].mxu0 %v261
    %v593 = vpop.f32.mrb[0].mxu0
    %v594 = vadd.f32 %v145, %v593
    %v595 = vpop.f32.mrb[0].mxu0
    %v596 = vadd.f32 %v149, %v595
    %v597 = vpop.f32.mrb[0].mxu0
    %v598 = vadd.f32 %v145, %v597
    %v599 = vpop.f32.mrb[0].mxu0
    %v600 = vadd.f32 %v149, %v599
    %601 = vmatprep.mubr.bf16.mxu0 0
    %602 = vmatmul.mubr.bf16.gmra.mrb[0].mxu0 %v264
    %v603 = vpop.f32.mrb[0].mxu0
    %v604 = vadd.f32 %v145, %v603
    %v605 = vpop.f32.mrb[0].mxu0
    %v606 = vadd.f32 %v149, %v605
    %v607 = vpop.f32.mrb[0].mxu0
    %v608 = vadd.f32 %v145, %v607
    %v609 = vpop.f32.mrb[0].mxu0
    %v610 = vadd.f32 %v149, %v609
    %611 = vmatprep.mubr.bf16.mxu0 0
    %612 = vmatmul.mubr.bf16.gmra.mrb[0].mxu0 %v267
    %v613 = vpop.f32.mrb[0].mxu0
    %v614 = vadd.f32 %v145, %v613
    %v615 = vpop.f32.mrb[0].mxu0
    %v616 = vadd.f32 %v149, %v615
    %v617 = vpop.f32.mrb[0].mxu0
    %v618 = vadd.f32 %v145, %v617
    %v619 = vpop.f32.mrb[0].mxu0
    %v620 = vadd.f32 %v149, %v619
    %621 = vdwg.mxu0
    %v622 = vmax.f32 %v304, 0.0
    %v623 = vmax.f32 %v306, 0.0
    %v624 = vmax.f32 %v308, 0.0
    %v625 = vmax.f32 %v310, 0.0
    %v626 = vmax.f32 %v314, 0.0
    %v627 = vmax.f32 %v316, 0.0
    %v628 = vmax.f32 %v318, 0.0
    %v629 = vmax.f32 %v320, 0.0
    %v630 = vmax.f32 %v324, 0.0
    %v631 = vmax.f32 %v326, 0.0
    %v632 = vmax.f32 %v328, 0.0
    %v633 = vmax.f32 %v330, 0.0
    %v634 = vmax.f32 %v334, 0.0
    %v635 = vmax.f32 %v336, 0.0
    %v636 = vmax.f32 %v338, 0.0
    %v637 = vmax.f32 %v340, 0.0
    %v638 = vmax.f32 %v344, 0.0
    %v639 = vmax.f32 %v346, 0.0
    %v640 = vmax.f32 %v348, 0.0
    %v641 = vmax.f32 %v350, 0.0
    %v642 = vmax.f32 %v354, 0.0
    %v643 = vmax.f32 %v356, 0.0
    %v644 = vmax.f32 %v358, 0.0
    %v645 = vmax.f32 %v360, 0.0
    %v646 = vmax.f32 %v364, 0.0
    %v647 = vmax.f32 %v366, 0.0
    %v648 = vmax.f32 %v368, 0.0
    %v649 = vmax.f32 %v370, 0.0
    %v650 = vmax.f32 %v374, 0.0
    %v651 = vmax.f32 %v376, 0.0
    %v652 = vmax.f32 %v378, 0.0
    %v653 = vmax.f32 %v380, 0.0
    %v654 = vmax.f32 %v384, 0.0
    %v655 = vmax.f32 %v386, 0.0
    %v656 = vmax.f32 %v388, 0.0
    %v657 = vmax.f32 %v390, 0.0
    %v658 = vmax.f32 %v394, 0.0
    %v659 = vmax.f32 %v396, 0.0
    %v660 = vmax.f32 %v398, 0.0
    %v661 = vmax.f32 %v400, 0.0
    %v662 = vmax.f32 %v404, 0.0
    %v663 = vmax.f32 %v406, 0.0
    %v664 = vmax.f32 %v408, 0.0
    %v665 = vmax.f32 %v410, 0.0
    %v666 = vmax.f32 %v414, 0.0
    %v667 = vmax.f32 %v416, 0.0
    %v668 = vmax.f32 %v418, 0.0
    %v669 = vmax.f32 %v420, 0.0
    %v670 = vmax.f32 %v424, 0.0
    %v671 = vmax.f32 %v426, 0.0
    %v672 = vmax.f32 %v428, 0.0
    %v673 = vmax.f32 %v430, 0.0
    %v674 = vmax.f32 %v434, 0.0
    %v675 = vmax.f32 %v436, 0.0
    %v676 = vmax.f32 %v438, 0.0
    %v677 = vmax.f32 %v440, 0.0
    %v678 = vmax.f32 %v444, 0.0
    %v679 = vmax.f32 %v446, 0.0
    %v680 = vmax.f32 %v448, 0.0
    %v681 = vmax.f32 %v450, 0.0
    %v682 = vmax.f32 %v454, 0.0
    %v683 = vmax.f32 %v456, 0.0
    %v684 = vmax.f32 %v458, 0.0
    %v685 = vmax.f32 %v460, 0.0
    %v686 = vmax.f32 %v464, 0.0
    %v687 = vmax.f32 %v466, 0.0
    %v688 = vmax.f32 %v468, 0.0
    %v689 = vmax.f32 %v470, 0.0
    %v690 = vmax.f32 %v474, 0.0
    %v691 = vmax.f32 %v476, 0.0
    %v692 = vmax.f32 %v478, 0.0
    %v693 = vmax.f32 %v480, 0.0
    %v694 = vmax.f32 %v484, 0.0
    %v695 = vmax.f32 %v486, 0.0
    %v696 = vmax.f32 %v488, 0.0
    %v697 = vmax.f32 %v490, 0.0
    %v698 = vmax.f32 %v494, 0.0
    %v699 = vmax.f32 %v496, 0.0
    %v700 = vmax.f32 %v498, 0.0
    %v701 = vmax.f32 %v500, 0.0
    %v702 = vmax.f32 %v504, 0.0
    %v703 = vmax.f32 %v506, 0.0
    %v704 = vmax.f32 %v508, 0.0
    %v705 = vmax.f32 %v510, 0.0
    %v706 = vmax.f32 %v514, 0.0
    %v707 = vmax.f32 %v516, 0.0
    %v708 = vmax.f32 %v518, 0.0
    %v709 = vmax.f32 %v520, 0.0
    %v710 = vmax.f32 %v524, 0.0
    %v711 = vmax.f32 %v526, 0.0
    %v712 = vmax.f32 %v528, 0.0
    %v713 = vmax.f32 %v530, 0.0
    %v714 = vmax.f32 %v534, 0.0
    %v715 = vmax.f32 %v536, 0.0
    %v716 = vmax.f32 %v538, 0.0
    %v717 = vmax.f32 %v540, 0.0
    %v718 = vmax.f32 %v544, 0.0
    %v719 = vmax.f32 %v546, 0.0
    %v720 = vmax.f32 %v548, 0.0
    %v721 = vmax.f32 %v550, 0.0
    %v722 = vmax.f32 %v554, 0.0
    %v723 = vmax.f32 %v556, 0.0
    %v724 = vmax.f32 %v558, 0.0
    %v725 = vmax.f32 %v560, 0.0
    %v726 = vmax.f32 %v564, 0.0
    %v727 = vmax.f32 %v566, 0.0
    %v728 = vmax.f32 %v568, 0.0
    %v729 = vmax.f32 %v570, 0.0
    %v730 = vmax.f32 %v574, 0.0
    %v731 = vmax.f32 %v576, 0.0
    %v732 = vmax.f32 %v578, 0.0
    %v733 = vmax.f32 %v580, 0.0
    %v734 = vmax.f32 %v584, 0.0
    %v735 = vmax.f32 %v586, 0.0
    %v736 = vmax.f32 %v588, 0.0
    %v737 = vmax.f32 %v590, 0.0
    %v738 = vmax.f32 %v594, 0.0
    %v739 = vmax.f32 %v596, 0.0
    %v740 = vmax.f32 %v598, 0.0
    %v741 = vmax.f32 %v600, 0.0
    %v742 = vmax.f32 %v604, 0.0
    %v743 = vmax.f32 %v606, 0.0
    %v744 = vmax.f32 %v608, 0.0
    %v745 = vmax.f32 %v610, 0.0
    %v746 = vmax.f32 %v614, 0.0
    %v747 = vmax.f32 %v616, 0.0
    %v748 = vmax.f32 %v618, 0.0
    %v749 = vmax.f32 %v620, 0.0
    %v750 = vpack.c.bf16 %v624, %v622
    %v751 = vpack.c.bf16 %v625, %v623
    %v752 = vpack.c.bf16 %v628, %v626
    %v753 = vpack.c.bf16 %v629, %v627
    %v754 = vpack.c.bf16 %v632, %v630
    %v755 = vpack.c.bf16 %v633, %v631
    %v756 = vpack.c.bf16 %v636, %v634
    %v757 = vpack.c.bf16 %v637, %v635
    %v758 = vpack.c.bf16 %v640, %v638
    %v759 = vpack.c.bf16 %v641, %v639
    %v760 = vpack.c.bf16 %v644, %v642
    %v761 = vpack.c.bf16 %v645, %v643
    %v762 = vpack.c.bf16 %v648, %v646
    %v763 = vpack.c.bf16 %v649, %v647
    %v764 = vpack.c.bf16 %v652, %v650
    %v765 = vpack.c.bf16 %v653, %v651
    %v766 = vpack.c.bf16 %v656, %v654
    %v767 = vpack.c.bf16 %v657, %v655
    %v768 = vpack.c.bf16 %v660, %v658
    %v769 = vpack.c.bf16 %v661, %v659
    %v770 = vpack.c.bf16 %v664, %v662
    %v771 = vpack.c.bf16 %v665, %v663
    %v772 = vpack.c.bf16 %v668, %v666
    %v773 = vpack.c.bf16 %v669, %v667
    %v774 = vpack.c.bf16 %v672, %v670
    %v775 = vpack.c.bf16 %v673, %v671
    %v776 = vpack.c.bf16 %v676, %v674
    %v777 = vpack.c.bf16 %v677, %v675
    %v778 = vpack.c.bf16 %v680, %v678
    %v779 = vpack.c.bf16 %v681, %v679
    %v780 = vpack.c.bf16 %v684, %v682
    %v781 = vpack.c.bf16 %v685, %v683
    %v782 = vpack.c.bf16 %v688, %v686
    %v783 = vpack.c.bf16 %v689, %v687
    %v784 = vpack.c.bf16 %v692, %v690
    %v785 = vpack.c.bf16 %v693, %v691
    %v786 = vpack.c.bf16 %v696, %v694
    %v787 = vpack.c.bf16 %v697, %v695
    %v788 = vpack.c.bf16 %v700, %v698
    %v789 = vpack.c.bf16 %v701, %v699
    %v790 = vpack.c.bf16 %v704, %v702
    %v791 = vpack.c.bf16 %v705, %v703
    %v792 = vpack.c.bf16 %v708, %v706
    %v793 = vpack.c.bf16 %v709, %v707
    %v794 = vpack.c.bf16 %v712, %v710
    %v795 = vpack.c.bf16 %v713, %v711
    %v796 = vpack.c.bf16 %v716, %v714
    %v797 = vpack.c.bf16 %v717, %v715
    %v798 = vpack.c.bf16 %v720, %v718
    %v799 = vpack.c.bf16 %v721, %v719
    %v800 = vpack.c.bf16 %v724, %v722
    %v801 = vpack.c.bf16 %v725, %v723
    %v802 = vpack.c.bf16 %v728, %v726
    %v803 = vpack.c.bf16 %v729, %v727
    %v804 = vpack.c.bf16 %v732, %v730
    %v805 = vpack.c.bf16 %v733, %v731
    %v806 = vpack.c.bf16 %v736, %v734
    %v807 = vpack.c.bf16 %v737, %v735
    %v808 = vpack.c.bf16 %v740, %v738
    %v809 = vpack.c.bf16 %v741, %v739
    %v810 = vpack.c.bf16 %v744, %v742
    %v811 = vpack.c.bf16 %v745, %v743
    %v812 = vpack.c.bf16 %v748, %v746
    %v813 = vpack.c.bf16 %v749, %v747
    %v814 = vld [vmem:[%s3] sm:$0xff]
    %v815 = vld [vmem:[%s3 + $0x8] sm:$0xff]
    %v816 = vld [vmem:[%s3 + $0x10] sm:$0xff]
    %v817 = vld [vmem:[%s3 + $0x18] sm:$0xff]
    %v818 = vld [vmem:[%s3 + $0x20] sm:$0xff]
    %v819 = vld [vmem:[%s3 + $0x28] sm:$0xff]
    %v820 = vld [vmem:[%s3 + $0x30] sm:$0xff]
    %v821 = vld [vmem:[%s3 + $0x38] sm:$0xff]
    %v822 = vld [vmem:[%s3 + $0x40] sm:$0xff]
    %v823 = vld [vmem:[%s3 + $0x48] sm:$0xff]
    %v824 = vld [vmem:[%s3 + $0x50] sm:$0xff]
    %v825 = vld [vmem:[%s3 + $0x58] sm:$0xff]
    %v826 = vld [vmem:[%s3 + $0x60] sm:$0xff]
    %v827 = vld [vmem:[%s3 + $0x68] sm:$0xff]
    %v828 = vld [vmem:[%s3 + $0x70] sm:$0xff]
    %v829 = vld [vmem:[%s3 + $0x78] sm:$0xff]
    %v830 = vld [vmem:[%s3 + $0x80] sm:$0xff]
    %v831 = vld [vmem:[%s3 + $0x88] sm:$0xff]
    %v832 = vld [vmem:[%s3 + $0x90] sm:$0xff]
    %v833 = vld [vmem:[%s3 + $0x98] sm:$0xff]
    %v834 = vld [vmem:[%s3 + $0xa0] sm:$0xff]
    %v835 = vld [vmem:[%s3 + $0xa8] sm:$0xff]
    %v836 = vld [vmem:[%s3 + $0xb0] sm:$0xff]
    %v837 = vld [vmem:[%s3 + $0xb8] sm:$0xff]
    %v838 = vld [vmem:[%s3 + $0xc0] sm:$0xff]
    %v839 = vld [vmem:[%s3 + $0xc8] sm:$0xff]
    %v840 = vld [vmem:[%s3 + $0xd0] sm:$0xff]
    %v841 = vld [vmem:[%s3 + $0xd8] sm:$0xff]
    %v842 = vld [vmem:[%s3 + $0xe0] sm:$0xff]
    %v843 = vld [vmem:[%s3 + $0xe8] sm:$0xff]
    %v844 = vld [vmem:[%s3 + $0xf0] sm:$0xff]
    %v845 = vld [vmem:[%s3 + $0xf8] sm:$0xff]
    %v846 = vld [vmem:[%s4] sm:$0x3]
    %v848 = vlaneseq
    %v849 = vshrl.u32 %v848, 7
    %v850 = vsub.s32 0, %v849
    %v851 = vrot.slane %v846, %v850
    %v852 = vlaneseq
    %v853 = vshrl.u32 %v852, 7
    %v854 = vsub.s32 1, %v853
    %v855 = vrot.slane %v846, %v854
    %v890 = vunpack.c.l.b16 %v814
    %v891 = vunpack.c.h.b16 %v814
    %v892 = vunpack.c.l.b16 %v815
    %v893 = vunpack.c.h.b16 %v815
    %v894 = vunpack.c.l.b16 %v816
    %v895 = vunpack.c.h.b16 %v816
    %v896 = vunpack.c.l.b16 %v817
    %v897 = vunpack.c.h.b16 %v817
    %v898 = vunpack.c.l.b16 %v818
    %v899 = vunpack.c.h.b16 %v818
    %v900 = vunpack.c.l.b16 %v819
    %v901 = vunpack.c.h.b16 %v819
    %v902 = vunpack.c.l.b16 %v820
    %v903 = vunpack.c.h.b16 %v820
    %v904 = vunpack.c.l.b16 %v821
    %v905 = vunpack.c.h.b16 %v821
    %v906 = vunpack.c.l.b16 %v822
    %v907 = vunpack.c.h.b16 %v822
    %v908 = vunpack.c.l.b16 %v823
    %v909 = vunpack.c.h.b16 %v823
    %v910 = vunpack.c.l.b16 %v824
    %v911 = vunpack.c.h.b16 %v824
    %v912 = vunpack.c.l.b16 %v825
    %v913 = vunpack.c.h.b16 %v825
    %v914 = vunpack.c.l.b16 %v826
    %v915 = vunpack.c.h.b16 %v826
    %v916 = vunpack.c.l.b16 %v827
    %v917 = vunpack.c.h.b16 %v827
    %v918 = vunpack.c.l.b16 %v828
    %v919 = vunpack.c.h.b16 %v828
    %v920 = vunpack.c.l.b16 %v829
    %v921 = vunpack.c.h.b16 %v829
    %v922 = vunpack.c.l.b16 %v830
    %v923 = vunpack.c.h.b16 %v830
    %v924 = vunpack.c.l.b16 %v831
    %v925 = vunpack.c.h.b16 %v831
    %v926 = vunpack.c.l.b16 %v832
    %v927 = vunpack.c.h.b16 %v832
    %v928 = vunpack.c.l.b16 %v833
    %v929 = vunpack.c.h.b16 %v833
    %v930 = vunpack.c.l.b16 %v834
    %v931 = vunpack.c.h.b16 %v834
    %v932 = vunpack.c.l.b16 %v835
    %v933 = vunpack.c.h.b16 %v835
    %v934 = vunpack.c.l.b16 %v836
    %v935 = vunpack.c.h.b16 %v836
    %v936 = vunpack.c.l.b16 %v837
    %v937 = vunpack.c.h.b16 %v837
    %v938 = vunpack.c.l.b16 %v838
    %v939 = vunpack.c.h.b16 %v838
    %v940 = vunpack.c.l.b16 %v839
    %v941 = vunpack.c.h.b16 %v839
    %v942 = vunpack.c.l.b16 %v840
    %v943 = vunpack.c.h.b16 %v840
    %v944 = vunpack.c.l.b16 %v841
    %v945 = vunpack.c.h.b16 %v841
    %v946 = vunpack.c.l.b16 %v842
    %v947 = vunpack.c.h.b16 %v842
    %v948 = vunpack.c.l.b16 %v843
    %v949 = vunpack.c.h.b16 %v843
    %v950 = vunpack.c.l.b16 %v844
    %v951 = vunpack.c.h.b16 %v844
    %v952 = vunpack.c.l.b16 %v845
    %v953 = vunpack.c.h.b16 %v845
    %v954 = vpack.c.b16 %v892, %v890
    %v955 = vpack.c.b16 %v893, %v891
    %v956 = vpack.c.b16 %v896, %v894
    %v957 = vpack.c.b16 %v897, %v895
    %v958 = vpack.c.b16 %v900, %v898
    %v959 = vpack.c.b16 %v901, %v899
    %v960 = vpack.c.b16 %v904, %v902
    %v961 = vpack.c.b16 %v905, %v903
    %v962 = vpack.c.b16 %v908, %v906
    %v963 = vpack.c.b16 %v909, %v907
    %v964 = vpack.c.b16 %v912, %v910
    %v965 = vpack.c.b16 %v913, %v911
    %v966 = vpack.c.b16 %v916, %v914
    %v967 = vpack.c.b16 %v917, %v915
    %v968 = vpack.c.b16 %v920, %v918
    %v969 = vpack.c.b16 %v921, %v919
    %v970 = vpack.c.b16 %v924, %v922
    %v971 = vpack.c.b16 %v925, %v923
    %v972 = vpack.c.b16 %v928, %v926
    %v973 = vpack.c.b16 %v929, %v927
    %v974 = vpack.c.b16 %v932, %v930
    %v975 = vpack.c.b16 %v933, %v931
    %v976 = vpack.c.b16 %v936, %v934
    %v977 = vpack.c.b16 %v937, %v935
    %v978 = vpack.c.b16 %v940, %v938
    %v979 = vpack.c.b16 %v941, %v939
    %v980 = vpack.c.b16 %v944, %v942
    %v981 = vpack.c.b16 %v945, %v943
    %v982 = vpack.c.b16 %v948, %v946
    %v983 = vpack.c.b16 %v949, %v947
    %v984 = vpack.c.b16 %v952, %v950
    %v985 = vpack.c.b16 %v953, %v951
    %1018 = vmatprep.subr.bf16.mxu0 %v955
    %1019 = vmatpush1.bf16.msra.mxu0 %v954
    %1020 = vmatprep.subr.bf16.mxu0 %v957
    %1021 = vmatpush1.bf16.msra.mxu0 %v956
    %1022 = vmatprep.subr.bf16.mxu0 %v959
    %1023 = vmatpush1.bf16.msra.mxu0 %v958
    %1024 = vmatprep.subr.bf16.mxu0 %v961
    %1025 = vmatpush1.bf16.msra.mxu0 %v960
    %1026 = vmatprep.subr.bf16.mxu0 %v963
    %1027 = vmatpush1.bf16.msra.mxu0 %v962
    %1028 = vmatprep.subr.bf16.mxu0 %v965
    %1029 = vmatpush1.bf16.msra.mxu0 %v964
    %1030 = vmatprep.subr.bf16.mxu0 %v967
    %1031 = vmatpush1.bf16.msra.mxu0 %v966
    %1032 = vmatprep.subr.bf16.mxu0 %v969
    %1033 = vmatpush1.bf16.msra.mxu0 %v968
    %1034 = vmatprep.subr.bf16.mxu0 %v971
    %1035 = vmatpush1.bf16.msra.mxu0 %v970
    %1036 = vmatprep.subr.bf16.mxu0 %v973
    %1037 = vmatpush1.bf16.msra.mxu0 %v972
    %1038 = vmatprep.subr.bf16.mxu0 %v975
    %1039 = vmatpush1.bf16.msra.mxu0 %v974
    %1040 = vmatprep.subr.bf16.mxu0 %v977
    %1041 = vmatpush1.bf16.msra.mxu0 %v976
    %1042 = vmatprep.subr.bf16.mxu0 %v979
    %1043 = vmatpush1.bf16.msra.mxu0 %v978
    %1044 = vmatprep.subr.bf16.mxu0 %v981
    %1045 = vmatpush1.bf16.msra.mxu0 %v980
    %1046 = vmatprep.subr.bf16.mxu0 %v983
    %1047 = vmatpush1.bf16.msra.mxu0 %v982
    %1048 = vmatprep.subr.bf16.mxu0 %v985
    %1049 = vmatpush1.bf16.msra.mxu0 %v984
    %1050 = vmatprep.mubr.bf16.mxu0 %v751
    %1051 = vmatmul.mubr.bf16.gmra.mrb[0].mxu0 %v750
    %v1052 = vpop.f32.mrb[0].mxu0
    %v1053 = vadd.f32 %v851, %v1052
    %v1054 = vpop.f32.mrb[0].mxu0
    %v1055 = vadd.f32 %v855, %v1054
    %v1056 = vpop.f32.mrb[0].mxu0
    %v1057 = vadd.f32 %v851, %v1056
    %v1058 = vpop.f32.mrb[0].mxu0
    %v1059 = vadd.f32 %v855, %v1058
    %1060 = vmatprep.mubr.bf16.mxu0 %v753
    %1061 = vmatmul.mubr.bf16.gmra.mrb[0].mxu0 %v752
    %v1062 = vpop.f32.mrb[0].mxu0
    %v1063 = vadd.f32 %v851, %v1062
    %v1064 = vpop.f32.mrb[0].mxu0
    %v1065 = vadd.f32 %v855, %v1064
    %v1066 = vpop.f32.mrb[0].mxu0
    %v1067 = vadd.f32 %v851, %v1066
    %v1068 = vpop.f32.mrb[0].mxu0
    %v1069 = vadd.f32 %v855, %v1068
    %1070 = vmatprep.mubr.bf16.mxu0 %v755
    %1071 = vmatmul.mubr.bf16.gmra.mrb[0].mxu0 %v754
    %v1072 = vpop.f32.mrb[0].mxu0
    %v1073 = vadd.f32 %v851, %v1072
    %v1074 = vpop.f32.mrb[0].mxu0
    %v1075 = vadd.f32 %v855, %v1074
    %v1076 = vpop.f32.mrb[0].mxu0
    %v1077 = vadd.f32 %v851, %v1076
    %v1078 = vpop.f32.mrb[0].mxu0
    %v1079 = vadd.f32 %v855, %v1078
    %1080 = vmatprep.mubr.bf16.mxu0 %v757
    %1081 = vmatmul.mubr.bf16.gmra.mrb[0].mxu0 %v756
    %v1082 = vpop.f32.mrb[0].mxu0
    %v1083 = vadd.f32 %v851, %v1082
    %v1084 = vpop.f32.mrb[0].mxu0
    %v1085 = vadd.f32 %v855, %v1084
    %v1086 = vpop.f32.mrb[0].mxu0
    %v1087 = vadd.f32 %v851, %v1086
    %v1088 = vpop.f32.mrb[0].mxu0
    %v1089 = vadd.f32 %v855, %v1088
    %1090 = vmatprep.mubr.bf16.mxu0 %v759
    %1091 = vmatmul.mubr.bf16.gmra.mrb[0].mxu0 %v758
    %v1092 = vpop.f32.mrb[0].mxu0
    %v1093 = vadd.f32 %v851, %v1092
    %v1094 = vpop.f32.mrb[0].mxu0
    %v1095 = vadd.f32 %v855, %v1094
    %v1096 = vpop.f32.mrb[0].mxu0
    %v1097 = vadd.f32 %v851, %v1096
    %v1098 = vpop.f32.mrb[0].mxu0
    %v1099 = vadd.f32 %v855, %v1098
    %1100 = vmatprep.mubr.bf16.mxu0 %v761
    %1101 = vmatmul.mubr.bf16.gmra.mrb[0].mxu0 %v760
    %v1102 = vpop.f32.mrb[0].mxu0
    %v1103 = vadd.f32 %v851, %v1102
    %v1104 = vpop.f32.mrb[0].mxu0
    %v1105 = vadd.f32 %v855, %v1104
    %v1106 = vpop.f32.mrb[0].mxu0
    %v1107 = vadd.f32 %v851, %v1106
    %v1108 = vpop.f32.mrb[0].mxu0
    %v1109 = vadd.f32 %v855, %v1108
    %1110 = vmatprep.mubr.bf16.mxu0 %v763
    %1111 = vmatmul.mubr.bf16.gmra.mrb[0].mxu0 %v762
    %v1112 = vpop.f32.mrb[0].mxu0
    %v1113 = vadd.f32 %v851, %v1112
    %v1114 = vpop.f32.mrb[0].mxu0
    %v1115 = vadd.f32 %v855, %v1114
    %v1116 = vpop.f32.mrb[0].mxu0
    %v1117 = vadd.f32 %v851, %v1116
    %v1118 = vpop.f32.mrb[0].mxu0
    %v1119 = vadd.f32 %v855, %v1118
    %1120 = vmatprep.mubr.bf16.mxu0 %v765
    %1121 = vmatmul.mubr.bf16.gmra.mrb[0].mxu0 %v764
    %v1122 = vpop.f32.mrb[0].mxu0
    %v1123 = vadd.f32 %v851, %v1122
    %v1124 = vpop.f32.mrb[0].mxu0
    %v1125 = vadd.f32 %v855, %v1124
    %v1126 = vpop.f32.mrb[0].mxu0
    %v1127 = vadd.f32 %v851, %v1126
    %v1128 = vpop.f32.mrb[0].mxu0
    %v1129 = vadd.f32 %v855, %v1128
    %1130 = vmatprep.mubr.bf16.mxu0 %v767
    %1131 = vmatmul.mubr.bf16.gmra.mrb[0].mxu0 %v766
    %v1132 = vpop.f32.mrb[0].mxu0
    %v1133 = vadd.f32 %v851, %v1132
    %v1134 = vpop.f32.mrb[0].mxu0
    %v1135 = vadd.f32 %v855, %v1134
    %v1136 = vpop.f32.mrb[0].mxu0
    %v1137 = vadd.f32 %v851, %v1136
    %v1138 = vpop.f32.mrb[0].mxu0
    %v1139 = vadd.f32 %v855, %v1138
    %1140 = vmatprep.mubr.bf16.mxu0 %v769
    %1141 = vmatmul.mubr.bf16.gmra.mrb[0].mxu0 %v768
    %v1142 = vpop.f32.mrb[0].mxu0
    %v1143 = vadd.f32 %v851, %v1142
    %v1144 = vpop.f32.mrb[0].mxu0
    %v1145 = vadd.f32 %v855, %v1144
    %v1146 = vpop.f32.mrb[0].mxu0
    %v1147 = vadd.f32 %v851, %v1146
    %v1148 = vpop.f32.mrb[0].mxu0
    %v1149 = vadd.f32 %v855, %v1148
    %1150 = vmatprep.mubr.bf16.mxu0 %v771
    %1151 = vmatmul.mubr.bf16.gmra.mrb[0].mxu0 %v770
    %v1152 = vpop.f32.mrb[0].mxu0
    %v1153 = vadd.f32 %v851, %v1152
    %v1154 = vpop.f32.mrb[0].mxu0
    %v1155 = vadd.f32 %v855, %v1154
    %v1156 = vpop.f32.mrb[0].mxu0
    %v1157 = vadd.f32 %v851, %v1156
    %v1158 = vpop.f32.mrb[0].mxu0
    %v1159 = vadd.f32 %v855, %v1158
    %1160 = vmatprep.mubr.bf16.mxu0 %v773
    %1161 = vmatmul.mubr.bf16.gmra.mrb[0].mxu0 %v772
    %v1162 = vpop.f32.mrb[0].mxu0
    %v1163 = vadd.f32 %v851, %v1162
    %v1164 = vpop.f32.mrb[0].mxu0
    %v1165 = vadd.f32 %v855, %v1164
    %v1166 = vpop.f32.mrb[0].mxu0
    %v1167 = vadd.f32 %v851, %v1166
    %v1168 = vpop.f32.mrb[0].mxu0
    %v1169 = vadd.f32 %v855, %v1168
    %1170 = vmatprep.mubr.bf16.mxu0 %v775
    %1171 = vmatmul.mubr.bf16.gmra.mrb[0].mxu0 %v774
    %v1172 = vpop.f32.mrb[0].mxu0
    %v1173 = vadd.f32 %v851, %v1172
    %v1174 = vpop.f32.mrb[0].mxu0
    %v1175 = vadd.f32 %v855, %v1174
    %v1176 = vpop.f32.mrb[0].mxu0
    %v1177 = vadd.f32 %v851, %v1176
    %v1178 = vpop.f32.mrb[0].mxu0
    %v1179 = vadd.f32 %v855, %v1178
    %1180 = vmatprep.mubr.bf16.mxu0 %v777
    %1181 = vmatmul.mubr.bf16.gmra.mrb[0].mxu0 %v776
    %v1182 = vpop.f32.mrb[0].mxu0
    %v1183 = vadd.f32 %v851, %v1182
    %v1184 = vpop.f32.mrb[0].mxu0
    %v1185 = vadd.f32 %v855, %v1184
    %v1186 = vpop.f32.mrb[0].mxu0
    %v1187 = vadd.f32 %v851, %v1186
    %v1188 = vpop.f32.mrb[0].mxu0
    %v1189 = vadd.f32 %v855, %v1188
    %1190 = vmatprep.mubr.bf16.mxu0 %v779
    %1191 = vmatmul.mubr.bf16.gmra.mrb[0].mxu0 %v778
    %v1192 = vpop.f32.mrb[0].mxu0
    %v1193 = vadd.f32 %v851, %v1192
    %v1194 = vpop.f32.mrb[0].mxu0
    %v1195 = vadd.f32 %v855, %v1194
    %v1196 = vpop.f32.mrb[0].mxu0
    %v1197 = vadd.f32 %v851, %v1196
    %v1198 = vpop.f32.mrb[0].mxu0
    %v1199 = vadd.f32 %v855, %v1198
    %1200 = vmatprep.mubr.bf16.mxu0 %v781
    %1201 = vmatmul.mubr.bf16.gmra.mrb[0].mxu0 %v780
    %v1202 = vpop.f32.mrb[0].mxu0
    %v1203 = vadd.f32 %v851, %v1202
    %v1204 = vpop.f32.mrb[0].mxu0
    %v1205 = vadd.f32 %v855, %v1204
    %v1206 = vpop.f32.mrb[0].mxu0
    %v1207 = vadd.f32 %v851, %v1206
    %v1208 = vpop.f32.mrb[0].mxu0
    %v1209 = vadd.f32 %v855, %v1208
    %1210 = vmatprep.mubr.bf16.mxu0 %v783
    %1211 = vmatmul.mubr.bf16.gmra.mrb[0].mxu0 %v782
    %v1212 = vpop.f32.mrb[0].mxu0
    %v1213 = vadd.f32 %v851, %v1212
    %v1214 = vpop.f32.mrb[0].mxu0
    %v1215 = vadd.f32 %v855, %v1214
    %v1216 = vpop.f32.mrb[0].mxu0
    %v1217 = vadd.f32 %v851, %v1216
    %v1218 = vpop.f32.mrb[0].mxu0
    %v1219 = vadd.f32 %v855, %v1218
    %1220 = vmatprep.mubr.bf16.mxu0 %v785
    %1221 = vmatmul.mubr.bf16.gmra.mrb[0].mxu0 %v784
    %v1222 = vpop.f32.mrb[0].mxu0
    %v1223 = vadd.f32 %v851, %v1222
    %v1224 = vpop.f32.mrb[0].mxu0
    %v1225 = vadd.f32 %v855, %v1224
    %v1226 = vpop.f32.mrb[0].mxu0
    %v1227 = vadd.f32 %v851, %v1226
    %v1228 = vpop.f32.mrb[0].mxu0
    %v1229 = vadd.f32 %v855, %v1228
    %1230 = vmatprep.mubr.bf16.mxu0 %v787
    %1231 = vmatmul.mubr.bf16.gmra.mrb[0].mxu0 %v786
    %v1232 = vpop.f32.mrb[0].mxu0
    %v1233 = vadd.f32 %v851, %v1232
    %v1234 = vpop.f32.mrb[0].mxu0
    %v1235 = vadd.f32 %v855, %v1234
    %v1236 = vpop.f32.mrb[0].mxu0
    %v1237 = vadd.f32 %v851, %v1236
    %v1238 = vpop.f32.mrb[0].mxu0
    %v1239 = vadd.f32 %v855, %v1238
    %1240 = vmatprep.mubr.bf16.mxu0 %v789
    %1241 = vmatmul.mubr.bf16.gmra.mrb[0].mxu0 %v788
    %v1242 = vpop.f32.mrb[0].mxu0
    %v1243 = vadd.f32 %v851, %v1242
    %v1244 = vpop.f32.mrb[0].mxu0
    %v1245 = vadd.f32 %v855, %v1244
    %v1246 = vpop.f32.mrb[0].mxu0
    %v1247 = vadd.f32 %v851, %v1246
    %v1248 = vpop.f32.mrb[0].mxu0
    %v1249 = vadd.f32 %v855, %v1248
    %1250 = vmatprep.mubr.bf16.mxu0 %v791
    %1251 = vmatmul.mubr.bf16.gmra.mrb[0].mxu0 %v790
    %v1252 = vpop.f32.mrb[0].mxu0
    %v1253 = vadd.f32 %v851, %v1252
    %v1254 = vpop.f32.mrb[0].mxu0
    %v1255 = vadd.f32 %v855, %v1254
    %v1256 = vpop.f32.mrb[0].mxu0
    %v1257 = vadd.f32 %v851, %v1256
    %v1258 = vpop.f32.mrb[0].mxu0
    %v1259 = vadd.f32 %v855, %v1258
    %1260 = vmatprep.mubr.bf16.mxu0 %v793
    %1261 = vmatmul.mubr.bf16.gmra.mrb[0].mxu0 %v792
    %v1262 = vpop.f32.mrb[0].mxu0
    %v1263 = vadd.f32 %v851, %v1262
    %v1264 = vpop.f32.mrb[0].mxu0
    %v1265 = vadd.f32 %v855, %v1264
    %v1266 = vpop.f32.mrb[0].mxu0
    %v1267 = vadd.f32 %v851, %v1266
    %v1268 = vpop.f32.mrb[0].mxu0
    %v1269 = vadd.f32 %v855, %v1268
    %1270 = vmatprep.mubr.bf16.mxu0 %v795
    %1271 = vmatmul.mubr.bf16.gmra.mrb[0].mxu0 %v794
    %v1272 = vpop.f32.mrb[0].mxu0
    %v1273 = vadd.f32 %v851, %v1272
    %v1274 = vpop.f32.mrb[0].mxu0
    %v1275 = vadd.f32 %v855, %v1274
    %v1276 = vpop.f32.mrb[0].mxu0
    %v1277 = vadd.f32 %v851, %v1276
    %v1278 = vpop.f32.mrb[0].mxu0
    %v1279 = vadd.f32 %v855, %v1278
    %1280 = vmatprep.mubr.bf16.mxu0 %v797
    %1281 = vmatmul.mubr.bf16.gmra.mrb[0].mxu0 %v796
    %v1282 = vpop.f32.mrb[0].mxu0
    %v1283 = vadd.f32 %v851, %v1282
    %v1284 = vpop.f32.mrb[0].mxu0
    %v1285 = vadd.f32 %v855, %v1284
    %v1286 = vpop.f32.mrb[0].mxu0
    %v1287 = vadd.f32 %v851, %v1286
    %v1288 = vpop.f32.mrb[0].mxu0
    %v1289 = vadd.f32 %v855, %v1288
    %1290 = vmatprep.mubr.bf16.mxu0 %v799
    %1291 = vmatmul.mubr.bf16.gmra.mrb[0].mxu0 %v798
    %v1292 = vpop.f32.mrb[0].mxu0
    %v1293 = vadd.f32 %v851, %v1292
    %v1294 = vpop.f32.mrb[0].mxu0
    %v1295 = vadd.f32 %v855, %v1294
    %v1296 = vpop.f32.mrb[0].mxu0
    %v1297 = vadd.f32 %v851, %v1296
    %v1298 = vpop.f32.mrb[0].mxu0
    %v1299 = vadd.f32 %v855, %v1298
    %1300 = vmatprep.mubr.bf16.mxu0 %v801
    %1301 = vmatmul.mubr.bf16.gmra.mrb[0].mxu0 %v800
    %v1302 = vpop.f32.mrb[0].mxu0
    %v1303 = vadd.f32 %v851, %v1302
    %v1304 = vpop.f32.mrb[0].mxu0
    %v1305 = vadd.f32 %v855, %v1304
    %v1306 = vpop.f32.mrb[0].mxu0
    %v1307 = vadd.f32 %v851, %v1306
    %v1308 = vpop.f32.mrb[0].mxu0
    %v1309 = vadd.f32 %v855, %v1308
    %1310 = vmatprep.mubr.bf16.mxu0 %v803
    %1311 = vmatmul.mubr.bf16.gmra.mrb[0].mxu0 %v802
    %v1312 = vpop.f32.mrb[0].mxu0
    %v1313 = vadd.f32 %v851, %v1312
    %v1314 = vpop.f32.mrb[0].mxu0
    %v1315 = vadd.f32 %v855, %v1314
    %v1316 = vpop.f32.mrb[0].mxu0
    %v1317 = vadd.f32 %v851, %v1316
    %v1318 = vpop.f32.mrb[0].mxu0
    %v1319 = vadd.f32 %v855, %v1318
    %1320 = vmatprep.mubr.bf16.mxu0 %v805
    %1321 = vmatmul.mubr.bf16.gmra.mrb[0].mxu0 %v804
    %v1322 = vpop.f32.mrb[0].mxu0
    %v1323 = vadd.f32 %v851, %v1322
    %v1324 = vpop.f32.mrb[0].mxu0
    %v1325 = vadd.f32 %v855, %v1324
    %v1326 = vpop.f32.mrb[0].mxu0
    %v1327 = vadd.f32 %v851, %v1326
    %v1328 = vpop.f32.mrb[0].mxu0
    %v1329 = vadd.f32 %v855, %v1328
    %1330 = vmatprep.mubr.bf16.mxu0 %v807
    %1331 = vmatmul.mubr.bf16.gmra.mrb[0].mxu0 %v806
    %v1332 = vpop.f32.mrb[0].mxu0
    %v1333 = vadd.f32 %v851, %v1332
    %v1334 = vpop.f32.mrb[0].mxu0
    %v1335 = vadd.f32 %v855, %v1334
    %v1336 = vpop.f32.mrb[0].mxu0
    %v1337 = vadd.f32 %v851, %v1336
    %v1338 = vpop.f32.mrb[0].mxu0
    %v1339 = vadd.f32 %v855, %v1338
    %1340 = vmatprep.mubr.bf16.mxu0 %v809
    %1341 = vmatmul.mubr.bf16.gmra.mrb[0].mxu0 %v808
    %v1342 = vpop.f32.mrb[0].mxu0
    %v1343 = vadd.f32 %v851, %v1342
    %v1344 = vpop.f32.mrb[0].mxu0
    %v1345 = vadd.f32 %v855, %v1344
    %v1346 = vpop.f32.mrb[0].mxu0
    %v1347 = vadd.f32 %v851, %v1346
    %v1348 = vpop.f32.mrb[0].mxu0
    %v1349 = vadd.f32 %v855, %v1348
    %1350 = vmatprep.mubr.bf16.mxu0 %v811
    %1351 = vmatmul.mubr.bf16.gmra.mrb[0].mxu0 %v810
    %v1352 = vpop.f32.mrb[0].mxu0
    %v1353 = vadd.f32 %v851, %v1352
    %v1354 = vpop.f32.mrb[0].mxu0
    %v1355 = vadd.f32 %v855, %v1354
    %v1356 = vpop.f32.mrb[0].mxu0
    %v1357 = vadd.f32 %v851, %v1356
    %v1358 = vpop.f32.mrb[0].mxu0
    %v1359 = vadd.f32 %v855, %v1358
    %1360 = vmatprep.mubr.bf16.mxu0 %v813
    %1361 = vmatmul.mubr.bf16.gmra.mrb[0].mxu0 %v812
    %v1362 = vpop.f32.mrb[0].mxu0
    %v1363 = vadd.f32 %v851, %v1362
    %v1364 = vpop.f32.mrb[0].mxu0
    %v1365 = vadd.f32 %v855, %v1364
    %v1366 = vpop.f32.mrb[0].mxu0
    %v1367 = vadd.f32 %v851, %v1366
    %v1368 = vpop.f32.mrb[0].mxu0
    %v1369 = vadd.f32 %v855, %v1368
    %1370 = vdwg.mxu0
    %v1371 = vmax.f32 %v1053, 0.0
    %v1372 = vmax.f32 %v1055, 0.0
    %v1373 = vmax.f32 %v1057, 0.0
    %v1374 = vmax.f32 %v1059, 0.0
    %v1375 = vmax.f32 %v1063, 0.0
    %v1376 = vmax.f32 %v1065, 0.0
    %v1377 = vmax.f32 %v1067, 0.0
    %v1378 = vmax.f32 %v1069, 0.0
    %v1379 = vmax.f32 %v1073, 0.0
    %v1380 = vmax.f32 %v1075, 0.0
    %v1381 = vmax.f32 %v1077, 0.0
    %v1382 = vmax.f32 %v1079, 0.0
    %v1383 = vmax.f32 %v1083, 0.0
    %v1384 = vmax.f32 %v1085, 0.0
    %v1385 = vmax.f32 %v1087, 0.0
    %v1386 = vmax.f32 %v1089, 0.0
    %v1387 = vmax.f32 %v1093, 0.0
    %v1388 = vmax.f32 %v1095, 0.0
    %v1389 = vmax.f32 %v1097, 0.0
    %v1390 = vmax.f32 %v1099, 0.0
    %v1391 = vmax.f32 %v1103, 0.0
    %v1392 = vmax.f32 %v1105, 0.0
    %v1393 = vmax.f32 %v1107, 0.0
    %v1394 = vmax.f32 %v1109, 0.0
    %v1395 = vmax.f32 %v1113, 0.0
    %v1396 = vmax.f32 %v1115, 0.0
    %v1397 = vmax.f32 %v1117, 0.0
    %v1398 = vmax.f32 %v1119, 0.0
    %v1399 = vmax.f32 %v1123, 0.0
    %v1400 = vmax.f32 %v1125, 0.0
    %v1401 = vmax.f32 %v1127, 0.0
    %v1402 = vmax.f32 %v1129, 0.0
    %v1403 = vmax.f32 %v1133, 0.0
    %v1404 = vmax.f32 %v1135, 0.0
    %v1405 = vmax.f32 %v1137, 0.0
    %v1406 = vmax.f32 %v1139, 0.0
    %v1407 = vmax.f32 %v1143, 0.0
    %v1408 = vmax.f32 %v1145, 0.0
    %v1409 = vmax.f32 %v1147, 0.0
    %v1410 = vmax.f32 %v1149, 0.0
    %v1411 = vmax.f32 %v1153, 0.0
    %v1412 = vmax.f32 %v1155, 0.0
    %v1413 = vmax.f32 %v1157, 0.0
    %v1414 = vmax.f32 %v1159, 0.0
    %v1415 = vmax.f32 %v1163, 0.0
    %v1416 = vmax.f32 %v1165, 0.0
    %v1417 = vmax.f32 %v1167, 0.0
    %v1418 = vmax.f32 %v1169, 0.0
    %v1419 = vmax.f32 %v1173, 0.0
    %v1420 = vmax.f32 %v1175, 0.0
    %v1421 = vmax.f32 %v1177, 0.0
    %v1422 = vmax.f32 %v1179, 0.0
    %v1423 = vmax.f32 %v1183, 0.0
    %v1424 = vmax.f32 %v1185, 0.0
    %v1425 = vmax.f32 %v1187, 0.0
    %v1426 = vmax.f32 %v1189, 0.0
    %v1427 = vmax.f32 %v1193, 0.0
    %v1428 = vmax.f32 %v1195, 0.0
    %v1429 = vmax.f32 %v1197, 0.0
    %v1430 = vmax.f32 %v1199, 0.0
    %v1431 = vmax.f32 %v1203, 0.0
    %v1432 = vmax.f32 %v1205, 0.0
    %v1433 = vmax.f32 %v1207, 0.0
    %v1434 = vmax.f32 %v1209, 0.0
    %v1435 = vmax.f32 %v1213, 0.0
    %v1436 = vmax.f32 %v1215, 0.0
    %v1437 = vmax.f32 %v1217, 0.0
    %v1438 = vmax.f32 %v1219, 0.0
    %v1439 = vmax.f32 %v1223, 0.0
    %v1440 = vmax.f32 %v1225, 0.0
    %v1441 = vmax.f32 %v1227, 0.0
    %v1442 = vmax.f32 %v1229, 0.0
    %v1443 = vmax.f32 %v1233, 0.0
    %v1444 = vmax.f32 %v1235, 0.0
    %v1445 = vmax.f32 %v1237, 0.0
    %v1446 = vmax.f32 %v1239, 0.0
    %v1447 = vmax.f32 %v1243, 0.0
    %v1448 = vmax.f32 %v1245, 0.0
    %v1449 = vmax.f32 %v1247, 0.0
    %v1450 = vmax.f32 %v1249, 0.0
    %v1451 = vmax.f32 %v1253, 0.0
    %v1452 = vmax.f32 %v1255, 0.0
    %v1453 = vmax.f32 %v1257, 0.0
    %v1454 = vmax.f32 %v1259, 0.0
    %v1455 = vmax.f32 %v1263, 0.0
    %v1456 = vmax.f32 %v1265, 0.0
    %v1457 = vmax.f32 %v1267, 0.0
    %v1458 = vmax.f32 %v1269, 0.0
    %v1459 = vmax.f32 %v1273, 0.0
    %v1460 = vmax.f32 %v1275, 0.0
    %v1461 = vmax.f32 %v1277, 0.0
    %v1462 = vmax.f32 %v1279, 0.0
    %v1463 = vmax.f32 %v1283, 0.0
    %v1464 = vmax.f32 %v1285, 0.0
    %v1465 = vmax.f32 %v1287, 0.0
    %v1466 = vmax.f32 %v1289, 0.0
    %v1467 = vmax.f32 %v1293, 0.0
    %v1468 = vmax.f32 %v1295, 0.0
    %v1469 = vmax.f32 %v1297, 0.0
    %v1470 = vmax.f32 %v1299, 0.0
    %v1471 = vmax.f32 %v1303, 0.0
    %v1472 = vmax.f32 %v1305, 0.0
    %v1473 = vmax.f32 %v1307, 0.0
    %v1474 = vmax.f32 %v1309, 0.0
    %v1475 = vmax.f32 %v1313, 0.0
    %v1476 = vmax.f32 %v1315, 0.0
    %v1477 = vmax.f32 %v1317, 0.0
    %v1478 = vmax.f32 %v1319, 0.0
    %v1479 = vmax.f32 %v1323, 0.0
    %v1480 = vmax.f32 %v1325, 0.0
    %v1481 = vmax.f32 %v1327, 0.0
    %v1482 = vmax.f32 %v1329, 0.0
    %v1483 = vmax.f32 %v1333, 0.0
    %v1484 = vmax.f32 %v1335, 0.0
    %v1485 = vmax.f32 %v1337, 0.0
    %v1486 = vmax.f32 %v1339, 0.0
    %v1487 = vmax.f32 %v1343, 0.0
    %v1488 = vmax.f32 %v1345, 0.0
    %v1489 = vmax.f32 %v1347, 0.0
    %v1490 = vmax.f32 %v1349, 0.0
    %v1491 = vmax.f32 %v1353, 0.0
    %v1492 = vmax.f32 %v1355, 0.0
    %v1493 = vmax.f32 %v1357, 0.0
    %v1494 = vmax.f32 %v1359, 0.0
    %v1495 = vmax.f32 %v1363, 0.0
    %v1496 = vmax.f32 %v1365, 0.0
    %v1497 = vmax.f32 %v1367, 0.0
    %v1498 = vmax.f32 %v1369, 0.0
    %v1499 = vpack.c.bf16 %v1373, %v1371
    %v1500 = vpack.c.bf16 %v1374, %v1372
    %v1501 = vpack.c.bf16 %v1377, %v1375
    %v1502 = vpack.c.bf16 %v1378, %v1376
    %v1503 = vpack.c.bf16 %v1381, %v1379
    %v1504 = vpack.c.bf16 %v1382, %v1380
    %v1505 = vpack.c.bf16 %v1385, %v1383
    %v1506 = vpack.c.bf16 %v1386, %v1384
    %v1507 = vpack.c.bf16 %v1389, %v1387
    %v1508 = vpack.c.bf16 %v1390, %v1388
    %v1509 = vpack.c.bf16 %v1393, %v1391
    %v1510 = vpack.c.bf16 %v1394, %v1392
    %v1511 = vpack.c.bf16 %v1397, %v1395
    %v1512 = vpack.c.bf16 %v1398, %v1396
    %v1513 = vpack.c.bf16 %v1401, %v1399
    %v1514 = vpack.c.bf16 %v1402, %v1400
    %v1515 = vpack.c.bf16 %v1405, %v1403
    %v1516 = vpack.c.bf16 %v1406, %v1404
    %v1517 = vpack.c.bf16 %v1409, %v1407
    %v1518 = vpack.c.bf16 %v1410, %v1408
    %v1519 = vpack.c.bf16 %v1413, %v1411
    %v1520 = vpack.c.bf16 %v1414, %v1412
    %v1521 = vpack.c.bf16 %v1417, %v1415
    %v1522 = vpack.c.bf16 %v1418, %v1416
    %v1523 = vpack.c.bf16 %v1421, %v1419
    %v1524 = vpack.c.bf16 %v1422, %v1420
    %v1525 = vpack.c.bf16 %v1425, %v1423
    %v1526 = vpack.c.bf16 %v1426, %v1424
    %v1527 = vpack.c.bf16 %v1429, %v1427
    %v1528 = vpack.c.bf16 %v1430, %v1428
    %v1529 = vpack.c.bf16 %v1433, %v1431
    %v1530 = vpack.c.bf16 %v1434, %v1432
    %v1531 = vpack.c.bf16 %v1437, %v1435
    %v1532 = vpack.c.bf16 %v1438, %v1436
    %v1533 = vpack.c.bf16 %v1441, %v1439
    %v1534 = vpack.c.bf16 %v1442, %v1440
    %v1535 = vpack.c.bf16 %v1445, %v1443
    %v1536 = vpack.c.bf16 %v1446, %v1444
    %v1537 = vpack.c.bf16 %v1449, %v1447
    %v1538 = vpack.c.bf16 %v1450, %v1448
    %v1539 = vpack.c.bf16 %v1453, %v1451
    %v1540 = vpack.c.bf16 %v1454, %v1452
    %v1541 = vpack.c.bf16 %v1457, %v1455
    %v1542 = vpack.c.bf16 %v1458, %v1456
    %v1543 = vpack.c.bf16 %v1461, %v1459
    %v1544 = vpack.c.bf16 %v1462, %v1460
    %v1545 = vpack.c.bf16 %v1465, %v1463
    %v1546 = vpack.c.bf16 %v1466, %v1464
    %v1547 = vpack.c.bf16 %v1469, %v1467
    %v1548 = vpack.c.bf16 %v1470, %v1468
    %v1549 = vpack.c.bf16 %v1473, %v1471
    %v1550 = vpack.c.bf16 %v1474, %v1472
    %v1551 = vpack.c.bf16 %v1477, %v1475
    %v1552 = vpack.c.bf16 %v1478, %v1476
    %v1553 = vpack.c.bf16 %v1481, %v1479
    %v1554 = vpack.c.bf16 %v1482, %v1480
    %v1555 = vpack.c.bf16 %v1485, %v1483
    %v1556 = vpack.c.bf16 %v1486, %v1484
    %v1557 = vpack.c.bf16 %v1489, %v1487
    %v1558 = vpack.c.bf16 %v1490, %v1488
    %v1559 = vpack.c.bf16 %v1493, %v1491
    %v1560 = vpack.c.bf16 %v1494, %v1492
    %v1561 = vpack.c.bf16 %v1497, %v1495
    %v1562 = vpack.c.bf16 %v1498, %v1496
    %v1563 = vld [vmem:[%s5] sm:$0xf]
    %v1564 = vld [vmem:[%s5 + $0x4] sm:$0xf]
    %v1565 = vld [vmem:[%s5 + $0x8] sm:$0xf]
    %v1566 = vld [vmem:[%s5 + $0xc] sm:$0xf]
    %v1567 = vld [vmem:[%s5 + $0x10] sm:$0xf]
    %v1568 = vld [vmem:[%s5 + $0x14] sm:$0xf]
    %v1569 = vld [vmem:[%s5 + $0x18] sm:$0xf]
    %v1570 = vld [vmem:[%s5 + $0x1c] sm:$0xf]
    %v1571 = vld [vmem:[%s5 + $0x20] sm:$0xf]
    %v1572 = vld [vmem:[%s5 + $0x24] sm:$0xf]
    %v1573 = vld [vmem:[%s5 + $0x28] sm:$0xf]
    %v1574 = vld [vmem:[%s5 + $0x2c] sm:$0xf]
    %v1575 = vld [vmem:[%s5 + $0x30] sm:$0xf]
    %v1576 = vld [vmem:[%s5 + $0x34] sm:$0xf]
    %v1577 = vld [vmem:[%s5 + $0x38] sm:$0xf]
    %v1578 = vld [vmem:[%s5 + $0x3c] sm:$0xf]
    %v1579 = vld [vmem:[%s5 + $0x40] sm:$0xf]
    %v1580 = vld [vmem:[%s5 + $0x44] sm:$0xf]
    %v1581 = vld [vmem:[%s5 + $0x48] sm:$0xf]
    %v1582 = vld [vmem:[%s5 + $0x4c] sm:$0xf]
    %v1583 = vld [vmem:[%s5 + $0x50] sm:$0xf]
    %v1584 = vld [vmem:[%s5 + $0x54] sm:$0xf]
    %v1585 = vld [vmem:[%s5 + $0x58] sm:$0xf]
    %v1586 = vld [vmem:[%s5 + $0x5c] sm:$0xf]
    %v1587 = vld [vmem:[%s5 + $0x60] sm:$0xf]
    %v1588 = vld [vmem:[%s5 + $0x64] sm:$0xf]
    %v1589 = vld [vmem:[%s5 + $0x68] sm:$0xf]
    %v1590 = vld [vmem:[%s5 + $0x6c] sm:$0xf]
    %v1591 = vld [vmem:[%s5 + $0x70] sm:$0xf]
    %v1592 = vld [vmem:[%s5 + $0x74] sm:$0xf]
    %v1593 = vld [vmem:[%s5 + $0x78] sm:$0xf]
    %v1594 = vld [vmem:[%s5 + $0x7c] sm:$0xf]
    %v1595 = vld [vmem:[%s6] sm:$0x1]
    %v1597 = vlaneseq
    %v1598 = vshrl.u32 %v1597, 7
    %v1599 = vsub.s32 0, %v1598
    %v1600 = vrot.slane %v1595, %v1599
    %v1634 = vunpack.c.l.b16 %v1563
    %v1635 = vunpack.c.l.b16 %v1564
    %v1636 = vunpack.c.l.b16 %v1565
    %v1637 = vunpack.c.l.b16 %v1566
    %v1638 = vunpack.c.l.b16 %v1567
    %v1639 = vunpack.c.l.b16 %v1568
    %v1640 = vunpack.c.l.b16 %v1569
    %v1641 = vunpack.c.l.b16 %v1570
    %v1642 = vunpack.c.l.b16 %v1571
    %v1643 = vunpack.c.l.b16 %v1572
    %v1644 = vunpack.c.l.b16 %v1573
    %v1645 = vunpack.c.l.b16 %v1574
    %v1646 = vunpack.c.l.b16 %v1575
    %v1647 = vunpack.c.l.b16 %v1576
    %v1648 = vunpack.c.l.b16 %v1577
    %v1649 = vunpack.c.l.b16 %v1578
    %v1650 = vunpack.c.l.b16 %v1579
    %v1651 = vunpack.c.l.b16 %v1580
    %v1652 = vunpack.c.l.b16 %v1581
    %v1653 = vunpack.c.l.b16 %v1582
    %v1654 = vunpack.c.l.b16 %v1583
    %v1655 = vunpack.c.l.b16 %v1584
    %v1656 = vunpack.c.l.b16 %v1585
    %v1657 = vunpack.c.l.b16 %v1586
    %v1658 = vunpack.c.l.b16 %v1587
    %v1659 = vunpack.c.l.b16 %v1588
    %v1660 = vunpack.c.l.b16 %v1589
    %v1661 = vunpack.c.l.b16 %v1590
    %v1662 = vunpack.c.l.b16 %v1591
    %v1663 = vunpack.c.l.b16 %v1592
    %v1664 = vunpack.c.l.b16 %v1593
    %v1665 = vunpack.c.l.b16 %v1594
    %v1666 = vpack.c.b16 %v1635, %v1634
    %v1667 = vpack.c.b16 %v1637, %v1636
    %v1668 = vpack.c.b16 %v1639, %v1638
    %v1669 = vpack.c.b16 %v1641, %v1640
    %v1670 = vpack.c.b16 %v1643, %v1642
    %v1671 = vpack.c.b16 %v1645, %v1644
    %v1672 = vpack.c.b16 %v1647, %v1646
    %v1673 = vpack.c.b16 %v1649, %v1648
    %v1674 = vpack.c.b16 %v1651, %v1650
    %v1675 = vpack.c.b16 %v1653, %v1652
    %v1676 = vpack.c.b16 %v1655, %v1654
    %v1677 = vpack.c.b16 %v1657, %v1656
    %v1678 = vpack.c.b16 %v1659, %v1658
    %v1679 = vpack.c.b16 %v1661, %v1660
    %v1680 = vpack.c.b16 %v1663, %v1662
    %v1681 = vpack.c.b16 %v1665, %v1664
    %1698 = vmatprep.subr.bf16.mxu0 0
    %1699 = vmatpush1.bf16.msra.mxu0 %v1666
    %1700 = vmatprep.subr.bf16.mxu0 0
    %1701 = vmatpush1.bf16.msra.mxu0 %v1667
    %1702 = vmatprep.subr.bf16.mxu0 0
    %1703 = vmatpush1.bf16.msra.mxu0 %v1668
    %1704 = vmatprep.subr.bf16.mxu0 0
    %1705 = vmatpush1.bf16.msra.mxu0 %v1669
    %1706 = vmatprep.subr.bf16.mxu0 0
    %1707 = vmatpush1.bf16.msra.mxu0 %v1670
    %1708 = vmatprep.subr.bf16.mxu0 0
    %1709 = vmatpush1.bf16.msra.mxu0 %v1671
    %1710 = vmatprep.subr.bf16.mxu0 0
    %1711 = vmatpush1.bf16.msra.mxu0 %v1672
    %1712 = vmatprep.subr.bf16.mxu0 0
    %1713 = vmatpush1.bf16.msra.mxu0 %v1673
    %1714 = vmatprep.subr.bf16.mxu0 0
    %1715 = vmatpush1.bf16.msra.mxu0 %v1674
    %1716 = vmatprep.subr.bf16.mxu0 0
    %1717 = vmatpush1.bf16.msra.mxu0 %v1675
    %1718 = vmatprep.subr.bf16.mxu0 0
    %1719 = vmatpush1.bf16.msra.mxu0 %v1676
    %1720 = vmatprep.subr.bf16.mxu0 0
    %1721 = vmatpush1.bf16.msra.mxu0 %v1677
    %1722 = vmatprep.subr.bf16.mxu0 0
    %1723 = vmatpush1.bf16.msra.mxu0 %v1678
    %1724 = vmatprep.subr.bf16.mxu0 0
    %1725 = vmatpush1.bf16.msra.mxu0 %v1679
    %1726 = vmatprep.subr.bf16.mxu0 0
    %1727 = vmatpush1.bf16.msra.mxu0 %v1680
    %1728 = vmatprep.subr.bf16.mxu0 0
    %1729 = vmatpush1.bf16.msra.mxu0 %v1681
    %1730 = vmatprep.mubr.bf16.mxu0 %v1500
    %1731 = vmatmul.mubr.bf16.gmra.mrb[0].mxu0 %v1499
    %v1732 = vpop.f32.mrb[0].mxu0
    %v1733 = vadd.f32 %v1600, %v1732
    %v1734 = vpop.f32.mrb[0].mxu0
    %v1735 = vpop.f32.mrb[0].mxu0
    %v1736 = vadd.f32 %v1600, %v1735
    %v1737 = vpop.f32.mrb[0].mxu0
    %1738 = vmatprep.mubr.bf16.mxu0 %v1502
    %1739 = vmatmul.mubr.bf16.gmra.mrb[0].mxu0 %v1501
    %v1740 = vpop.f32.mrb[0].mxu0
    %v1741 = vadd.f32 %v1600, %v1740
    %v1742 = vpop.f32.mrb[0].mxu0
    %v1743 = vpop.f32.mrb[0].mxu0
    %v1744 = vadd.f32 %v1600, %v1743
    %v1745 = vpop.f32.mrb[0].mxu0
    %1746 = vmatprep.mubr.bf16.mxu0 %v1504
    %1747 = vmatmul.mubr.bf16.gmra.mrb[0].mxu0 %v1503
    %v1748 = vpop.f32.mrb[0].mxu0
    %v1749 = vadd.f32 %v1600, %v1748
    %v1750 = vpop.f32.mrb[0].mxu0
    %v1751 = vpop.f32.mrb[0].mxu0
    %v1752 = vadd.f32 %v1600, %v1751
    %v1753 = vpop.f32.mrb[0].mxu0
    %1754 = vmatprep.mubr.bf16.mxu0 %v1506
    %1755 = vmatmul.mubr.bf16.gmra.mrb[0].mxu0 %v1505
    %v1756 = vpop.f32.mrb[0].mxu0
    %v1757 = vadd.f32 %v1600, %v1756
    %v1758 = vpop.f32.mrb[0].mxu0
    %v1759 = vpop.f32.mrb[0].mxu0
    %v1760 = vadd.f32 %v1600, %v1759
    %v1761 = vpop.f32.mrb[0].mxu0
    %1762 = vmatprep.mubr.bf16.mxu0 %v1508
    %1763 = vmatmul.mubr.bf16.gmra.mrb[0].mxu0 %v1507
    %v1764 = vpop.f32.mrb[0].mxu0
    %v1765 = vadd.f32 %v1600, %v1764
    %v1766 = vpop.f32.mrb[0].mxu0
    %v1767 = vpop.f32.mrb[0].mxu0
    %v1768 = vadd.f32 %v1600, %v1767
    %v1769 = vpop.f32.mrb[0].mxu0
    %1770 = vmatprep.mubr.bf16.mxu0 %v1510
    %1771 = vmatmul.mubr.bf16.gmra.mrb[0].mxu0 %v1509
    %v1772 = vpop.f32.mrb[0].mxu0
    %v1773 = vadd.f32 %v1600, %v1772
    %v1774 = vpop.f32.mrb[0].mxu0
    %v1775 = vpop.f32.mrb[0].mxu0
    %v1776 = vadd.f32 %v1600, %v1775
    %v1777 = vpop.f32.mrb[0].mxu0
    %1778 = vmatprep.mubr.bf16.mxu0 %v1512
    %1779 = vmatmul.mubr.bf16.gmra.mrb[0].mxu0 %v1511
    %v1780 = vpop.f32.mrb[0].mxu0
    %v1781 = vadd.f32 %v1600, %v1780
    %v1782 = vpop.f32.mrb[0].mxu0
    %v1783 = vpop.f32.mrb[0].mxu0
    %v1784 = vadd.f32 %v1600, %v1783
    %v1785 = vpop.f32.mrb[0].mxu0
    %1786 = vmatprep.mubr.bf16.mxu0 %v1514
    %1787 = vmatmul.mubr.bf16.gmra.mrb[0].mxu0 %v1513
    %v1788 = vpop.f32.mrb[0].mxu0
    %v1789 = vadd.f32 %v1600, %v1788
    %v1790 = vpop.f32.mrb[0].mxu0
    %v1791 = vpop.f32.mrb[0].mxu0
    %v1792 = vadd.f32 %v1600, %v1791
    %v1793 = vpop.f32.mrb[0].mxu0
    %1794 = vmatprep.mubr.bf16.mxu0 %v1516
    %1795 = vmatmul.mubr.bf16.gmra.mrb[0].mxu0 %v1515
    %v1796 = vpop.f32.mrb[0].mxu0
    %v1797 = vadd.f32 %v1600, %v1796
    %v1798 = vpop.f32.mrb[0].mxu0
    %v1799 = vpop.f32.mrb[0].mxu0
    %v1800 = vadd.f32 %v1600, %v1799
    %v1801 = vpop.f32.mrb[0].mxu0
    %1802 = vmatprep.mubr.bf16.mxu0 %v1518
    %1803 = vmatmul.mubr.bf16.gmra.mrb[0].mxu0 %v1517
    %v1804 = vpop.f32.mrb[0].mxu0
    %v1805 = vadd.f32 %v1600, %v1804
    %v1806 = vpop.f32.mrb[0].mxu0
    %v1807 = vpop.f32.mrb[0].mxu0
    %v1808 = vadd.f32 %v1600, %v1807
    %v1809 = vpop.f32.mrb[0].mxu0
    %1810 = vmatprep.mubr.bf16.mxu0 %v1520
    %1811 = vmatmul.mubr.bf16.gmra.mrb[0].mxu0 %v1519
    %v1812 = vpop.f32.mrb[0].mxu0
    %v1813 = vadd.f32 %v1600, %v1812
    %v1814 = vpop.f32.mrb[0].mxu0
    %v1815 = vpop.f32.mrb[0].mxu0
    %v1816 = vadd.f32 %v1600, %v1815
    %v1817 = vpop.f32.mrb[0].mxu0
    %1818 = vmatprep.mubr.bf16.mxu0 %v1522
    %1819 = vmatmul.mubr.bf16.gmra.mrb[0].mxu0 %v1521
    %v1820 = vpop.f32.mrb[0].mxu0
    %v1821 = vadd.f32 %v1600, %v1820
    %v1822 = vpop.f32.mrb[0].mxu0
    %v1823 = vpop.f32.mrb[0].mxu0
    %v1824 = vadd.f32 %v1600, %v1823
    %v1825 = vpop.f32.mrb[0].mxu0
    %1826 = vmatprep.mubr.bf16.mxu0 %v1524
    %1827 = vmatmul.mubr.bf16.gmra.mrb[0].mxu0 %v1523
    %v1828 = vpop.f32.mrb[0].mxu0
    %v1829 = vadd.f32 %v1600, %v1828
    %v1830 = vpop.f32.mrb[0].mxu0
    %v1831 = vpop.f32.mrb[0].mxu0
    %v1832 = vadd.f32 %v1600, %v1831
    %v1833 = vpop.f32.mrb[0].mxu0
    %1834 = vmatprep.mubr.bf16.mxu0 %v1526
    %1835 = vmatmul.mubr.bf16.gmra.mrb[0].mxu0 %v1525
    %v1836 = vpop.f32.mrb[0].mxu0
    %v1837 = vadd.f32 %v1600, %v1836
    %v1838 = vpop.f32.mrb[0].mxu0
    %v1839 = vpop.f32.mrb[0].mxu0
    %v1840 = vadd.f32 %v1600, %v1839
    %v1841 = vpop.f32.mrb[0].mxu0
    %1842 = vmatprep.mubr.bf16.mxu0 %v1528
    %1843 = vmatmul.mubr.bf16.gmra.mrb[0].mxu0 %v1527
    %v1844 = vpop.f32.mrb[0].mxu0
    %v1845 = vadd.f32 %v1600, %v1844
    %v1846 = vpop.f32.mrb[0].mxu0
    %v1847 = vpop.f32.mrb[0].mxu0
    %v1848 = vadd.f32 %v1600, %v1847
    %v1849 = vpop.f32.mrb[0].mxu0
    %1850 = vmatprep.mubr.bf16.mxu0 %v1530
    %1851 = vmatmul.mubr.bf16.gmra.mrb[0].mxu0 %v1529
    %v1852 = vpop.f32.mrb[0].mxu0
    %v1853 = vadd.f32 %v1600, %v1852
    %v1854 = vpop.f32.mrb[0].mxu0
    %v1855 = vpop.f32.mrb[0].mxu0
    %v1856 = vadd.f32 %v1600, %v1855
    %v1857 = vpop.f32.mrb[0].mxu0
    %1858 = vmatprep.mubr.bf16.mxu0 %v1532
    %1859 = vmatmul.mubr.bf16.gmra.mrb[0].mxu0 %v1531
    %v1860 = vpop.f32.mrb[0].mxu0
    %v1861 = vadd.f32 %v1600, %v1860
    %v1862 = vpop.f32.mrb[0].mxu0
    %v1863 = vpop.f32.mrb[0].mxu0
    %v1864 = vadd.f32 %v1600, %v1863
    %v1865 = vpop.f32.mrb[0].mxu0
    %1866 = vmatprep.mubr.bf16.mxu0 %v1534
    %1867 = vmatmul.mubr.bf16.gmra.mrb[0].mxu0 %v1533
    %v1868 = vpop.f32.mrb[0].mxu0
    %v1869 = vadd.f32 %v1600, %v1868
    %v1870 = vpop.f32.mrb[0].mxu0
    %v1871 = vpop.f32.mrb[0].mxu0
    %v1872 = vadd.f32 %v1600, %v1871
    %v1873 = vpop.f32.mrb[0].mxu0
    %1874 = vmatprep.mubr.bf16.mxu0 %v1536
    %1875 = vmatmul.mubr.bf16.gmra.mrb[0].mxu0 %v1535
    %v1876 = vpop.f32.mrb[0].mxu0
    %v1877 = vadd.f32 %v1600, %v1876
    %v1878 = vpop.f32.mrb[0].mxu0
    %v1879 = vpop.f32.mrb[0].mxu0
    %v1880 = vadd.f32 %v1600, %v1879
    %v1881 = vpop.f32.mrb[0].mxu0
    %1882 = vmatprep.mubr.bf16.mxu0 %v1538
    %1883 = vmatmul.mubr.bf16.gmra.mrb[0].mxu0 %v1537
    %v1884 = vpop.f32.mrb[0].mxu0
    %v1885 = vadd.f32 %v1600, %v1884
    %v1886 = vpop.f32.mrb[0].mxu0
    %v1887 = vpop.f32.mrb[0].mxu0
    %v1888 = vadd.f32 %v1600, %v1887
    %v1889 = vpop.f32.mrb[0].mxu0
    %1890 = vmatprep.mubr.bf16.mxu0 %v1540
    %1891 = vmatmul.mubr.bf16.gmra.mrb[0].mxu0 %v1539
    %v1892 = vpop.f32.mrb[0].mxu0
    %v1893 = vadd.f32 %v1600, %v1892
    %v1894 = vpop.f32.mrb[0].mxu0
    %v1895 = vpop.f32.mrb[0].mxu0
    %v1896 = vadd.f32 %v1600, %v1895
    %v1897 = vpop.f32.mrb[0].mxu0
    %1898 = vmatprep.mubr.bf16.mxu0 %v1542
    %1899 = vmatmul.mubr.bf16.gmra.mrb[0].mxu0 %v1541
    %v1900 = vpop.f32.mrb[0].mxu0
    %v1901 = vadd.f32 %v1600, %v1900
    %v1902 = vpop.f32.mrb[0].mxu0
    %v1903 = vpop.f32.mrb[0].mxu0
    %v1904 = vadd.f32 %v1600, %v1903
    %v1905 = vpop.f32.mrb[0].mxu0
    %1906 = vmatprep.mubr.bf16.mxu0 %v1544
    %1907 = vmatmul.mubr.bf16.gmra.mrb[0].mxu0 %v1543
    %v1908 = vpop.f32.mrb[0].mxu0
    %v1909 = vadd.f32 %v1600, %v1908
    %v1910 = vpop.f32.mrb[0].mxu0
    %v1911 = vpop.f32.mrb[0].mxu0
    %v1912 = vadd.f32 %v1600, %v1911
    %v1913 = vpop.f32.mrb[0].mxu0
    %1914 = vmatprep.mubr.bf16.mxu0 %v1546
    %1915 = vmatmul.mubr.bf16.gmra.mrb[0].mxu0 %v1545
    %v1916 = vpop.f32.mrb[0].mxu0
    %v1917 = vadd.f32 %v1600, %v1916
    %v1918 = vpop.f32.mrb[0].mxu0
    %v1919 = vpop.f32.mrb[0].mxu0
    %v1920 = vadd.f32 %v1600, %v1919
    %v1921 = vpop.f32.mrb[0].mxu0
    %1922 = vmatprep.mubr.bf16.mxu0 %v1548
    %1923 = vmatmul.mubr.bf16.gmra.mrb[0].mxu0 %v1547
    %v1924 = vpop.f32.mrb[0].mxu0
    %v1925 = vadd.f32 %v1600, %v1924
    %v1926 = vpop.f32.mrb[0].mxu0
    %v1927 = vpop.f32.mrb[0].mxu0
    %v1928 = vadd.f32 %v1600, %v1927
    %v1929 = vpop.f32.mrb[0].mxu0
    %1930 = vmatprep.mubr.bf16.mxu0 %v1550
    %1931 = vmatmul.mubr.bf16.gmra.mrb[0].mxu0 %v1549
    %v1932 = vpop.f32.mrb[0].mxu0
    %v1933 = vadd.f32 %v1600, %v1932
    %v1934 = vpop.f32.mrb[0].mxu0
    %v1935 = vpop.f32.mrb[0].mxu0
    %v1936 = vadd.f32 %v1600, %v1935
    %v1937 = vpop.f32.mrb[0].mxu0
    %1938 = vmatprep.mubr.bf16.mxu0 %v1552
    %1939 = vmatmul.mubr.bf16.gmra.mrb[0].mxu0 %v1551
    %v1940 = vpop.f32.mrb[0].mxu0
    %v1941 = vadd.f32 %v1600, %v1940
    %v1942 = vpop.f32.mrb[0].mxu0
    %v1943 = vpop.f32.mrb[0].mxu0
    %v1944 = vadd.f32 %v1600, %v1943
    %v1945 = vpop.f32.mrb[0].mxu0
    %1946 = vmatprep.mubr.bf16.mxu0 %v1554
    %1947 = vmatmul.mubr.bf16.gmra.mrb[0].mxu0 %v1553
    %v1948 = vpop.f32.mrb[0].mxu0
    %v1949 = vadd.f32 %v1600, %v1948
    %v1950 = vpop.f32.mrb[0].mxu0
    %v1951 = vpop.f32.mrb[0].mxu0
    %v1952 = vadd.f32 %v1600, %v1951
    %v1953 = vpop.f32.mrb[0].mxu0
    %1954 = vmatprep.mubr.bf16.mxu0 %v1556
    %1955 = vmatmul.mubr.bf16.gmra.mrb[0].mxu0 %v1555
    %v1956 = vpop.f32.mrb[0].mxu0
    %v1957 = vadd.f32 %v1600, %v1956
    %v1958 = vpop.f32.mrb[0].mxu0
    %v1959 = vpop.f32.mrb[0].mxu0
    %v1960 = vadd.f32 %v1600, %v1959
    %v1961 = vpop.f32.mrb[0].mxu0
    %1962 = vmatprep.mubr.bf16.mxu0 %v1558
    %1963 = vmatmul.mubr.bf16.gmra.mrb[0].mxu0 %v1557
    %v1964 = vpop.f32.mrb[0].mxu0
    %v1965 = vadd.f32 %v1600, %v1964
    %v1966 = vpop.f32.mrb[0].mxu0
    %v1967 = vpop.f32.mrb[0].mxu0
    %v1968 = vadd.f32 %v1600, %v1967
    %v1969 = vpop.f32.mrb[0].mxu0
    %1970 = vmatprep.mubr.bf16.mxu0 %v1560
    %1971 = vmatmul.mubr.bf16.gmra.mrb[0].mxu0 %v1559
    %v1972 = vpop.f32.mrb[0].mxu0
    %v1973 = vadd.f32 %v1600, %v1972
    %v1974 = vpop.f32.mrb[0].mxu0
    %v1975 = vpop.f32.mrb[0].mxu0
    %v1976 = vadd.f32 %v1600, %v1975
    %v1977 = vpop.f32.mrb[0].mxu0
    %1978 = vmatprep.mubr.bf16.mxu0 %v1562
    %1979 = vmatmul.mubr.bf16.gmra.mrb[0].mxu0 %v1561
    %v1980 = vpop.f32.mrb[0].mxu0
    %v1981 = vadd.f32 %v1600, %v1980
    %v1982 = vpop.f32.mrb[0].mxu0
    %v1983 = vpop.f32.mrb[0].mxu0
    %v1984 = vadd.f32 %v1600, %v1983
    %v1985 = vpop.f32.mrb[0].mxu0
    %1986 = vdwg.mxu0
    %v1987 = vmax.f32 %v1733, 0.0
    %v1988 = vmax.f32 %v1736, 0.0
    %v1989 = vmax.f32 %v1741, 0.0
    %v1990 = vmax.f32 %v1744, 0.0
    %v1991 = vmax.f32 %v1749, 0.0
    %v1992 = vmax.f32 %v1752, 0.0
    %v1993 = vmax.f32 %v1757, 0.0
    %v1994 = vmax.f32 %v1760, 0.0
    %v1995 = vmax.f32 %v1765, 0.0
    %v1996 = vmax.f32 %v1768, 0.0
    %v1997 = vmax.f32 %v1773, 0.0
    %v1998 = vmax.f32 %v1776, 0.0
    %v1999 = vmax.f32 %v1781, 0.0
    %v2000 = vmax.f32 %v1784, 0.0
    %v2001 = vmax.f32 %v1789, 0.0
    %v2002 = vmax.f32 %v1792, 0.0
    %v2003 = vmax.f32 %v1797, 0.0
    %v2004 = vmax.f32 %v1800, 0.0
    %v2005 = vmax.f32 %v1805, 0.0
    %v2006 = vmax.f32 %v1808, 0.0
    %v2007 = vmax.f32 %v1813, 0.0
    %v2008 = vmax.f32 %v1816, 0.0
    %v2009 = vmax.f32 %v1821, 0.0
    %v2010 = vmax.f32 %v1824, 0.0
    %v2011 = vmax.f32 %v1829, 0.0
    %v2012 = vmax.f32 %v1832, 0.0
    %v2013 = vmax.f32 %v1837, 0.0
    %v2014 = vmax.f32 %v1840, 0.0
    %v2015 = vmax.f32 %v1845, 0.0
    %v2016 = vmax.f32 %v1848, 0.0
    %v2017 = vmax.f32 %v1853, 0.0
    %v2018 = vmax.f32 %v1856, 0.0
    %v2019 = vmax.f32 %v1861, 0.0
    %v2020 = vmax.f32 %v1864, 0.0
    %v2021 = vmax.f32 %v1869, 0.0
    %v2022 = vmax.f32 %v1872, 0.0
    %v2023 = vmax.f32 %v1877, 0.0
    %v2024 = vmax.f32 %v1880, 0.0
    %v2025 = vmax.f32 %v1885, 0.0
    %v2026 = vmax.f32 %v1888, 0.0
    %v2027 = vmax.f32 %v1893, 0.0
    %v2028 = vmax.f32 %v1896, 0.0
    %v2029 = vmax.f32 %v1901, 0.0
    %v2030 = vmax.f32 %v1904, 0.0
    %v2031 = vmax.f32 %v1909, 0.0
    %v2032 = vmax.f32 %v1912, 0.0
    %v2033 = vmax.f32 %v1917, 0.0
    %v2034 = vmax.f32 %v1920, 0.0
    %v2035 = vmax.f32 %v1925, 0.0
    %v2036 = vmax.f32 %v1928, 0.0
    %v2037 = vmax.f32 %v1933, 0.0
    %v2038 = vmax.f32 %v1936, 0.0
    %v2039 = vmax.f32 %v1941, 0.0
    %v2040 = vmax.f32 %v1944, 0.0
    %v2041 = vmax.f32 %v1949, 0.0
    %v2042 = vmax.f32 %v1952, 0.0
    %v2043 = vmax.f32 %v1957, 0.0
    %v2044 = vmax.f32 %v1960, 0.0
    %v2045 = vmax.f32 %v1965, 0.0
    %v2046 = vmax.f32 %v1968, 0.0
    %v2047 = vmax.f32 %v1973, 0.0
    %v2048 = vmax.f32 %v1976, 0.0
    %v2049 = vmax.f32 %v1981, 0.0
    %v2050 = vmax.f32 %v1984, 0.0
    %v2051 = vpack.c.bf16 %v1988, %v1987
    %v2052 = vpack.c.bf16 %v1990, %v1989
    %v2053 = vpack.c.bf16 %v1992, %v1991
    %v2054 = vpack.c.bf16 %v1994, %v1993
    %v2055 = vpack.c.bf16 %v1996, %v1995
    %v2056 = vpack.c.bf16 %v1998, %v1997
    %v2057 = vpack.c.bf16 %v2000, %v1999
    %v2058 = vpack.c.bf16 %v2002, %v2001
    %v2059 = vpack.c.bf16 %v2004, %v2003
    %v2060 = vpack.c.bf16 %v2006, %v2005
    %v2061 = vpack.c.bf16 %v2008, %v2007
    %v2062 = vpack.c.bf16 %v2010, %v2009
    %v2063 = vpack.c.bf16 %v2012, %v2011
    %v2064 = vpack.c.bf16 %v2014, %v2013
    %v2065 = vpack.c.bf16 %v2016, %v2015
    %v2066 = vpack.c.bf16 %v2018, %v2017
    %v2067 = vpack.c.bf16 %v2020, %v2019
    %v2068 = vpack.c.bf16 %v2022, %v2021
    %v2069 = vpack.c.bf16 %v2024, %v2023
    %v2070 = vpack.c.bf16 %v2026, %v2025
    %v2071 = vpack.c.bf16 %v2028, %v2027
    %v2072 = vpack.c.bf16 %v2030, %v2029
    %v2073 = vpack.c.bf16 %v2032, %v2031
    %v2074 = vpack.c.bf16 %v2034, %v2033
    %v2075 = vpack.c.bf16 %v2036, %v2035
    %v2076 = vpack.c.bf16 %v2038, %v2037
    %v2077 = vpack.c.bf16 %v2040, %v2039
    %v2078 = vpack.c.bf16 %v2042, %v2041
    %v2079 = vpack.c.bf16 %v2044, %v2043
    %v2080 = vpack.c.bf16 %v2046, %v2045
    %v2081 = vpack.c.bf16 %v2048, %v2047
    %v2082 = vpack.c.bf16 %v2050, %v2049
    %v2083 = vld [vmem:[%s7] sm:$0xf]
    %v2084 = vld [vmem:[%s7 + $0x4] sm:$0xf]
    %v2085 = vld [vmem:[%s7 + $0x8] sm:$0xf]
    %v2086 = vld [vmem:[%s7 + $0xc] sm:$0xf]
    %v2087 = vld [vmem:[%s7 + $0x10] sm:$0xf]
    %v2088 = vld [vmem:[%s7 + $0x14] sm:$0xf]
    %v2089 = vld [vmem:[%s7 + $0x18] sm:$0xf]
    %v2090 = vld [vmem:[%s7 + $0x1c] sm:$0xf]
    %v2091 = vld [vmem:[%s7 + $0x20] sm:$0xf]
    %v2092 = vld [vmem:[%s7 + $0x24] sm:$0xf]
    %v2093 = vld [vmem:[%s7 + $0x28] sm:$0xf]
    %v2094 = vld [vmem:[%s7 + $0x2c] sm:$0xf]
    %v2095 = vld [vmem:[%s7 + $0x30] sm:$0xf]
    %v2096 = vld [vmem:[%s7 + $0x34] sm:$0xf]
    %v2097 = vld [vmem:[%s7 + $0x38] sm:$0xf]
    %v2098 = vld [vmem:[%s7 + $0x3c] sm:$0xf]
    %v2099 = vld [vmem:[%s8] sm:$0x1]
    %v2101 = vlaneseq
    %v2102 = vshrl.u32 %v2101, 7
    %v2103 = vsub.s32 0, %v2102
    %v2104 = vrot.slane %v2099, %v2103
    %v2122 = vunpack.c.l.b16 %v2083
    %v2123 = vunpack.c.l.b16 %v2084
    %v2124 = vunpack.c.l.b16 %v2085
    %v2125 = vunpack.c.l.b16 %v2086
    %v2126 = vunpack.c.l.b16 %v2087
    %v2127 = vunpack.c.l.b16 %v2088
    %v2128 = vunpack.c.l.b16 %v2089
    %v2129 = vunpack.c.l.b16 %v2090
    %v2130 = vunpack.c.l.b16 %v2091
    %v2131 = vunpack.c.l.b16 %v2092
    %v2132 = vunpack.c.l.b16 %v2093
    %v2133 = vunpack.c.l.b16 %v2094
    %v2134 = vunpack.c.l.b16 %v2095
    %v2135 = vunpack.c.l.b16 %v2096
    %v2136 = vunpack.c.l.b16 %v2097
    %v2137 = vunpack.c.l.b16 %v2098
    %v2138 = vpack.c.b16 %v2123, %v2122
    %v2139 = vpack.c.b16 %v2125, %v2124
    %v2140 = vpack.c.b16 %v2127, %v2126
    %v2141 = vpack.c.b16 %v2129, %v2128
    %v2142 = vpack.c.b16 %v2131, %v2130
    %v2143 = vpack.c.b16 %v2133, %v2132
    %v2144 = vpack.c.b16 %v2135, %v2134
    %v2145 = vpack.c.b16 %v2137, %v2136
    %2154 = vmatprep.subr.bf16.mxu0 0
    %2155 = vmatpush1.bf16.msra.mxu0 %v2138
    %2156 = vmatprep.subr.bf16.mxu0 0
    %2157 = vmatpush1.bf16.msra.mxu0 %v2139
    %2158 = vmatprep.subr.bf16.mxu0 0
    %2159 = vmatpush1.bf16.msra.mxu0 %v2140
    %2160 = vmatprep.subr.bf16.mxu0 0
    %2161 = vmatpush1.bf16.msra.mxu0 %v2141
    %2162 = vmatprep.subr.bf16.mxu0 0
    %2163 = vmatpush1.bf16.msra.mxu0 %v2142
    %2164 = vmatprep.subr.bf16.mxu0 0
    %2165 = vmatpush1.bf16.msra.mxu0 %v2143
    %2166 = vmatprep.subr.bf16.mxu0 0
    %2167 = vmatpush1.bf16.msra.mxu0 %v2144
    %2168 = vmatprep.subr.bf16.mxu0 0
    %2169 = vmatpush1.bf16.msra.mxu0 %v2145
    %2170 = vmatprep.subr.bf16.mxu0 0
    %2171 = vmatpush1.bf16.msra.mxu0 0
    %2172 = vmatprep.subr.bf16.mxu0 0
    %2173 = vmatpush1.bf16.msra.mxu0 0
    %2174 = vmatprep.subr.bf16.mxu0 0
    %2175 = vmatpush1.bf16.msra.mxu0 0
    %2176 = vmatprep.subr.bf16.mxu0 0
    %2177 = vmatpush1.bf16.msra.mxu0 0
    %2178 = vmatprep.subr.bf16.mxu0 0
    %2179 = vmatpush1.bf16.msra.mxu0 0
    %2180 = vmatprep.subr.bf16.mxu0 0
    %2181 = vmatpush1.bf16.msra.mxu0 0
    %2182 = vmatprep.subr.bf16.mxu0 0
    %2183 = vmatpush1.bf16.msra.mxu0 0
    %2184 = vmatprep.subr.bf16.mxu0 0
    %2185 = vmatpush1.bf16.msra.mxu0 0
    %2186 = vmatprep.mubr.bf16.mxu0 0
    %2187 = vmatmul.mubr.bf16.gmra.mrb[0].mxu0 %v2051
    %v2188 = vpop.f32.mrb[0].mxu0
    %v2189 = vadd.f32 %v2104, %v2188
    %v2190 = vpop.f32.mrb[0].mxu0
    %v2191 = vpop.f32.mrb[0].mxu0
    %v2192 = vadd.f32 %v2104, %v2191
    %v2193 = vpop.f32.mrb[0].mxu0
    %2194 = vmatprep.mubr.bf16.mxu0 0
    %2195 = vmatmul.mubr.bf16.gmra.mrb[0].mxu0 %v2052
    %v2196 = vpop.f32.mrb[0].mxu0
    %v2197 = vadd.f32 %v2104, %v2196
    %v2198 = vpop.f32.mrb[0].mxu0
    %v2199 = vpop.f32.mrb[0].mxu0
    %v2200 = vadd.f32 %v2104, %v2199
    %v2201 = vpop.f32.mrb[0].mxu0
    %2202 = vmatprep.mubr.bf16.mxu0 0
    %2203 = vmatmul.mubr.bf16.gmra.mrb[0].mxu0 %v2053
    %v2204 = vpop.f32.mrb[0].mxu0
    %v2205 = vadd.f32 %v2104, %v2204
    %v2206 = vpop.f32.mrb[0].mxu0
    %v2207 = vpop.f32.mrb[0].mxu0
    %v2208 = vadd.f32 %v2104, %v2207
    %v2209 = vpop.f32.mrb[0].mxu0
    %2210 = vmatprep.mubr.bf16.mxu0 0
    %2211 = vmatmul.mubr.bf16.gmra.mrb[0].mxu0 %v2054
    %v2212 = vpop.f32.mrb[0].mxu0
    %v2213 = vadd.f32 %v2104, %v2212
    %v2214 = vpop.f32.mrb[0].mxu0
    %v2215 = vpop.f32.mrb[0].mxu0
    %v2216 = vadd.f32 %v2104, %v2215
    %v2217 = vpop.f32.mrb[0].mxu0
    %2218 = vmatprep.mubr.bf16.mxu0 0
    %2219 = vmatmul.mubr.bf16.gmra.mrb[0].mxu0 %v2055
    %v2220 = vpop.f32.mrb[0].mxu0
    %v2221 = vadd.f32 %v2104, %v2220
    %v2222 = vpop.f32.mrb[0].mxu0
    %v2223 = vpop.f32.mrb[0].mxu0
    %v2224 = vadd.f32 %v2104, %v2223
    %v2225 = vpop.f32.mrb[0].mxu0
    %2226 = vmatprep.mubr.bf16.mxu0 0
    %2227 = vmatmul.mubr.bf16.gmra.mrb[0].mxu0 %v2056
    %v2228 = vpop.f32.mrb[0].mxu0
    %v2229 = vadd.f32 %v2104, %v2228
    %v2230 = vpop.f32.mrb[0].mxu0
    %v2231 = vpop.f32.mrb[0].mxu0
    %v2232 = vadd.f32 %v2104, %v2231
    %v2233 = vpop.f32.mrb[0].mxu0
    %2234 = vmatprep.mubr.bf16.mxu0 0
    %2235 = vmatmul.mubr.bf16.gmra.mrb[0].mxu0 %v2057
    %v2236 = vpop.f32.mrb[0].mxu0
    %v2237 = vadd.f32 %v2104, %v2236
    %v2238 = vpop.f32.mrb[0].mxu0
    %v2239 = vpop.f32.mrb[0].mxu0
    %v2240 = vadd.f32 %v2104, %v2239
    %v2241 = vpop.f32.mrb[0].mxu0
    %2242 = vmatprep.mubr.bf16.mxu0 0
    %2243 = vmatmul.mubr.bf16.gmra.mrb[0].mxu0 %v2058
    %v2244 = vpop.f32.mrb[0].mxu0
    %v2245 = vadd.f32 %v2104, %v2244
    %v2246 = vpop.f32.mrb[0].mxu0
    %v2247 = vpop.f32.mrb[0].mxu0
    %v2248 = vadd.f32 %v2104, %v2247
    %v2249 = vpop.f32.mrb[0].mxu0
    %2250 = vmatprep.mubr.bf16.mxu0 0
    %2251 = vmatmul.mubr.bf16.gmra.mrb[0].mxu0 %v2059
    %v2252 = vpop.f32.mrb[0].mxu0
    %v2253 = vadd.f32 %v2104, %v2252
    %v2254 = vpop.f32.mrb[0].mxu0
    %v2255 = vpop.f32.mrb[0].mxu0
    %v2256 = vadd.f32 %v2104, %v2255
    %v2257 = vpop.f32.mrb[0].mxu0
    %2258 = vmatprep.mubr.bf16.mxu0 0
    %2259 = vmatmul.mubr.bf16.gmra.mrb[0].mxu0 %v2060
    %v2260 = vpop.f32.mrb[0].mxu0
    %v2261 = vadd.f32 %v2104, %v2260
    %v2262 = vpop.f32.mrb[0].mxu0
    %v2263 = vpop.f32.mrb[0].mxu0
    %v2264 = vadd.f32 %v2104, %v2263
    %v2265 = vpop.f32.mrb[0].mxu0
    %2266 = vmatprep.mubr.bf16.mxu0 0
    %2267 = vmatmul.mubr.bf16.gmra.mrb[0].mxu0 %v2061
    %v2268 = vpop.f32.mrb[0].mxu0
    %v2269 = vadd.f32 %v2104, %v2268
    %v2270 = vpop.f32.mrb[0].mxu0
    %v2271 = vpop.f32.mrb[0].mxu0
    %v2272 = vadd.f32 %v2104, %v2271
    %v2273 = vpop.f32.mrb[0].mxu0
    %2274 = vmatprep.mubr.bf16.mxu0 0
    %2275 = vmatmul.mubr.bf16.gmra.mrb[0].mxu0 %v2062
    %v2276 = vpop.f32.mrb[0].mxu0
    %v2277 = vadd.f32 %v2104, %v2276
    %v2278 = vpop.f32.mrb[0].mxu0
    %v2279 = vpop.f32.mrb[0].mxu0
    %v2280 = vadd.f32 %v2104, %v2279
    %v2281 = vpop.f32.mrb[0].mxu0
    %2282 = vmatprep.mubr.bf16.mxu0 0
    %2283 = vmatmul.mubr.bf16.gmra.mrb[0].mxu0 %v2063
    %v2284 = vpop.f32.mrb[0].mxu0
    %v2285 = vadd.f32 %v2104, %v2284
    %v2286 = vpop.f32.mrb[0].mxu0
    %v2287 = vpop.f32.mrb[0].mxu0
    %v2288 = vadd.f32 %v2104, %v2287
    %v2289 = vpop.f32.mrb[0].mxu0
    %2290 = vmatprep.mubr.bf16.mxu0 0
    %2291 = vmatmul.mubr.bf16.gmra.mrb[0].mxu0 %v2064
    %v2292 = vpop.f32.mrb[0].mxu0
    %v2293 = vadd.f32 %v2104, %v2292
    %v2294 = vpop.f32.mrb[0].mxu0
    %v2295 = vpop.f32.mrb[0].mxu0
    %v2296 = vadd.f32 %v2104, %v2295
    %v2297 = vpop.f32.mrb[0].mxu0
    %2298 = vmatprep.mubr.bf16.mxu0 0
    %2299 = vmatmul.mubr.bf16.gmra.mrb[0].mxu0 %v2065
    %v2300 = vpop.f32.mrb[0].mxu0
    %v2301 = vadd.f32 %v2104, %v2300
    %v2302 = vpop.f32.mrb[0].mxu0
    %v2303 = vpop.f32.mrb[0].mxu0
    %v2304 = vadd.f32 %v2104, %v2303
    %v2305 = vpop.f32.mrb[0].mxu0
    %2306 = vmatprep.mubr.bf16.mxu0 0
    %2307 = vmatmul.mubr.bf16.gmra.mrb[0].mxu0 %v2066
    %v2308 = vpop.f32.mrb[0].mxu0
    %v2309 = vadd.f32 %v2104, %v2308
    %v2310 = vpop.f32.mrb[0].mxu0
    %v2311 = vpop.f32.mrb[0].mxu0
    %v2312 = vadd.f32 %v2104, %v2311
    %v2313 = vpop.f32.mrb[0].mxu0
    %2314 = vmatprep.mubr.bf16.mxu0 0
    %2315 = vmatmul.mubr.bf16.gmra.mrb[0].mxu0 %v2067
    %v2316 = vpop.f32.mrb[0].mxu0
    %v2317 = vadd.f32 %v2104, %v2316
    %v2318 = vpop.f32.mrb[0].mxu0
    %v2319 = vpop.f32.mrb[0].mxu0
    %v2320 = vadd.f32 %v2104, %v2319
    %v2321 = vpop.f32.mrb[0].mxu0
    %2322 = vmatprep.mubr.bf16.mxu0 0
    %2323 = vmatmul.mubr.bf16.gmra.mrb[0].mxu0 %v2068
    %v2324 = vpop.f32.mrb[0].mxu0
    %v2325 = vadd.f32 %v2104, %v2324
    %v2326 = vpop.f32.mrb[0].mxu0
    %v2327 = vpop.f32.mrb[0].mxu0
    %v2328 = vadd.f32 %v2104, %v2327
    %v2329 = vpop.f32.mrb[0].mxu0
    %2330 = vmatprep.mubr.bf16.mxu0 0
    %2331 = vmatmul.mubr.bf16.gmra.mrb[0].mxu0 %v2069
    %v2332 = vpop.f32.mrb[0].mxu0
    %v2333 = vadd.f32 %v2104, %v2332
    %v2334 = vpop.f32.mrb[0].mxu0
    %v2335 = vpop.f32.mrb[0].mxu0
    %v2336 = vadd.f32 %v2104, %v2335
    %v2337 = vpop.f32.mrb[0].mxu0
    %2338 = vmatprep.mubr.bf16.mxu0 0
    %2339 = vmatmul.mubr.bf16.gmra.mrb[0].mxu0 %v2070
    %v2340 = vpop.f32.mrb[0].mxu0
    %v2341 = vadd.f32 %v2104, %v2340
    %v2342 = vpop.f32.mrb[0].mxu0
    %v2343 = vpop.f32.mrb[0].mxu0
    %v2344 = vadd.f32 %v2104, %v2343
    %v2345 = vpop.f32.mrb[0].mxu0
    %2346 = vmatprep.mubr.bf16.mxu0 0
    %2347 = vmatmul.mubr.bf16.gmra.mrb[0].mxu0 %v2071
    %v2348 = vpop.f32.mrb[0].mxu0
    %v2349 = vadd.f32 %v2104, %v2348
    %v2350 = vpop.f32.mrb[0].mxu0
    %v2351 = vpop.f32.mrb[0].mxu0
    %v2352 = vadd.f32 %v2104, %v2351
    %v2353 = vpop.f32.mrb[0].mxu0
    %2354 = vmatprep.mubr.bf16.mxu0 0
    %2355 = vmatmul.mubr.bf16.gmra.mrb[0].mxu0 %v2072
    %v2356 = vpop.f32.mrb[0].mxu0
    %v2357 = vadd.f32 %v2104, %v2356
    %v2358 = vpop.f32.mrb[0].mxu0
    %v2359 = vpop.f32.mrb[0].mxu0
    %v2360 = vadd.f32 %v2104, %v2359
    %v2361 = vpop.f32.mrb[0].mxu0
    %2362 = vmatprep.mubr.bf16.mxu0 0
    %2363 = vmatmul.mubr.bf16.gmra.mrb[0].mxu0 %v2073
    %v2364 = vpop.f32.mrb[0].mxu0
    %v2365 = vadd.f32 %v2104, %v2364
    %v2366 = vpop.f32.mrb[0].mxu0
    %v2367 = vpop.f32.mrb[0].mxu0
    %v2368 = vadd.f32 %v2104, %v2367
    %v2369 = vpop.f32.mrb[0].mxu0
    %2370 = vmatprep.mubr.bf16.mxu0 0
    %2371 = vmatmul.mubr.bf16.gmra.mrb[0].mxu0 %v2074
    %v2372 = vpop.f32.mrb[0].mxu0
    %v2373 = vadd.f32 %v2104, %v2372
    %v2374 = vpop.f32.mrb[0].mxu0
    %v2375 = vpop.f32.mrb[0].mxu0
    %v2376 = vadd.f32 %v2104, %v2375
    %v2377 = vpop.f32.mrb[0].mxu0
    %2378 = vmatprep.mubr.bf16.mxu0 0
    %2379 = vmatmul.mubr.bf16.gmra.mrb[0].mxu0 %v2075
    %v2380 = vpop.f32.mrb[0].mxu0
    %v2381 = vadd.f32 %v2104, %v2380
    %v2382 = vpop.f32.mrb[0].mxu0
    %v2383 = vpop.f32.mrb[0].mxu0
    %v2384 = vadd.f32 %v2104, %v2383
    %v2385 = vpop.f32.mrb[0].mxu0
    %2386 = vmatprep.mubr.bf16.mxu0 0
    %2387 = vmatmul.mubr.bf16.gmra.mrb[0].mxu0 %v2076
    %v2388 = vpop.f32.mrb[0].mxu0
    %v2389 = vadd.f32 %v2104, %v2388
    %v2390 = vpop.f32.mrb[0].mxu0
    %v2391 = vpop.f32.mrb[0].mxu0
    %v2392 = vadd.f32 %v2104, %v2391
    %v2393 = vpop.f32.mrb[0].mxu0
    %2394 = vmatprep.mubr.bf16.mxu0 0
    %2395 = vmatmul.mubr.bf16.gmra.mrb[0].mxu0 %v2077
    %v2396 = vpop.f32.mrb[0].mxu0
    %v2397 = vadd.f32 %v2104, %v2396
    %v2398 = vpop.f32.mrb[0].mxu0
    %v2399 = vpop.f32.mrb[0].mxu0
    %v2400 = vadd.f32 %v2104, %v2399
    %v2401 = vpop.f32.mrb[0].mxu0
    %2402 = vmatprep.mubr.bf16.mxu0 0
    %2403 = vmatmul.mubr.bf16.gmra.mrb[0].mxu0 %v2078
    %v2404 = vpop.f32.mrb[0].mxu0
    %v2405 = vadd.f32 %v2104, %v2404
    %v2406 = vpop.f32.mrb[0].mxu0
    %v2407 = vpop.f32.mrb[0].mxu0
    %v2408 = vadd.f32 %v2104, %v2407
    %v2409 = vpop.f32.mrb[0].mxu0
    %2410 = vmatprep.mubr.bf16.mxu0 0
    %2411 = vmatmul.mubr.bf16.gmra.mrb[0].mxu0 %v2079
    %v2412 = vpop.f32.mrb[0].mxu0
    %v2413 = vadd.f32 %v2104, %v2412
    %v2414 = vpop.f32.mrb[0].mxu0
    %v2415 = vpop.f32.mrb[0].mxu0
    %v2416 = vadd.f32 %v2104, %v2415
    %v2417 = vpop.f32.mrb[0].mxu0
    %2418 = vmatprep.mubr.bf16.mxu0 0
    %2419 = vmatmul.mubr.bf16.gmra.mrb[0].mxu0 %v2080
    %v2420 = vpop.f32.mrb[0].mxu0
    %v2421 = vadd.f32 %v2104, %v2420
    %v2422 = vpop.f32.mrb[0].mxu0
    %v2423 = vpop.f32.mrb[0].mxu0
    %v2424 = vadd.f32 %v2104, %v2423
    %v2425 = vpop.f32.mrb[0].mxu0
    %2426 = vmatprep.mubr.bf16.mxu0 0
    %2427 = vmatmul.mubr.bf16.gmra.mrb[0].mxu0 %v2081
    %v2428 = vpop.f32.mrb[0].mxu0
    %v2429 = vadd.f32 %v2104, %v2428
    %v2430 = vpop.f32.mrb[0].mxu0
    %v2431 = vpop.f32.mrb[0].mxu0
    %v2432 = vadd.f32 %v2104, %v2431
    %v2433 = vpop.f32.mrb[0].mxu0
    %2434 = vmatprep.mubr.bf16.mxu0 0
    %2435 = vmatmul.mubr.bf16.gmra.mrb[0].mxu0 %v2082
    %v2436 = vpop.f32.mrb[0].mxu0
    %v2437 = vadd.f32 %v2104, %v2436
    %v2438 = vpop.f32.mrb[0].mxu0
    %v2439 = vpop.f32.mrb[0].mxu0
    %v2440 = vadd.f32 %v2104, %v2439
    %v2441 = vpop.f32.mrb[0].mxu0
    %2442 = vdwg.mxu0
    %v2443 = vmax.f32 %v2189, 0.0
    %v2444 = vmax.f32 %v2192, 0.0
    %v2445 = vmax.f32 %v2197, 0.0
    %v2446 = vmax.f32 %v2200, 0.0
    %v2447 = vmax.f32 %v2205, 0.0
    %v2448 = vmax.f32 %v2208, 0.0
    %v2449 = vmax.f32 %v2213, 0.0
    %v2450 = vmax.f32 %v2216, 0.0
    %v2451 = vmax.f32 %v2221, 0.0
    %v2452 = vmax.f32 %v2224, 0.0
    %v2453 = vmax.f32 %v2229, 0.0
    %v2454 = vmax.f32 %v2232, 0.0
    %v2455 = vmax.f32 %v2237, 0.0
    %v2456 = vmax.f32 %v2240, 0.0
    %v2457 = vmax.f32 %v2245, 0.0
    %v2458 = vmax.f32 %v2248, 0.0
    %v2459 = vmax.f32 %v2253, 0.0
    %v2460 = vmax.f32 %v2256, 0.0
    %v2461 = vmax.f32 %v2261, 0.0
    %v2462 = vmax.f32 %v2264, 0.0
    %v2463 = vmax.f32 %v2269, 0.0
    %v2464 = vmax.f32 %v2272, 0.0
    %v2465 = vmax.f32 %v2277, 0.0
    %v2466 = vmax.f32 %v2280, 0.0
    %v2467 = vmax.f32 %v2285, 0.0
    %v2468 = vmax.f32 %v2288, 0.0
    %v2469 = vmax.f32 %v2293, 0.0
    %v2470 = vmax.f32 %v2296, 0.0
    %v2471 = vmax.f32 %v2301, 0.0
    %v2472 = vmax.f32 %v2304, 0.0
    %v2473 = vmax.f32 %v2309, 0.0
    %v2474 = vmax.f32 %v2312, 0.0
    %v2475 = vmax.f32 %v2317, 0.0
    %v2476 = vmax.f32 %v2320, 0.0
    %v2477 = vmax.f32 %v2325, 0.0
    %v2478 = vmax.f32 %v2328, 0.0
    %v2479 = vmax.f32 %v2333, 0.0
    %v2480 = vmax.f32 %v2336, 0.0
    %v2481 = vmax.f32 %v2341, 0.0
    %v2482 = vmax.f32 %v2344, 0.0
    %v2483 = vmax.f32 %v2349, 0.0
    %v2484 = vmax.f32 %v2352, 0.0
    %v2485 = vmax.f32 %v2357, 0.0
    %v2486 = vmax.f32 %v2360, 0.0
    %v2487 = vmax.f32 %v2365, 0.0
    %v2488 = vmax.f32 %v2368, 0.0
    %v2489 = vmax.f32 %v2373, 0.0
    %v2490 = vmax.f32 %v2376, 0.0
    %v2491 = vmax.f32 %v2381, 0.0
    %v2492 = vmax.f32 %v2384, 0.0
    %v2493 = vmax.f32 %v2389, 0.0
    %v2494 = vmax.f32 %v2392, 0.0
    %v2495 = vmax.f32 %v2397, 0.0
    %v2496 = vmax.f32 %v2400, 0.0
    %v2497 = vmax.f32 %v2405, 0.0
    %v2498 = vmax.f32 %v2408, 0.0
    %v2499 = vmax.f32 %v2413, 0.0
    %v2500 = vmax.f32 %v2416, 0.0
    %v2501 = vmax.f32 %v2421, 0.0
    %v2502 = vmax.f32 %v2424, 0.0
    %v2503 = vmax.f32 %v2429, 0.0
    %v2504 = vmax.f32 %v2432, 0.0
    %v2505 = vmax.f32 %v2437, 0.0
    %v2506 = vmax.f32 %v2440, 0.0
    %v2507 = vpack.c.bf16 %v2444, %v2443
    %v2508 = vpack.c.bf16 %v2446, %v2445
    %v2509 = vpack.c.bf16 %v2448, %v2447
    %v2510 = vpack.c.bf16 %v2450, %v2449
    %v2511 = vpack.c.bf16 %v2452, %v2451
    %v2512 = vpack.c.bf16 %v2454, %v2453
    %v2513 = vpack.c.bf16 %v2456, %v2455
    %v2514 = vpack.c.bf16 %v2458, %v2457
    %v2515 = vpack.c.bf16 %v2460, %v2459
    %v2516 = vpack.c.bf16 %v2462, %v2461
    %v2517 = vpack.c.bf16 %v2464, %v2463
    %v2518 = vpack.c.bf16 %v2466, %v2465
    %v2519 = vpack.c.bf16 %v2468, %v2467
    %v2520 = vpack.c.bf16 %v2470, %v2469
    %v2521 = vpack.c.bf16 %v2472, %v2471
    %v2522 = vpack.c.bf16 %v2474, %v2473
    %v2523 = vpack.c.bf16 %v2476, %v2475
    %v2524 = vpack.c.bf16 %v2478, %v2477
    %v2525 = vpack.c.bf16 %v2480, %v2479
    %v2526 = vpack.c.bf16 %v2482, %v2481
    %v2527 = vpack.c.bf16 %v2484, %v2483
    %v2528 = vpack.c.bf16 %v2486, %v2485
    %v2529 = vpack.c.bf16 %v2488, %v2487
    %v2530 = vpack.c.bf16 %v2490, %v2489
    %v2531 = vpack.c.bf16 %v2492, %v2491
    %v2532 = vpack.c.bf16 %v2494, %v2493
    %v2533 = vpack.c.bf16 %v2496, %v2495
    %v2534 = vpack.c.bf16 %v2498, %v2497
    %v2535 = vpack.c.bf16 %v2500, %v2499
    %v2536 = vpack.c.bf16 %v2502, %v2501
    %v2537 = vpack.c.bf16 %v2504, %v2503
    %v2538 = vpack.c.bf16 %v2506, %v2505
    %v2539 = vld [vmem:[%s9] sm:$0xf]
    %v2540 = vld [vmem:[%s9 + $0x4] sm:$0xf]
    %v2541 = vld [vmem:[%s9 + $0x8] sm:$0xf]
    %v2542 = vld [vmem:[%s9 + $0xc] sm:$0xf]
    %v2543 = vld [vmem:[%s9 + $0x10] sm:$0xf]
    %v2544 = vld [vmem:[%s9 + $0x14] sm:$0xf]
    %v2545 = vld [vmem:[%s9 + $0x18] sm:$0xf]
    %v2546 = vld [vmem:[%s9 + $0x1c] sm:$0xf]
    %v2547 = vld [vmem:[%s9 + $0x20] sm:$0xf]
    %v2548 = vld [vmem:[%s9 + $0x24] sm:$0xf]
    %v2549 = vld [vmem:[%s9 + $0x28] sm:$0xf]
    %v2550 = vld [vmem:[%s9 + $0x2c] sm:$0xf]
    %v2551 = vld [vmem:[%s9 + $0x30] sm:$0xf]
    %v2552 = vld [vmem:[%s9 + $0x34] sm:$0xf]
    %v2553 = vld [vmem:[%s9 + $0x38] sm:$0xf]
    %v2554 = vld [vmem:[%s9 + $0x3c] sm:$0xf]
    %v2555 = vld [vmem:[%s10] sm:$0x1]
    %v2557 = vlaneseq
    %v2558 = vshrl.u32 %v2557, 7
    %v2559 = vsub.s32 0, %v2558
    %v2560 = vrot.slane %v2555, %v2559
    %v2578 = vunpack.c.l.b16 %v2539
    %v2579 = vunpack.c.l.b16 %v2540
    %v2580 = vunpack.c.l.b16 %v2541
    %v2581 = vunpack.c.l.b16 %v2542
    %v2582 = vunpack.c.l.b16 %v2543
    %v2583 = vunpack.c.l.b16 %v2544
    %v2584 = vunpack.c.l.b16 %v2545
    %v2585 = vunpack.c.l.b16 %v2546
    %v2586 = vunpack.c.l.b16 %v2547
    %v2587 = vunpack.c.l.b16 %v2548
    %v2588 = vunpack.c.l.b16 %v2549
    %v2589 = vunpack.c.l.b16 %v2550
    %v2590 = vunpack.c.l.b16 %v2551
    %v2591 = vunpack.c.l.b16 %v2552
    %v2592 = vunpack.c.l.b16 %v2553
    %v2593 = vunpack.c.l.b16 %v2554
    %v2594 = vpack.c.b16 %v2579, %v2578
    %v2595 = vpack.c.b16 %v2581, %v2580
    %v2596 = vpack.c.b16 %v2583, %v2582
    %v2597 = vpack.c.b16 %v2585, %v2584
    %v2598 = vpack.c.b16 %v2587, %v2586
    %v2599 = vpack.c.b16 %v2589, %v2588
    %v2600 = vpack.c.b16 %v2591, %v2590
    %v2601 = vpack.c.b16 %v2593, %v2592
    %2610 = vmatprep.subr.bf16.mxu0 0
    %2611 = vmatpush1.bf16.msra.mxu0 %v2594
    %2612 = vmatprep.subr.bf16.mxu0 0
    %2613 = vmatpush1.bf16.msra.mxu0 %v2595
    %2614 = vmatprep.subr.bf16.mxu0 0
    %2615 = vmatpush1.bf16.msra.mxu0 %v2596
    %2616 = vmatprep.subr.bf16.mxu0 0
    %2617 = vmatpush1.bf16.msra.mxu0 %v2597
    %2618 = vmatprep.subr.bf16.mxu0 0
    %2619 = vmatpush1.bf16.msra.mxu0 %v2598
    %2620 = vmatprep.subr.bf16.mxu0 0
    %2621 = vmatpush1.bf16.msra.mxu0 %v2599
    %2622 = vmatprep.subr.bf16.mxu0 0
    %2623 = vmatpush1.bf16.msra.mxu0 %v2600
    %2624 = vmatprep.subr.bf16.mxu0 0
    %2625 = vmatpush1.bf16.msra.mxu0 %v2601
    %2626 = vmatprep.subr.bf16.mxu0 0
    %2627 = vmatpush1.bf16.msra.mxu0 0
    %2628 = vmatprep.subr.bf16.mxu0 0
    %2629 = vmatpush1.bf16.msra.mxu0 0
    %2630 = vmatprep.subr.bf16.mxu0 0
    %2631 = vmatpush1.bf16.msra.mxu0 0
    %2632 = vmatprep.subr.bf16.mxu0 0
    %2633 = vmatpush1.bf16.msra.mxu0 0
    %2634 = vmatprep.subr.bf16.mxu0 0
    %2635 = vmatpush1.bf16.msra.mxu0 0
    %2636 = vmatprep.subr.bf16.mxu0 0
    %2637 = vmatpush1.bf16.msra.mxu0 0
    %2638 = vmatprep.subr.bf16.mxu0 0
    %2639 = vmatpush1.bf16.msra.mxu0 0
    %2640 = vmatprep.subr.bf16.mxu0 0
    %2641 = vmatpush1.bf16.msra.mxu0 0
    %2642 = vmatprep.mubr.bf16.mxu0 0
    %2643 = vmatmul.mubr.bf16.gmra.mrb[0].mxu0 %v2507
    %v2644 = vpop.f32.mrb[0].mxu0
    %v2645 = vadd.f32 %v2560, %v2644
    %v2646 = vpop.f32.mrb[0].mxu0
    %v2647 = vpop.f32.mrb[0].mxu0
    %v2648 = vadd.f32 %v2560, %v2647
    %v2649 = vpop.f32.mrb[0].mxu0
    %2650 = vmatprep.mubr.bf16.mxu0 0
    %2651 = vmatmul.mubr.bf16.gmra.mrb[0].mxu0 %v2508
    %v2652 = vpop.f32.mrb[0].mxu0
    %v2653 = vadd.f32 %v2560, %v2652
    %v2654 = vpop.f32.mrb[0].mxu0
    %v2655 = vpop.f32.mrb[0].mxu0
    %v2656 = vadd.f32 %v2560, %v2655
    %v2657 = vpop.f32.mrb[0].mxu0
    %2658 = vmatprep.mubr.bf16.mxu0 0
    %2659 = vmatmul.mubr.bf16.gmra.mrb[0].mxu0 %v2509
    %v2660 = vpop.f32.mrb[0].mxu0
    %v2661 = vadd.f32 %v2560, %v2660
    %v2662 = vpop.f32.mrb[0].mxu0
    %v2663 = vpop.f32.mrb[0].mxu0
    %v2664 = vadd.f32 %v2560, %v2663
    %v2665 = vpop.f32.mrb[0].mxu0
    %2666 = vmatprep.mubr.bf16.mxu0 0
    %2667 = vmatmul.mubr.bf16.gmra.mrb[0].mxu0 %v2510
    %v2668 = vpop.f32.mrb[0].mxu0
    %v2669 = vadd.f32 %v2560, %v2668
    %v2670 = vpop.f32.mrb[0].mxu0
    %v2671 = vpop.f32.mrb[0].mxu0
    %v2672 = vadd.f32 %v2560, %v2671
    %v2673 = vpop.f32.mrb[0].mxu0
    %2674 = vmatprep.mubr.bf16.mxu0 0
    %2675 = vmatmul.mubr.bf16.gmra.mrb[0].mxu0 %v2511
    %v2676 = vpop.f32.mrb[0].mxu0
    %v2677 = vadd.f32 %v2560, %v2676
    %v2678 = vpop.f32.mrb[0].mxu0
    %v2679 = vpop.f32.mrb[0].mxu0
    %v2680 = vadd.f32 %v2560, %v2679
    %v2681 = vpop.f32.mrb[0].mxu0
    %2682 = vmatprep.mubr.bf16.mxu0 0
    %2683 = vmatmul.mubr.bf16.gmra.mrb[0].mxu0 %v2512
    %v2684 = vpop.f32.mrb[0].mxu0
    %v2685 = vadd.f32 %v2560, %v2684
    %v2686 = vpop.f32.mrb[0].mxu0
    %v2687 = vpop.f32.mrb[0].mxu0
    %v2688 = vadd.f32 %v2560, %v2687
    %v2689 = vpop.f32.mrb[0].mxu0
    %2690 = vmatprep.mubr.bf16.mxu0 0
    %2691 = vmatmul.mubr.bf16.gmra.mrb[0].mxu0 %v2513
    %v2692 = vpop.f32.mrb[0].mxu0
    %v2693 = vadd.f32 %v2560, %v2692
    %v2694 = vpop.f32.mrb[0].mxu0
    %v2695 = vpop.f32.mrb[0].mxu0
    %v2696 = vadd.f32 %v2560, %v2695
    %v2697 = vpop.f32.mrb[0].mxu0
    %2698 = vmatprep.mubr.bf16.mxu0 0
    %2699 = vmatmul.mubr.bf16.gmra.mrb[0].mxu0 %v2514
    %v2700 = vpop.f32.mrb[0].mxu0
    %v2701 = vadd.f32 %v2560, %v2700
    %v2702 = vpop.f32.mrb[0].mxu0
    %v2703 = vpop.f32.mrb[0].mxu0
    %v2704 = vadd.f32 %v2560, %v2703
    %v2705 = vpop.f32.mrb[0].mxu0
    %2706 = vmatprep.mubr.bf16.mxu0 0
    %2707 = vmatmul.mubr.bf16.gmra.mrb[0].mxu0 %v2515
    %v2708 = vpop.f32.mrb[0].mxu0
    %v2709 = vadd.f32 %v2560, %v2708
    %v2710 = vpop.f32.mrb[0].mxu0
    %v2711 = vpop.f32.mrb[0].mxu0
    %v2712 = vadd.f32 %v2560, %v2711
    %v2713 = vpop.f32.mrb[0].mxu0
    %2714 = vmatprep.mubr.bf16.mxu0 0
    %2715 = vmatmul.mubr.bf16.gmra.mrb[0].mxu0 %v2516
    %v2716 = vpop.f32.mrb[0].mxu0
    %v2717 = vadd.f32 %v2560, %v2716
    %v2718 = vpop.f32.mrb[0].mxu0
    %v2719 = vpop.f32.mrb[0].mxu0
    %v2720 = vadd.f32 %v2560, %v2719
    %v2721 = vpop.f32.mrb[0].mxu0
    %2722 = vmatprep.mubr.bf16.mxu0 0
    %2723 = vmatmul.mubr.bf16.gmra.mrb[0].mxu0 %v2517
    %v2724 = vpop.f32.mrb[0].mxu0
    %v2725 = vadd.f32 %v2560, %v2724
    %v2726 = vpop.f32.mrb[0].mxu0
    %v2727 = vpop.f32.mrb[0].mxu0
    %v2728 = vadd.f32 %v2560, %v2727
    %v2729 = vpop.f32.mrb[0].mxu0
    %2730 = vmatprep.mubr.bf16.mxu0 0
    %2731 = vmatmul.mubr.bf16.gmra.mrb[0].mxu0 %v2518
    %v2732 = vpop.f32.mrb[0].mxu0
    %v2733 = vadd.f32 %v2560, %v2732
    %v2734 = vpop.f32.mrb[0].mxu0
    %v2735 = vpop.f32.mrb[0].mxu0
    %v2736 = vadd.f32 %v2560, %v2735
    %v2737 = vpop.f32.mrb[0].mxu0
    %2738 = vmatprep.mubr.bf16.mxu0 0
    %2739 = vmatmul.mubr.bf16.gmra.mrb[0].mxu0 %v2519
    %v2740 = vpop.f32.mrb[0].mxu0
    %v2741 = vadd.f32 %v2560, %v2740
    %v2742 = vpop.f32.mrb[0].mxu0
    %v2743 = vpop.f32.mrb[0].mxu0
    %v2744 = vadd.f32 %v2560, %v2743
    %v2745 = vpop.f32.mrb[0].mxu0
    %2746 = vmatprep.mubr.bf16.mxu0 0
    %2747 = vmatmul.mubr.bf16.gmra.mrb[0].mxu0 %v2520
    %v2748 = vpop.f32.mrb[0].mxu0
    %v2749 = vadd.f32 %v2560, %v2748
    %v2750 = vpop.f32.mrb[0].mxu0
    %v2751 = vpop.f32.mrb[0].mxu0
    %v2752 = vadd.f32 %v2560, %v2751
    %v2753 = vpop.f32.mrb[0].mxu0
    %2754 = vmatprep.mubr.bf16.mxu0 0
    %2755 = vmatmul.mubr.bf16.gmra.mrb[0].mxu0 %v2521
    %v2756 = vpop.f32.mrb[0].mxu0
    %v2757 = vadd.f32 %v2560, %v2756
    %v2758 = vpop.f32.mrb[0].mxu0
    %v2759 = vpop.f32.mrb[0].mxu0
    %v2760 = vadd.f32 %v2560, %v2759
    %v2761 = vpop.f32.mrb[0].mxu0
    %2762 = vmatprep.mubr.bf16.mxu0 0
    %2763 = vmatmul.mubr.bf16.gmra.mrb[0].mxu0 %v2522
    %v2764 = vpop.f32.mrb[0].mxu0
    %v2765 = vadd.f32 %v2560, %v2764
    %v2766 = vpop.f32.mrb[0].mxu0
    %v2767 = vpop.f32.mrb[0].mxu0
    %v2768 = vadd.f32 %v2560, %v2767
    %v2769 = vpop.f32.mrb[0].mxu0
    %2770 = vmatprep.mubr.bf16.mxu0 0
    %2771 = vmatmul.mubr.bf16.gmra.mrb[0].mxu0 %v2523
    %v2772 = vpop.f32.mrb[0].mxu0
    %v2773 = vadd.f32 %v2560, %v2772
    %v2774 = vpop.f32.mrb[0].mxu0
    %v2775 = vpop.f32.mrb[0].mxu0
    %v2776 = vadd.f32 %v2560, %v2775
    %v2777 = vpop.f32.mrb[0].mxu0
    %2778 = vmatprep.mubr.bf16.mxu0 0
    %2779 = vmatmul.mubr.bf16.gmra.mrb[0].mxu0 %v2524
    %v2780 = vpop.f32.mrb[0].mxu0
    %v2781 = vadd.f32 %v2560, %v2780
    %v2782 = vpop.f32.mrb[0].mxu0
    %v2783 = vpop.f32.mrb[0].mxu0
    %v2784 = vadd.f32 %v2560, %v2783
    %v2785 = vpop.f32.mrb[0].mxu0
    %2786 = vmatprep.mubr.bf16.mxu0 0
    %2787 = vmatmul.mubr.bf16.gmra.mrb[0].mxu0 %v2525
    %v2788 = vpop.f32.mrb[0].mxu0
    %v2789 = vadd.f32 %v2560, %v2788
    %v2790 = vpop.f32.mrb[0].mxu0
    %v2791 = vpop.f32.mrb[0].mxu0
    %v2792 = vadd.f32 %v2560, %v2791
    %v2793 = vpop.f32.mrb[0].mxu0
    %2794 = vmatprep.mubr.bf16.mxu0 0
    %2795 = vmatmul.mubr.bf16.gmra.mrb[0].mxu0 %v2526
    %v2796 = vpop.f32.mrb[0].mxu0
    %v2797 = vadd.f32 %v2560, %v2796
    %v2798 = vpop.f32.mrb[0].mxu0
    %v2799 = vpop.f32.mrb[0].mxu0
    %v2800 = vadd.f32 %v2560, %v2799
    %v2801 = vpop.f32.mrb[0].mxu0
    %2802 = vmatprep.mubr.bf16.mxu0 0
    %2803 = vmatmul.mubr.bf16.gmra.mrb[0].mxu0 %v2527
    %v2804 = vpop.f32.mrb[0].mxu0
    %v2805 = vadd.f32 %v2560, %v2804
    %v2806 = vpop.f32.mrb[0].mxu0
    %v2807 = vpop.f32.mrb[0].mxu0
    %v2808 = vadd.f32 %v2560, %v2807
    %v2809 = vpop.f32.mrb[0].mxu0
    %2810 = vmatprep.mubr.bf16.mxu0 0
    %2811 = vmatmul.mubr.bf16.gmra.mrb[0].mxu0 %v2528
    %v2812 = vpop.f32.mrb[0].mxu0
    %v2813 = vadd.f32 %v2560, %v2812
    %v2814 = vpop.f32.mrb[0].mxu0
    %v2815 = vpop.f32.mrb[0].mxu0
    %v2816 = vadd.f32 %v2560, %v2815
    %v2817 = vpop.f32.mrb[0].mxu0
    %2818 = vmatprep.mubr.bf16.mxu0 0
    %2819 = vmatmul.mubr.bf16.gmra.mrb[0].mxu0 %v2529
    %v2820 = vpop.f32.mrb[0].mxu0
    %v2821 = vadd.f32 %v2560, %v2820
    %v2822 = vpop.f32.mrb[0].mxu0
    %v2823 = vpop.f32.mrb[0].mxu0
    %v2824 = vadd.f32 %v2560, %v2823
    %v2825 = vpop.f32.mrb[0].mxu0
    %2826 = vmatprep.mubr.bf16.mxu0 0
    %2827 = vmatmul.mubr.bf16.gmra.mrb[0].mxu0 %v2530
    %v2828 = vpop.f32.mrb[0].mxu0
    %v2829 = vadd.f32 %v2560, %v2828
    %v2830 = vpop.f32.mrb[0].mxu0
    %v2831 = vpop.f32.mrb[0].mxu0
    %v2832 = vadd.f32 %v2560, %v2831
    %v2833 = vpop.f32.mrb[0].mxu0
    %2834 = vmatprep.mubr.bf16.mxu0 0
    %2835 = vmatmul.mubr.bf16.gmra.mrb[0].mxu0 %v2531
    %v2836 = vpop.f32.mrb[0].mxu0
    %v2837 = vadd.f32 %v2560, %v2836
    %v2838 = vpop.f32.mrb[0].mxu0
    %v2839 = vpop.f32.mrb[0].mxu0
    %v2840 = vadd.f32 %v2560, %v2839
    %v2841 = vpop.f32.mrb[0].mxu0
    %2842 = vmatprep.mubr.bf16.mxu0 0
    %2843 = vmatmul.mubr.bf16.gmra.mrb[0].mxu0 %v2532
    %v2844 = vpop.f32.mrb[0].mxu0
    %v2845 = vadd.f32 %v2560, %v2844
    %v2846 = vpop.f32.mrb[0].mxu0
    %v2847 = vpop.f32.mrb[0].mxu0
    %v2848 = vadd.f32 %v2560, %v2847
    %v2849 = vpop.f32.mrb[0].mxu0
    %2850 = vmatprep.mubr.bf16.mxu0 0
    %2851 = vmatmul.mubr.bf16.gmra.mrb[0].mxu0 %v2533
    %v2852 = vpop.f32.mrb[0].mxu0
    %v2853 = vadd.f32 %v2560, %v2852
    %v2854 = vpop.f32.mrb[0].mxu0
    %v2855 = vpop.f32.mrb[0].mxu0
    %v2856 = vadd.f32 %v2560, %v2855
    %v2857 = vpop.f32.mrb[0].mxu0
    %2858 = vmatprep.mubr.bf16.mxu0 0
    %2859 = vmatmul.mubr.bf16.gmra.mrb[0].mxu0 %v2534
    %v2860 = vpop.f32.mrb[0].mxu0
    %v2861 = vadd.f32 %v2560, %v2860
    %v2862 = vpop.f32.mrb[0].mxu0
    %v2863 = vpop.f32.mrb[0].mxu0
    %v2864 = vadd.f32 %v2560, %v2863
    %v2865 = vpop.f32.mrb[0].mxu0
    %2866 = vmatprep.mubr.bf16.mxu0 0
    %2867 = vmatmul.mubr.bf16.gmra.mrb[0].mxu0 %v2535
    %v2868 = vpop.f32.mrb[0].mxu0
    %v2869 = vadd.f32 %v2560, %v2868
    %v2870 = vpop.f32.mrb[0].mxu0
    %v2871 = vpop.f32.mrb[0].mxu0
    %v2872 = vadd.f32 %v2560, %v2871
    %v2873 = vpop.f32.mrb[0].mxu0
    %2874 = vmatprep.mubr.bf16.mxu0 0
    %2875 = vmatmul.mubr.bf16.gmra.mrb[0].mxu0 %v2536
    %v2876 = vpop.f32.mrb[0].mxu0
    %v2877 = vadd.f32 %v2560, %v2876
    %v2878 = vpop.f32.mrb[0].mxu0
    %v2879 = vpop.f32.mrb[0].mxu0
    %v2880 = vadd.f32 %v2560, %v2879
    %v2881 = vpop.f32.mrb[0].mxu0
    %2882 = vmatprep.mubr.bf16.mxu0 0
    %2883 = vmatmul.mubr.bf16.gmra.mrb[0].mxu0 %v2537
    %v2884 = vpop.f32.mrb[0].mxu0
    %v2885 = vadd.f32 %v2560, %v2884
    %v2886 = vpop.f32.mrb[0].mxu0
    %v2887 = vpop.f32.mrb[0].mxu0
    %v2888 = vadd.f32 %v2560, %v2887
    %v2889 = vpop.f32.mrb[0].mxu0
    %2890 = vmatprep.mubr.bf16.mxu0 0
    %2891 = vmatmul.mubr.bf16.gmra.mrb[0].mxu0 %v2538
    %v2892 = vpop.f32.mrb[0].mxu0
    %v2893 = vadd.f32 %v2560, %v2892
    %v2894 = vpop.f32.mrb[0].mxu0
    %v2895 = vpop.f32.mrb[0].mxu0
    %v2896 = vadd.f32 %v2560, %v2895
    %v2897 = vpop.f32.mrb[0].mxu0
    %2898 = vdwg.mxu0
    %v2899 = vlaneseq
    %v2900 = vand.u32 %v2899, 127
    %vm2901 = vcmp.lt.s32.totalorder %v2900, 2
    %v2902 = vsel %vm2901, %v2645, -1e+30
    %v2903 = vsel %vm2901, %v2648, -1e+30
    %v2904 = vsel %vm2901, %v2653, -1e+30
    %v2905 = vsel %vm2901, %v2656, -1e+30
    %v2906 = vsel %vm2901, %v2661, -1e+30
    %v2907 = vsel %vm2901, %v2664, -1e+30
    %v2908 = vsel %vm2901, %v2669, -1e+30
    %v2909 = vsel %vm2901, %v2672, -1e+30
    %v2910 = vsel %vm2901, %v2677, -1e+30
    %v2911 = vsel %vm2901, %v2680, -1e+30
    %v2912 = vsel %vm2901, %v2685, -1e+30
    %v2913 = vsel %vm2901, %v2688, -1e+30
    %v2914 = vsel %vm2901, %v2693, -1e+30
    %v2915 = vsel %vm2901, %v2696, -1e+30
    %v2916 = vsel %vm2901, %v2701, -1e+30
    %v2917 = vsel %vm2901, %v2704, -1e+30
    %v2918 = vsel %vm2901, %v2709, -1e+30
    %v2919 = vsel %vm2901, %v2712, -1e+30
    %v2920 = vsel %vm2901, %v2717, -1e+30
    %v2921 = vsel %vm2901, %v2720, -1e+30
    %v2922 = vsel %vm2901, %v2725, -1e+30
    %v2923 = vsel %vm2901, %v2728, -1e+30
    %v2924 = vsel %vm2901, %v2733, -1e+30
    %v2925 = vsel %vm2901, %v2736, -1e+30
    %v2926 = vsel %vm2901, %v2741, -1e+30
    %v2927 = vsel %vm2901, %v2744, -1e+30
    %v2928 = vsel %vm2901, %v2749, -1e+30
    %v2929 = vsel %vm2901, %v2752, -1e+30
    %v2930 = vsel %vm2901, %v2757, -1e+30
    %v2931 = vsel %vm2901, %v2760, -1e+30
    %v2932 = vsel %vm2901, %v2765, -1e+30
    %v2933 = vsel %vm2901, %v2768, -1e+30
    %v2934 = vsel %vm2901, %v2773, -1e+30
    %v2935 = vsel %vm2901, %v2776, -1e+30
    %v2936 = vsel %vm2901, %v2781, -1e+30
    %v2937 = vsel %vm2901, %v2784, -1e+30
    %v2938 = vsel %vm2901, %v2789, -1e+30
    %v2939 = vsel %vm2901, %v2792, -1e+30
    %v2940 = vsel %vm2901, %v2797, -1e+30
    %v2941 = vsel %vm2901, %v2800, -1e+30
    %v2942 = vsel %vm2901, %v2805, -1e+30
    %v2943 = vsel %vm2901, %v2808, -1e+30
    %v2944 = vsel %vm2901, %v2813, -1e+30
    %v2945 = vsel %vm2901, %v2816, -1e+30
    %v2946 = vsel %vm2901, %v2821, -1e+30
    %v2947 = vsel %vm2901, %v2824, -1e+30
    %v2948 = vsel %vm2901, %v2829, -1e+30
    %v2949 = vsel %vm2901, %v2832, -1e+30
    %v2950 = vsel %vm2901, %v2837, -1e+30
    %v2951 = vsel %vm2901, %v2840, -1e+30
    %v2952 = vsel %vm2901, %v2845, -1e+30
    %v2953 = vsel %vm2901, %v2848, -1e+30
    %v2954 = vsel %vm2901, %v2853, -1e+30
    %v2955 = vsel %vm2901, %v2856, -1e+30
    %v2956 = vsel %vm2901, %v2861, -1e+30
    %v2957 = vsel %vm2901, %v2864, -1e+30
    %v2958 = vsel %vm2901, %v2869, -1e+30
    %v2959 = vsel %vm2901, %v2872, -1e+30
    %v2960 = vsel %vm2901, %v2877, -1e+30
    %v2961 = vsel %vm2901, %v2880, -1e+30
    %v2962 = vsel %vm2901, %v2885, -1e+30
    %v2963 = vsel %vm2901, %v2888, -1e+30
    %v2964 = vsel %vm2901, %v2893, -1e+30
    %v2965 = vsel %vm2901, %v2896, -1e+30
    %2966 = vmax.xlane.f32.xlu0 %v2902
    %v2967 = vpop.xlane.xlu0 %2966
    %2968 = vmax.xlane.f32.xlu0 %v2903
    %v2969 = vpop.xlane.xlu0 %2968
    %2970 = vmax.xlane.f32.xlu0 %v2904
    %v2971 = vpop.xlane.xlu0 %2970
    %2972 = vmax.xlane.f32.xlu0 %v2905
    %v2973 = vpop.xlane.xlu0 %2972
    %2974 = vmax.xlane.f32.xlu0 %v2906
    %v2975 = vpop.xlane.xlu0 %2974
    %2976 = vmax.xlane.f32.xlu0 %v2907
    %v2977 = vpop.xlane.xlu0 %2976
    %2978 = vmax.xlane.f32.xlu0 %v2908
    %v2979 = vpop.xlane.xlu0 %2978
    %2980 = vmax.xlane.f32.xlu0 %v2909
    %v2981 = vpop.xlane.xlu0 %2980
    %2982 = vmax.xlane.f32.xlu0 %v2910
    %v2983 = vpop.xlane.xlu0 %2982
    %2984 = vmax.xlane.f32.xlu0 %v2911
    %v2985 = vpop.xlane.xlu0 %2984
    %2986 = vmax.xlane.f32.xlu0 %v2912
    %v2987 = vpop.xlane.xlu0 %2986
    %2988 = vmax.xlane.f32.xlu0 %v2913
    %v2989 = vpop.xlane.xlu0 %2988
    %2990 = vmax.xlane.f32.xlu0 %v2914
    %v2991 = vpop.xlane.xlu0 %2990
    %2992 = vmax.xlane.f32.xlu0 %v2915
    %v2993 = vpop.xlane.xlu0 %2992
    %2994 = vmax.xlane.f32.xlu0 %v2916
    %v2995 = vpop.xlane.xlu0 %2994
    %2996 = vmax.xlane.f32.xlu0 %v2917
    %v2997 = vpop.xlane.xlu0 %2996
    %2998 = vmax.xlane.f32.xlu0 %v2918
    %v2999 = vpop.xlane.xlu0 %2998
    %3000 = vmax.xlane.f32.xlu0 %v2919
    %v3001 = vpop.xlane.xlu0 %3000
    %3002 = vmax.xlane.f32.xlu0 %v2920
    %v3003 = vpop.xlane.xlu0 %3002
    %3004 = vmax.xlane.f32.xlu0 %v2921
    %v3005 = vpop.xlane.xlu0 %3004
    %3006 = vmax.xlane.f32.xlu0 %v2922
    %v3007 = vpop.xlane.xlu0 %3006
    %3008 = vmax.xlane.f32.xlu0 %v2923
    %v3009 = vpop.xlane.xlu0 %3008
    %3010 = vmax.xlane.f32.xlu0 %v2924
    %v3011 = vpop.xlane.xlu0 %3010
    %3012 = vmax.xlane.f32.xlu0 %v2925
    %v3013 = vpop.xlane.xlu0 %3012
    %3014 = vmax.xlane.f32.xlu0 %v2926
    %v3015 = vpop.xlane.xlu0 %3014
    %3016 = vmax.xlane.f32.xlu0 %v2927
    %v3017 = vpop.xlane.xlu0 %3016
    %3018 = vmax.xlane.f32.xlu0 %v2928
    %v3019 = vpop.xlane.xlu0 %3018
    %3020 = vmax.xlane.f32.xlu0 %v2929
    %v3021 = vpop.xlane.xlu0 %3020
    %3022 = vmax.xlane.f32.xlu0 %v2930
    %v3023 = vpop.xlane.xlu0 %3022
    %3024 = vmax.xlane.f32.xlu0 %v2931
    %v3025 = vpop.xlane.xlu0 %3024
    %3026 = vmax.xlane.f32.xlu0 %v2932
    %v3027 = vpop.xlane.xlu0 %3026
    %3028 = vmax.xlane.f32.xlu0 %v2933
    %v3029 = vpop.xlane.xlu0 %3028
    %3030 = vmax.xlane.f32.xlu0 %v2934
    %v3031 = vpop.xlane.xlu0 %3030
    %3032 = vmax.xlane.f32.xlu0 %v2935
    %v3033 = vpop.xlane.xlu0 %3032
    %3034 = vmax.xlane.f32.xlu0 %v2936
    %v3035 = vpop.xlane.xlu0 %3034
    %3036 = vmax.xlane.f32.xlu0 %v2937
    %v3037 = vpop.xlane.xlu0 %3036
    %3038 = vmax.xlane.f32.xlu0 %v2938
    %v3039 = vpop.xlane.xlu0 %3038
    %3040 = vmax.xlane.f32.xlu0 %v2939
    %v3041 = vpop.xlane.xlu0 %3040
    %3042 = vmax.xlane.f32.xlu0 %v2940
    %v3043 = vpop.xlane.xlu0 %3042
    %3044 = vmax.xlane.f32.xlu0 %v2941
    %v3045 = vpop.xlane.xlu0 %3044
    %3046 = vmax.xlane.f32.xlu0 %v2942
    %v3047 = vpop.xlane.xlu0 %3046
    %3048 = vmax.xlane.f32.xlu0 %v2943
    %v3049 = vpop.xlane.xlu0 %3048
    %3050 = vmax.xlane.f32.xlu0 %v2944
    %v3051 = vpop.xlane.xlu0 %3050
    %3052 = vmax.xlane.f32.xlu0 %v2945
    %v3053 = vpop.xlane.xlu0 %3052
    %3054 = vmax.xlane.f32.xlu0 %v2946
    %v3055 = vpop.xlane.xlu0 %3054
    %3056 = vmax.xlane.f32.xlu0 %v2947
    %v3057 = vpop.xlane.xlu0 %3056
    %3058 = vmax.xlane.f32.xlu0 %v2948
    %v3059 = vpop.xlane.xlu0 %3058
    %3060 = vmax.xlane.f32.xlu0 %v2949
    %v3061 = vpop.xlane.xlu0 %3060
    %3062 = vmax.xlane.f32.xlu0 %v2950
    %v3063 = vpop.xlane.xlu0 %3062
    %3064 = vmax.xlane.f32.xlu0 %v2951
    %v3065 = vpop.xlane.xlu0 %3064
    %3066 = vmax.xlane.f32.xlu0 %v2952
    %v3067 = vpop.xlane.xlu0 %3066
    %3068 = vmax.xlane.f32.xlu0 %v2953
    %v3069 = vpop.xlane.xlu0 %3068
    %3070 = vmax.xlane.f32.xlu0 %v2954
    %v3071 = vpop.xlane.xlu0 %3070
    %3072 = vmax.xlane.f32.xlu0 %v2955
    %v3073 = vpop.xlane.xlu0 %3072
    %3074 = vmax.xlane.f32.xlu0 %v2956
    %v3075 = vpop.xlane.xlu0 %3074
    %3076 = vmax.xlane.f32.xlu0 %v2957
    %v3077 = vpop.xlane.xlu0 %3076
    %3078 = vmax.xlane.f32.xlu0 %v2958
    %v3079 = vpop.xlane.xlu0 %3078
    %3080 = vmax.xlane.f32.xlu0 %v2959
    %v3081 = vpop.xlane.xlu0 %3080
    %3082 = vmax.xlane.f32.xlu0 %v2960
    %v3083 = vpop.xlane.xlu0 %3082
    %3084 = vmax.xlane.f32.xlu0 %v2961
    %v3085 = vpop.xlane.xlu0 %3084
    %3086 = vmax.xlane.f32.xlu0 %v2962
    %v3087 = vpop.xlane.xlu0 %3086
    %3088 = vmax.xlane.f32.xlu0 %v2963
    %v3089 = vpop.xlane.xlu0 %3088
    %3090 = vmax.xlane.f32.xlu0 %v2964
    %v3091 = vpop.xlane.xlu0 %3090
    %3092 = vmax.xlane.f32.xlu0 %v2965
    %v3093 = vpop.xlane.xlu0 %3092
    %v3094 = vsub.f32 %v2902, %v2967
    %v3095 = vsub.f32 %v2903, %v2969
    %v3096 = vsub.f32 %v2904, %v2971
    %v3097 = vsub.f32 %v2905, %v2973
    %v3098 = vsub.f32 %v2906, %v2975
    %v3099 = vsub.f32 %v2907, %v2977
    %v3100 = vsub.f32 %v2908, %v2979
    %v3101 = vsub.f32 %v2909, %v2981
    %v3102 = vsub.f32 %v2910, %v2983
    %v3103 = vsub.f32 %v2911, %v2985
    %v3104 = vsub.f32 %v2912, %v2987
    %v3105 = vsub.f32 %v2913, %v2989
    %v3106 = vsub.f32 %v2914, %v2991
    %v3107 = vsub.f32 %v2915, %v2993
    %v3108 = vsub.f32 %v2916, %v2995
    %v3109 = vsub.f32 %v2917, %v2997
    %v3110 = vsub.f32 %v2918, %v2999
    %v3111 = vsub.f32 %v2919, %v3001
    %v3112 = vsub.f32 %v2920, %v3003
    %v3113 = vsub.f32 %v2921, %v3005
    %v3114 = vsub.f32 %v2922, %v3007
    %v3115 = vsub.f32 %v2923, %v3009
    %v3116 = vsub.f32 %v2924, %v3011
    %v3117 = vsub.f32 %v2925, %v3013
    %v3118 = vsub.f32 %v2926, %v3015
    %v3119 = vsub.f32 %v2927, %v3017
    %v3120 = vsub.f32 %v2928, %v3019
    %v3121 = vsub.f32 %v2929, %v3021
    %v3122 = vsub.f32 %v2930, %v3023
    %v3123 = vsub.f32 %v2931, %v3025
    %v3124 = vsub.f32 %v2932, %v3027
    %v3125 = vsub.f32 %v2933, %v3029
    %v3126 = vsub.f32 %v2934, %v3031
    %v3127 = vsub.f32 %v2935, %v3033
    %v3128 = vsub.f32 %v2936, %v3035
    %v3129 = vsub.f32 %v2937, %v3037
    %v3130 = vsub.f32 %v2938, %v3039
    %v3131 = vsub.f32 %v2939, %v3041
    %v3132 = vsub.f32 %v2940, %v3043
    %v3133 = vsub.f32 %v2941, %v3045
    %v3134 = vsub.f32 %v2942, %v3047
    %v3135 = vsub.f32 %v2943, %v3049
    %v3136 = vsub.f32 %v2944, %v3051
    %v3137 = vsub.f32 %v2945, %v3053
    %v3138 = vsub.f32 %v2946, %v3055
    %v3139 = vsub.f32 %v2947, %v3057
    %v3140 = vsub.f32 %v2948, %v3059
    %v3141 = vsub.f32 %v2949, %v3061
    %v3142 = vsub.f32 %v2950, %v3063
    %v3143 = vsub.f32 %v2951, %v3065
    %v3144 = vsub.f32 %v2952, %v3067
    %v3145 = vsub.f32 %v2953, %v3069
    %v3146 = vsub.f32 %v2954, %v3071
    %v3147 = vsub.f32 %v2955, %v3073
    %v3148 = vsub.f32 %v2956, %v3075
    %v3149 = vsub.f32 %v2957, %v3077
    %v3150 = vsub.f32 %v2958, %v3079
    %v3151 = vsub.f32 %v2959, %v3081
    %v3152 = vsub.f32 %v2960, %v3083
    %v3153 = vsub.f32 %v2961, %v3085
    %v3154 = vsub.f32 %v2962, %v3087
    %v3155 = vsub.f32 %v2963, %v3089
    %v3156 = vsub.f32 %v2964, %v3091
    %v3157 = vsub.f32 %v2965, %v3093
    %v3158 = vmul.f32 %v3094, 1.442695
    %v3159 = vpow.pop %v3158
    %v3160 = vmul.f32 %v3095, 1.442695
    %v3161 = vpow.pop %v3160
    %v3162 = vmul.f32 %v3096, 1.442695
    %v3163 = vpow.pop %v3162
    %v3164 = vmul.f32 %v3097, 1.442695
    %v3165 = vpow.pop %v3164
    %v3166 = vmul.f32 %v3098, 1.442695
    %v3167 = vpow.pop %v3166
    %v3168 = vmul.f32 %v3099, 1.442695
    %v3169 = vpow.pop %v3168
    %v3170 = vmul.f32 %v3100, 1.442695
    %v3171 = vpow.pop %v3170
    %v3172 = vmul.f32 %v3101, 1.442695
    %v3173 = vpow.pop %v3172
    %v3174 = vmul.f32 %v3102, 1.442695
    %v3175 = vpow.pop %v3174
    %v3176 = vmul.f32 %v3103, 1.442695
    %v3177 = vpow.pop %v3176
    %v3178 = vmul.f32 %v3104, 1.442695
    %v3179 = vpow.pop %v3178
    %v3180 = vmul.f32 %v3105, 1.442695
    %v3181 = vpow.pop %v3180
    %v3182 = vmul.f32 %v3106, 1.442695
    %v3183 = vpow.pop %v3182
    %v3184 = vmul.f32 %v3107, 1.442695
    %v3185 = vpow.pop %v3184
    %v3186 = vmul.f32 %v3108, 1.442695
    %v3187 = vpow.pop %v3186
    %v3188 = vmul.f32 %v3109, 1.442695
    %v3189 = vpow.pop %v3188
    %v3190 = vmul.f32 %v3110, 1.442695
    %v3191 = vpow.pop %v3190
    %v3192 = vmul.f32 %v3111, 1.442695
    %v3193 = vpow.pop %v3192
    %v3194 = vmul.f32 %v3112, 1.442695
    %v3195 = vpow.pop %v3194
    %v3196 = vmul.f32 %v3113, 1.442695
    %v3197 = vpow.pop %v3196
    %v3198 = vmul.f32 %v3114, 1.442695
    %v3199 = vpow.pop %v3198
    %v3200 = vmul.f32 %v3115, 1.442695
    %v3201 = vpow.pop %v3200
    %v3202 = vmul.f32 %v3116, 1.442695
    %v3203 = vpow.pop %v3202
    %v3204 = vmul.f32 %v3117, 1.442695
    %v3205 = vpow.pop %v3204
    %v3206 = vmul.f32 %v3118, 1.442695
    %v3207 = vpow.pop %v3206
    %v3208 = vmul.f32 %v3119, 1.442695
    %v3209 = vpow.pop %v3208
    %v3210 = vmul.f32 %v3120, 1.442695
    %v3211 = vpow.pop %v3210
    %v3212 = vmul.f32 %v3121, 1.442695
    %v3213 = vpow.pop %v3212
    %v3214 = vmul.f32 %v3122, 1.442695
    %v3215 = vpow.pop %v3214
    %v3216 = vmul.f32 %v3123, 1.442695
    %v3217 = vpow.pop %v3216
    %v3218 = vmul.f32 %v3124, 1.442695
    %v3219 = vpow.pop %v3218
    %v3220 = vmul.f32 %v3125, 1.442695
    %v3221 = vpow.pop %v3220
    %v3222 = vmul.f32 %v3126, 1.442695
    %v3223 = vpow.pop %v3222
    %v3224 = vmul.f32 %v3127, 1.442695
    %v3225 = vpow.pop %v3224
    %v3226 = vmul.f32 %v3128, 1.442695
    %v3227 = vpow.pop %v3226
    %v3228 = vmul.f32 %v3129, 1.442695
    %v3229 = vpow.pop %v3228
    %v3230 = vmul.f32 %v3130, 1.442695
    %v3231 = vpow.pop %v3230
    %v3232 = vmul.f32 %v3131, 1.442695
    %v3233 = vpow.pop %v3232
    %v3234 = vmul.f32 %v3132, 1.442695
    %v3235 = vpow.pop %v3234
    %v3236 = vmul.f32 %v3133, 1.442695
    %v3237 = vpow.pop %v3236
    %v3238 = vmul.f32 %v3134, 1.442695
    %v3239 = vpow.pop %v3238
    %v3240 = vmul.f32 %v3135, 1.442695
    %v3241 = vpow.pop %v3240
    %v3242 = vmul.f32 %v3136, 1.442695
    %v3243 = vpow.pop %v3242
    %v3244 = vmul.f32 %v3137, 1.442695
    %v3245 = vpow.pop %v3244
    %v3246 = vmul.f32 %v3138, 1.442695
    %v3247 = vpow.pop %v3246
    %v3248 = vmul.f32 %v3139, 1.442695
    %v3249 = vpow.pop %v3248
    %v3250 = vmul.f32 %v3140, 1.442695
    %v3251 = vpow.pop %v3250
    %v3252 = vmul.f32 %v3141, 1.442695
    %v3253 = vpow.pop %v3252
    %v3254 = vmul.f32 %v3142, 1.442695
    %v3255 = vpow.pop %v3254
    %v3256 = vmul.f32 %v3143, 1.442695
    %v3257 = vpow.pop %v3256
    %v3258 = vmul.f32 %v3144, 1.442695
    %v3259 = vpow.pop %v3258
    %v3260 = vmul.f32 %v3145, 1.442695
    %v3261 = vpow.pop %v3260
    %v3262 = vmul.f32 %v3146, 1.442695
    %v3263 = vpow.pop %v3262
    %v3264 = vmul.f32 %v3147, 1.442695
    %v3265 = vpow.pop %v3264
    %v3266 = vmul.f32 %v3148, 1.442695
    %v3267 = vpow.pop %v3266
    %v3268 = vmul.f32 %v3149, 1.442695
    %v3269 = vpow.pop %v3268
    %v3270 = vmul.f32 %v3150, 1.442695
    %v3271 = vpow.pop %v3270
    %v3272 = vmul.f32 %v3151, 1.442695
    %v3273 = vpow.pop %v3272
    %v3274 = vmul.f32 %v3152, 1.442695
    %v3275 = vpow.pop %v3274
    %v3276 = vmul.f32 %v3153, 1.442695
    %v3277 = vpow.pop %v3276
    %v3278 = vmul.f32 %v3154, 1.442695
    %v3279 = vpow.pop %v3278
    %v3280 = vmul.f32 %v3155, 1.442695
    %v3281 = vpow.pop %v3280
    %v3282 = vmul.f32 %v3156, 1.442695
    %v3283 = vpow.pop %v3282
    %v3284 = vmul.f32 %v3157, 1.442695
    %v3285 = vpow.pop %v3284
    %3286 = vadd.xlane.f32.xlu0 %v3159
    %v3287 = vpop.xlane.xlu0 %3286
    %3288 = vadd.xlane.f32.xlu0 %v3161
    %v3289 = vpop.xlane.xlu0 %3288
    %3290 = vadd.xlane.f32.xlu0 %v3163
    %v3291 = vpop.xlane.xlu0 %3290
    %3292 = vadd.xlane.f32.xlu0 %v3165
    %v3293 = vpop.xlane.xlu0 %3292
    %3294 = vadd.xlane.f32.xlu0 %v3167
    %v3295 = vpop.xlane.xlu0 %3294
    %3296 = vadd.xlane.f32.xlu0 %v3169
    %v3297 = vpop.xlane.xlu0 %3296
    %3298 = vadd.xlane.f32.xlu0 %v3171
    %v3299 = vpop.xlane.xlu0 %3298
    %3300 = vadd.xlane.f32.xlu0 %v3173
    %v3301 = vpop.xlane.xlu0 %3300
    %3302 = vadd.xlane.f32.xlu0 %v3175
    %v3303 = vpop.xlane.xlu0 %3302
    %3304 = vadd.xlane.f32.xlu0 %v3177
    %v3305 = vpop.xlane.xlu0 %3304
    %3306 = vadd.xlane.f32.xlu0 %v3179
    %v3307 = vpop.xlane.xlu0 %3306
    %3308 = vadd.xlane.f32.xlu0 %v3181
    %v3309 = vpop.xlane.xlu0 %3308
    %3310 = vadd.xlane.f32.xlu0 %v3183
    %v3311 = vpop.xlane.xlu0 %3310
    %3312 = vadd.xlane.f32.xlu0 %v3185
    %v3313 = vpop.xlane.xlu0 %3312
    %3314 = vadd.xlane.f32.xlu0 %v3187
    %v3315 = vpop.xlane.xlu0 %3314
    %3316 = vadd.xlane.f32.xlu0 %v3189
    %v3317 = vpop.xlane.xlu0 %3316
    %3318 = vadd.xlane.f32.xlu0 %v3191
    %v3319 = vpop.xlane.xlu0 %3318
    %3320 = vadd.xlane.f32.xlu0 %v3193
    %v3321 = vpop.xlane.xlu0 %3320
    %3322 = vadd.xlane.f32.xlu0 %v3195
    %v3323 = vpop.xlane.xlu0 %3322
    %3324 = vadd.xlane.f32.xlu0 %v3197
    %v3325 = vpop.xlane.xlu0 %3324
    %3326 = vadd.xlane.f32.xlu0 %v3199
    %v3327 = vpop.xlane.xlu0 %3326
    %3328 = vadd.xlane.f32.xlu0 %v3201
    %v3329 = vpop.xlane.xlu0 %3328
    %3330 = vadd.xlane.f32.xlu0 %v3203
    %v3331 = vpop.xlane.xlu0 %3330
    %3332 = vadd.xlane.f32.xlu0 %v3205
    %v3333 = vpop.xlane.xlu0 %3332
    %3334 = vadd.xlane.f32.xlu0 %v3207
    %v3335 = vpop.xlane.xlu0 %3334
    %3336 = vadd.xlane.f32.xlu0 %v3209
    %v3337 = vpop.xlane.xlu0 %3336
    %3338 = vadd.xlane.f32.xlu0 %v3211
    %v3339 = vpop.xlane.xlu0 %3338
    %3340 = vadd.xlane.f32.xlu0 %v3213
    %v3341 = vpop.xlane.xlu0 %3340
    %3342 = vadd.xlane.f32.xlu0 %v3215
    %v3343 = vpop.xlane.xlu0 %3342
    %3344 = vadd.xlane.f32.xlu0 %v3217
    %v3345 = vpop.xlane.xlu0 %3344
    %3346 = vadd.xlane.f32.xlu0 %v3219
    %v3347 = vpop.xlane.xlu0 %3346
    %3348 = vadd.xlane.f32.xlu0 %v3221
    %v3349 = vpop.xlane.xlu0 %3348
    %3350 = vadd.xlane.f32.xlu0 %v3223
    %v3351 = vpop.xlane.xlu0 %3350
    %3352 = vadd.xlane.f32.xlu0 %v3225
    %v3353 = vpop.xlane.xlu0 %3352
    %3354 = vadd.xlane.f32.xlu0 %v3227
    %v3355 = vpop.xlane.xlu0 %3354
    %3356 = vadd.xlane.f32.xlu0 %v3229
    %v3357 = vpop.xlane.xlu0 %3356
    %3358 = vadd.xlane.f32.xlu0 %v3231
    %v3359 = vpop.xlane.xlu0 %3358
    %3360 = vadd.xlane.f32.xlu0 %v3233
    %v3361 = vpop.xlane.xlu0 %3360
    %3362 = vadd.xlane.f32.xlu0 %v3235
    %v3363 = vpop.xlane.xlu0 %3362
    %3364 = vadd.xlane.f32.xlu0 %v3237
    %v3365 = vpop.xlane.xlu0 %3364
    %3366 = vadd.xlane.f32.xlu0 %v3239
    %v3367 = vpop.xlane.xlu0 %3366
    %3368 = vadd.xlane.f32.xlu0 %v3241
    %v3369 = vpop.xlane.xlu0 %3368
    %3370 = vadd.xlane.f32.xlu0 %v3243
    %v3371 = vpop.xlane.xlu0 %3370
    %3372 = vadd.xlane.f32.xlu0 %v3245
    %v3373 = vpop.xlane.xlu0 %3372
    %3374 = vadd.xlane.f32.xlu0 %v3247
    %v3375 = vpop.xlane.xlu0 %3374
    %3376 = vadd.xlane.f32.xlu0 %v3249
    %v3377 = vpop.xlane.xlu0 %3376
    %3378 = vadd.xlane.f32.xlu0 %v3251
    %v3379 = vpop.xlane.xlu0 %3378
    %3380 = vadd.xlane.f32.xlu0 %v3253
    %v3381 = vpop.xlane.xlu0 %3380
    %3382 = vadd.xlane.f32.xlu0 %v3255
    %v3383 = vpop.xlane.xlu0 %3382
    %3384 = vadd.xlane.f32.xlu0 %v3257
    %v3385 = vpop.xlane.xlu0 %3384
    %3386 = vadd.xlane.f32.xlu0 %v3259
    %v3387 = vpop.xlane.xlu0 %3386
    %3388 = vadd.xlane.f32.xlu0 %v3261
    %v3389 = vpop.xlane.xlu0 %3388
    %3390 = vadd.xlane.f32.xlu0 %v3263
    %v3391 = vpop.xlane.xlu0 %3390
    %3392 = vadd.xlane.f32.xlu0 %v3265
    %v3393 = vpop.xlane.xlu0 %3392
    %3394 = vadd.xlane.f32.xlu0 %v3267
    %v3395 = vpop.xlane.xlu0 %3394
    %3396 = vadd.xlane.f32.xlu0 %v3269
    %v3397 = vpop.xlane.xlu0 %3396
    %3398 = vadd.xlane.f32.xlu0 %v3271
    %v3399 = vpop.xlane.xlu0 %3398
    %3400 = vadd.xlane.f32.xlu0 %v3273
    %v3401 = vpop.xlane.xlu0 %3400
    %3402 = vadd.xlane.f32.xlu0 %v3275
    %v3403 = vpop.xlane.xlu0 %3402
    %3404 = vadd.xlane.f32.xlu0 %v3277
    %v3405 = vpop.xlane.xlu0 %3404
    %3406 = vadd.xlane.f32.xlu0 %v3279
    %v3407 = vpop.xlane.xlu0 %3406
    %3408 = vadd.xlane.f32.xlu0 %v3281
    %v3409 = vpop.xlane.xlu0 %3408
    %3410 = vadd.xlane.f32.xlu0 %v3283
    %v3411 = vpop.xlane.xlu0 %3410
    %3412 = vadd.xlane.f32.xlu0 %v3285
    %v3413 = vpop.xlane.xlu0 %3412
    %v3414 = vrcp.pop %v3287
    %v3415 = vrcp.pop %v3289
    %v3416 = vrcp.pop %v3291
    %v3417 = vrcp.pop %v3293
    %v3418 = vrcp.pop %v3295
    %v3419 = vrcp.pop %v3297
    %v3420 = vrcp.pop %v3299
    %v3421 = vrcp.pop %v3301
    %v3422 = vrcp.pop %v3303
    %v3423 = vrcp.pop %v3305
    %v3424 = vrcp.pop %v3307
    %v3425 = vrcp.pop %v3309
    %v3426 = vrcp.pop %v3311
    %v3427 = vrcp.pop %v3313
    %v3428 = vrcp.pop %v3315
    %v3429 = vrcp.pop %v3317
    %v3430 = vrcp.pop %v3319
    %v3431 = vrcp.pop %v3321
    %v3432 = vrcp.pop %v3323
    %v3433 = vrcp.pop %v3325
    %v3434 = vrcp.pop %v3327
    %v3435 = vrcp.pop %v3329
    %v3436 = vrcp.pop %v3331
    %v3437 = vrcp.pop %v3333
    %v3438 = vrcp.pop %v3335
    %v3439 = vrcp.pop %v3337
    %v3440 = vrcp.pop %v3339
    %v3441 = vrcp.pop %v3341
    %v3442 = vrcp.pop %v3343
    %v3443 = vrcp.pop %v3345
    %v3444 = vrcp.pop %v3347
    %v3445 = vrcp.pop %v3349
    %v3446 = vrcp.pop %v3351
    %v3447 = vrcp.pop %v3353
    %v3448 = vrcp.pop %v3355
    %v3449 = vrcp.pop %v3357
    %v3450 = vrcp.pop %v3359
    %v3451 = vrcp.pop %v3361
    %v3452 = vrcp.pop %v3363
    %v3453 = vrcp.pop %v3365
    %v3454 = vrcp.pop %v3367
    %v3455 = vrcp.pop %v3369
    %v3456 = vrcp.pop %v3371
    %v3457 = vrcp.pop %v3373
    %v3458 = vrcp.pop %v3375
    %v3459 = vrcp.pop %v3377
    %v3460 = vrcp.pop %v3379
    %v3461 = vrcp.pop %v3381
    %v3462 = vrcp.pop %v3383
    %v3463 = vrcp.pop %v3385
    %v3464 = vrcp.pop %v3387
    %v3465 = vrcp.pop %v3389
    %v3466 = vrcp.pop %v3391
    %v3467 = vrcp.pop %v3393
    %v3468 = vrcp.pop %v3395
    %v3469 = vrcp.pop %v3397
    %v3470 = vrcp.pop %v3399
    %v3471 = vrcp.pop %v3401
    %v3472 = vrcp.pop %v3403
    %v3473 = vrcp.pop %v3405
    %v3474 = vrcp.pop %v3407
    %v3475 = vrcp.pop %v3409
    %v3476 = vrcp.pop %v3411
    %v3477 = vrcp.pop %v3413
    %v3478 = vmul.f32 %v3159, %v3414
    %v3479 = vmul.f32 %v3161, %v3415
    %v3480 = vmul.f32 %v3163, %v3416
    %v3481 = vmul.f32 %v3165, %v3417
    %v3482 = vmul.f32 %v3167, %v3418
    %v3483 = vmul.f32 %v3169, %v3419
    %v3484 = vmul.f32 %v3171, %v3420
    %v3485 = vmul.f32 %v3173, %v3421
    %v3486 = vmul.f32 %v3175, %v3422
    %v3487 = vmul.f32 %v3177, %v3423
    %v3488 = vmul.f32 %v3179, %v3424
    %v3489 = vmul.f32 %v3181, %v3425
    %v3490 = vmul.f32 %v3183, %v3426
    %v3491 = vmul.f32 %v3185, %v3427
    %v3492 = vmul.f32 %v3187, %v3428
    %v3493 = vmul.f32 %v3189, %v3429
    %v3494 = vmul.f32 %v3191, %v3430
    %v3495 = vmul.f32 %v3193, %v3431
    %v3496 = vmul.f32 %v3195, %v3432
    %v3497 = vmul.f32 %v3197, %v3433
    %v3498 = vmul.f32 %v3199, %v3434
    %v3499 = vmul.f32 %v3201, %v3435
    %v3500 = vmul.f32 %v3203, %v3436
    %v3501 = vmul.f32 %v3205, %v3437
    %v3502 = vmul.f32 %v3207, %v3438
    %v3503 = vmul.f32 %v3209, %v3439
    %v3504 = vmul.f32 %v3211, %v3440
    %v3505 = vmul.f32 %v3213, %v3441
    %v3506 = vmul.f32 %v3215, %v3442
    %v3507 = vmul.f32 %v3217, %v3443
    %v3508 = vmul.f32 %v3219, %v3444
    %v3509 = vmul.f32 %v3221, %v3445
    %v3510 = vmul.f32 %v3223, %v3446
    %v3511 = vmul.f32 %v3225, %v3447
    %v3512 = vmul.f32 %v3227, %v3448
    %v3513 = vmul.f32 %v3229, %v3449
    %v3514 = vmul.f32 %v3231, %v3450
    %v3515 = vmul.f32 %v3233, %v3451
    %v3516 = vmul.f32 %v3235, %v3452
    %v3517 = vmul.f32 %v3237, %v3453
    %v3518 = vmul.f32 %v3239, %v3454
    %v3519 = vmul.f32 %v3241, %v3455
    %v3520 = vmul.f32 %v3243, %v3456
    %v3521 = vmul.f32 %v3245, %v3457
    %v3522 = vmul.f32 %v3247, %v3458
    %v3523 = vmul.f32 %v3249, %v3459
    %v3524 = vmul.f32 %v3251, %v3460
    %v3525 = vmul.f32 %v3253, %v3461
    %v3526 = vmul.f32 %v3255, %v3462
    %v3527 = vmul.f32 %v3257, %v3463
    %v3528 = vmul.f32 %v3259, %v3464
    %v3529 = vmul.f32 %v3261, %v3465
    %v3530 = vmul.f32 %v3263, %v3466
    %v3531 = vmul.f32 %v3265, %v3467
    %v3532 = vmul.f32 %v3267, %v3468
    %v3533 = vmul.f32 %v3269, %v3469
    %v3534 = vmul.f32 %v3271, %v3470
    %v3535 = vmul.f32 %v3273, %v3471
    %v3536 = vmul.f32 %v3275, %v3472
    %v3537 = vmul.f32 %v3277, %v3473
    %v3538 = vmul.f32 %v3279, %v3474
    %v3539 = vmul.f32 %v3281, %v3475
    %v3540 = vmul.f32 %v3283, %v3476
    %v3541 = vmul.f32 %v3285, %v3477
    %v3542 = vsel %vm2901, %v3478, %v2645
    %v3543 = vsel %vm2901, %v3479, %v2648
    %v3544 = vsel %vm2901, %v3480, %v2653
    %v3545 = vsel %vm2901, %v3481, %v2656
    %v3546 = vsel %vm2901, %v3482, %v2661
    %v3547 = vsel %vm2901, %v3483, %v2664
    %v3548 = vsel %vm2901, %v3484, %v2669
    %v3549 = vsel %vm2901, %v3485, %v2672
    %v3550 = vsel %vm2901, %v3486, %v2677
    %v3551 = vsel %vm2901, %v3487, %v2680
    %v3552 = vsel %vm2901, %v3488, %v2685
    %v3553 = vsel %vm2901, %v3489, %v2688
    %v3554 = vsel %vm2901, %v3490, %v2693
    %v3555 = vsel %vm2901, %v3491, %v2696
    %v3556 = vsel %vm2901, %v3492, %v2701
    %v3557 = vsel %vm2901, %v3493, %v2704
    %v3558 = vsel %vm2901, %v3494, %v2709
    %v3559 = vsel %vm2901, %v3495, %v2712
    %v3560 = vsel %vm2901, %v3496, %v2717
    %v3561 = vsel %vm2901, %v3497, %v2720
    %v3562 = vsel %vm2901, %v3498, %v2725
    %v3563 = vsel %vm2901, %v3499, %v2728
    %v3564 = vsel %vm2901, %v3500, %v2733
    %v3565 = vsel %vm2901, %v3501, %v2736
    %v3566 = vsel %vm2901, %v3502, %v2741
    %v3567 = vsel %vm2901, %v3503, %v2744
    %v3568 = vsel %vm2901, %v3504, %v2749
    %v3569 = vsel %vm2901, %v3505, %v2752
    %v3570 = vsel %vm2901, %v3506, %v2757
    %v3571 = vsel %vm2901, %v3507, %v2760
    %v3572 = vsel %vm2901, %v3508, %v2765
    %v3573 = vsel %vm2901, %v3509, %v2768
    %v3574 = vsel %vm2901, %v3510, %v2773
    %v3575 = vsel %vm2901, %v3511, %v2776
    %v3576 = vsel %vm2901, %v3512, %v2781
    %v3577 = vsel %vm2901, %v3513, %v2784
    %v3578 = vsel %vm2901, %v3514, %v2789
    %v3579 = vsel %vm2901, %v3515, %v2792
    %v3580 = vsel %vm2901, %v3516, %v2797
    %v3581 = vsel %vm2901, %v3517, %v2800
    %v3582 = vsel %vm2901, %v3518, %v2805
    %v3583 = vsel %vm2901, %v3519, %v2808
    %v3584 = vsel %vm2901, %v3520, %v2813
    %v3585 = vsel %vm2901, %v3521, %v2816
    %v3586 = vsel %vm2901, %v3522, %v2821
    %v3587 = vsel %vm2901, %v3523, %v2824
    %v3588 = vsel %vm2901, %v3524, %v2829
    %v3589 = vsel %vm2901, %v3525, %v2832
    %v3590 = vsel %vm2901, %v3526, %v2837
    %v3591 = vsel %vm2901, %v3527, %v2840
    %v3592 = vsel %vm2901, %v3528, %v2845
    %v3593 = vsel %vm2901, %v3529, %v2848
    %v3594 = vsel %vm2901, %v3530, %v2853
    %v3595 = vsel %vm2901, %v3531, %v2856
    %v3596 = vsel %vm2901, %v3532, %v2861
    %v3597 = vsel %vm2901, %v3533, %v2864
    %v3598 = vsel %vm2901, %v3534, %v2869
    %v3599 = vsel %vm2901, %v3535, %v2872
    %v3600 = vsel %vm2901, %v3536, %v2877
    %v3601 = vsel %vm2901, %v3537, %v2880
    %v3602 = vsel %vm2901, %v3538, %v2885
    %v3603 = vsel %vm2901, %v3539, %v2888
    %v3604 = vsel %vm2901, %v3540, %v2893
    %v3605 = vsel %vm2901, %v3541, %v2896
    %3606 = vst [vmem:[#allocation2] sm:$0xff] %v3542
    %3607 = vst [vmem:[#allocation2 + $0x8] sm:$0xff] %v3543
    %3608 = vst [vmem:[#allocation2 + $0x10] sm:$0xff] %v3544
    %3609 = vst [vmem:[#allocation2 + $0x18] sm:$0xff] %v3545
    %3610 = vst [vmem:[#allocation2 + $0x20] sm:$0xff] %v3546
    %3611 = vst [vmem:[#allocation2 + $0x28] sm:$0xff] %v3547
    %3612 = vst [vmem:[#allocation2 + $0x30] sm:$0xff] %v3548
    %3613 = vst [vmem:[#allocation2 + $0x38] sm:$0xff] %v3549
    %3614 = vst [vmem:[#allocation2 + $0x40] sm:$0xff] %v3550
    %3615 = vst [vmem:[#allocation2 + $0x48] sm:$0xff] %v3551
    %3616 = vst [vmem:[#allocation2 + $0x50] sm:$0xff] %v3552
    %3617 = vst [vmem:[#allocation2 + $0x58] sm:$0xff] %v3553
    %3618 = vst [vmem:[#allocation2 + $0x60] sm:$0xff] %v3554
    %3619 = vst [vmem:[#allocation2 + $0x68] sm:$0xff] %v3555
    %3620 = vst [vmem:[#allocation2 + $0x70] sm:$0xff] %v3556
    %3621 = vst [vmem:[#allocation2 + $0x78] sm:$0xff] %v3557
    %3622 = vst [vmem:[#allocation2 + $0x80] sm:$0xff] %v3558
    %3623 = vst [vmem:[#allocation2 + $0x88] sm:$0xff] %v3559
    %3624 = vst [vmem:[#allocation2 + $0x90] sm:$0xff] %v3560
    %3625 = vst [vmem:[#allocation2 + $0x98] sm:$0xff] %v3561
    %3626 = vst [vmem:[#allocation2 + $0xa0] sm:$0xff] %v3562
    %3627 = vst [vmem:[#allocation2 + $0xa8] sm:$0xff] %v3563
    %3628 = vst [vmem:[#allocation2 + $0xb0] sm:$0xff] %v3564
    %3629 = vst [vmem:[#allocation2 + $0xb8] sm:$0xff] %v3565
    %3630 = vst [vmem:[#allocation2 + $0xc0] sm:$0xff] %v3566
    %3631 = vst [vmem:[#allocation2 + $0xc8] sm:$0xff] %v3567
    %3632 = vst [vmem:[#allocation2 + $0xd0] sm:$0xff] %v3568
    %3633 = vst [vmem:[#allocation2 + $0xd8] sm:$0xff] %v3569
    %3634 = vst [vmem:[#allocation2 + $0xe0] sm:$0xff] %v3570
    %3635 = vst [vmem:[#allocation2 + $0xe8] sm:$0xff] %v3571
    %3636 = vst [vmem:[#allocation2 + $0xf0] sm:$0xff] %v3572
    %3637 = vst [vmem:[#allocation2 + $0xf8] sm:$0xff] %v3573
    %3638 = vst [vmem:[#allocation2 + $0x100] sm:$0xff] %v3574
    %3639 = vst [vmem:[#allocation2 + $0x108] sm:$0xff] %v3575
    %3640 = vst [vmem:[#allocation2 + $0x110] sm:$0xff] %v3576
    %3641 = vst [vmem:[#allocation2 + $0x118] sm:$0xff] %v3577
    %3642 = vst [vmem:[#allocation2 + $0x120] sm:$0xff] %v3578
    %3643 = vst [vmem:[#allocation2 + $0x128] sm:$0xff] %v3579
    %3644 = vst [vmem:[#allocation2 + $0x130] sm:$0xff] %v3580
    %3645 = vst [vmem:[#allocation2 + $0x138] sm:$0xff] %v3581
    %3646 = vst [vmem:[#allocation2 + $0x140] sm:$0xff] %v3582
    %3647 = vst [vmem:[#allocation2 + $0x148] sm:$0xff] %v3583
    %3648 = vst [vmem:[#allocation2 + $0x150] sm:$0xff] %v3584
    %3649 = vst [vmem:[#allocation2 + $0x158] sm:$0xff] %v3585
    %3650 = vst [vmem:[#allocation2 + $0x160] sm:$0xff] %v3586
    %3651 = vst [vmem:[#allocation2 + $0x168] sm:$0xff] %v3587
    %3652 = vst [vmem:[#allocation2 + $0x170] sm:$0xff] %v3588
    %3653 = vst [vmem:[#allocation2 + $0x178] sm:$0xff] %v3589
    %3654 = vst [vmem:[#allocation2 + $0x180] sm:$0xff] %v3590
    %3655 = vst [vmem:[#allocation2 + $0x188] sm:$0xff] %v3591
    %3656 = vst [vmem:[#allocation2 + $0x190] sm:$0xff] %v3592
    %3657 = vst [vmem:[#allocation2 + $0x198] sm:$0xff] %v3593
    %3658 = vst [vmem:[#allocation2 + $0x1a0] sm:$0xff] %v3594
    %3659 = vst [vmem:[#allocation2 + $0x1a8] sm:$0xff] %v3595
    %3660 = vst [vmem:[#allocation2 + $0x1b0] sm:$0xff] %v3596
    %3661 = vst [vmem:[#allocation2 + $0x1b8] sm:$0xff] %v3597
    %3662 = vst [vmem:[#allocation2 + $0x1c0] sm:$0xff] %v3598
    %3663 = vst [vmem:[#allocation2 + $0x1c8] sm:$0xff] %v3599
    %3664 = vst [vmem:[#allocation2 + $0x1d0] sm:$0xff] %v3600
    %3665 = vst [vmem:[#allocation2 + $0x1d8] sm:$0xff] %v3601
    %3666 = vst [vmem:[#allocation2 + $0x1e0] sm:$0xff] %v3602
    %3667 = vst [vmem:[#allocation2 + $0x1e8] sm:$0xff] %v3603
    %3668 = vst [vmem:[#allocation2 + $0x1f0] sm:$0xff] %v3604
    %3669 = vst [vmem:[#allocation2 + $0x1f8] sm:$0xff] %v3605
    // Predicated region
    $region46: #{tpu_custom_call.1} parent=1 // pred_check
      _
    $region47: #{tpu_custom_call.1} parent=1 // pred_check_branch
      %3671 = sbr.rel (0) target = $region49
    $region48: #{tpu_custom_call.1} parent=1 // pred_region
      %s3673 = ssub.s32 8192, 8192
      %3674 = vsyncadd [#allocation3], %s3673
      %s3675 = sshll.u32 [#allocation2], 4
      %s3676 = int_to_ptr.vmem [resolvable:$true] %s3675
      %3681 = dma.vmem_to_hbm [thread:$0]  %s3676, 8192, %s11, [#allocation3], 128, 128, 8
    $region49: #{tpu_custom_call.1} parent=1 // pred_fallthru
      _
    // Predicated region
    $region50: #{tpu_custom_call.1} parent=1 // pred_check
      _
    $region51: #{tpu_custom_call.1} parent=1 // pred_check_branch
      %3683 = sbr.rel (0) target = $region53
    $region52: #{tpu_custom_call.1} parent=1 // pred_region
      %3684 = dma.done [#allocation3], 8192
    $region53: #{tpu_custom_call.1} parent=1 // pred_fallthru
      _
    %3685 = vsyncpa [#allocation3], 1

</llo_original>
